<compile_context>
chip_gen: v6e
topology: v6e:2x2x1
jax: 0.10.0
libtpu: 0.0.40
codegen_flags: <defaults>
</compile_context>

<pallas_src>
import math
import functools

import jax
import jax.numpy as jnp
from jax import lax
from jax.experimental import pallas as pl
from jax.experimental.pallas import tpu as pltpu


# ----------------------------- shared math helpers -----------------------------
def _silu(x):
    return x * (1.0 / (1.0 + jnp.exp(-x)))


def _softplus(x):
    # numerically-stable softplus, same formula used in kernel and reference
    return jnp.where(x > 20.0, x, jnp.log(1.0 + jnp.exp(jnp.minimum(x, 20.0))))


def _gelu_tanh(x):
    # TODO(synk): PyTorch nn.GELU defaults to the exact erf form; the tanh approximation
    # is used here (and in the reference) since erf has no clean Mosaic lowering.
    c = math.sqrt(2.0 / math.pi)
    return 0.5 * x * (1.0 + jnp.tanh(c * (x + 0.044715 * x * x * x)))


# ====================== TST encoder layer (attention + FFN + BN) =================
def tst_layer_kernel(
    x_ref, wq_ref, wk_ref, wv_ref, bq_ref, bk_ref, bv_ref, wo_ref, bo_ref,
    g1_ref, b1n_ref, m1_ref, v1_ref,
    w1_ref, bf1_ref, w2_ref, bf2_ref,
    g2_ref, b2n_ref, m2_ref, v2_ref,
    o_ref,
    *, L, Bb, n_heads, d_k, scale, bn_eps,
):
    f32 = jnp.float32
    bf16 = jnp.bfloat16

    x = x_ref[...]                                    # (Bb, L, D)
    D = x.shape[-1]
    x2 = x.reshape(Bb * L, D)
    x2b = x2.astype(bf16)

    # ---- QKV projections as full-width MXU matmuls (bf16 in, f32 acc) ----
    q_all = jnp.dot(x2b, wq_ref[...], preferred_element_type=f32) + bq_ref[...]
    k_all = jnp.dot(x2b, wk_ref[...], preferred_element_type=f32) + bk_ref[...]
    v_all = jnp.dot(x2b, wv_ref[...], preferred_element_type=f32) + bv_ref[...]

    # ---- per-head scaled dot-product attention + head-sliced output projection ----
    out2 = jnp.zeros((Bb * L, D), f32)
    for h in range(n_heads):
        sl = slice(h * d_k, (h + 1) * d_k)
        q_h = q_all[:, sl].reshape(Bb, L, d_k).astype(bf16)
        k_h = k_all[:, sl].reshape(Bb, L, d_k).astype(bf16)
        v_h = v_all[:, sl].reshape(Bb, L, d_k).astype(bf16)
        s = jnp.einsum('bqd,bkd->bqk', q_h, k_h,
                       preferred_element_type=f32) * scale            # (Bb, L, L)
        s = s - jnp.max(s, axis=-1, keepdims=True)
        p = jnp.exp(s)
        p = p * pl.reciprocal(jnp.sum(p, axis=-1, keepdims=True), approx=True)
        ctx = jnp.einsum('bqk,bkd->bqd', p.astype(bf16), v_h,
                         preferred_element_type=f32)                   # (Bb, L, d_k)
        out2 = out2 + jnp.dot(ctx.reshape(Bb * L, d_k).astype(bf16), wo_ref[h],
                              preferred_element_type=f32)
    out2 = out2 + bo_ref[...]

    # ---- residual + BatchNorm1d (eval: running stats) ----
    src = x2 + out2
    src = (src - m1_ref[...]) * lax.rsqrt(v1_ref[...] + bn_eps) * g1_ref[...] + b1n_ref[...]

    # ---- FFN: Linear -> GELU -> Linear ----
    hid = jnp.dot(src.astype(bf16), w1_ref[...], preferred_element_type=f32) + bf1_ref[...]
    hid = _gelu_tanh(hid)
    ff = jnp.dot(hid.astype(bf16), w2_ref[...], preferred_element_type=f32) + bf2_ref[...]

    # ---- residual + second BatchNorm1d ----
    src2 = src + ff
    src2 = (src2 - m2_ref[...]) * lax.rsqrt(v2_ref[...] + bn_eps) * g2_ref[...] + b2n_ref[...]
    o_ref[...] = src2.reshape(Bb, L, D)


def tst_layer_forward(x, p, *, n_heads, bn_eps=1e-5):
    B, L, D = x.shape
    d_k = D // n_heads
    Bb = 8 if B % 8 == 0 else B
    scale = float(p['scale'])

    kernel = functools.partial(tst_layer_kernel, L=L, Bb=Bb, n_heads=n_heads,
                               d_k=d_k, scale=scale, bn_eps=bn_eps)

    names = ['wq', 'wk', 'wv', 'bq', 'bk', 'bv', 'wo', 'bo',
             'g1', 'b1', 'm1', 'v1', 'w1', 'bf1', 'w2', 'bf2',
             'g2', 'b2', 'm2', 'v2']
    weights = [p[n] for n in names]

    def full_spec(arr):
        n = arr.ndim
        return pl.BlockSpec(arr.shape, lambda b, _n=n: (0,) * _n)

    in_specs = [pl.BlockSpec((Bb, L, D), lambda b: (b, 0, 0))] + \
               [full_spec(w) for w in weights]

    return pl.pallas_call(
        kernel,
        out_shape=jax.ShapeDtypeStruct((B, L, D), jnp.float32),
        grid_spec=pltpu.PrefetchScalarGridSpec(
            num_scalar_prefetch=0,
            grid=(B // Bb,),
            in_specs=in_specs,
            out_specs=pl.BlockSpec((Bb, L, D), lambda b: (b, 0, 0)),
        ),
        compiler_params=pltpu.CompilerParams(
            dimension_semantics=("parallel",),
            vmem_limit_bytes=64 * 1024 * 1024,
        ),
    )(x, *weights)


# ====================== Encoder_mamba (Mamba + residual + BN) ====================
def encoder_mamba_kernel(
    x_ref, w_in_x_ref, w_in_z_ref, w_conv_ref, b_conv_ref,
    w_xdt_ref, w_xb_ref, w_xc_ref, w_dtp_ref, b_dtp_ref,
    A_ref, Dp_ref, w_out_ref, gamma_ref, beta_ref, rmean_ref, rvar_ref,
    o_ref,
    dA_scr, dBx_scr, cb_scr, y_scr,
    *, L, Bt, d_inner, d_state, d_conv, bn_eps,
):
    f32 = jnp.float32
    bf16 = jnp.bfloat16

    x_tm = x_ref[...]                                  # (L, Bt, D) time-major, f32
    D = x_tm.shape[-1]
    x2 = x_tm.reshape(L * Bt, D)
    x2_bf = x2.astype(bf16)

    # ---- in_proj (split into x / gate halves; bf16 MXU, f32 accumulation) ----
    x_in = jnp.dot(x2_bf, w_in_x_ref[...], preferred_element_type=f32)    # (L*Bt, d_inner)
    z_gate = jnp.dot(x2_bf, w_in_z_ref[...], preferred_element_type=f32)  # (L*Bt, d_inner)
    x_in3 = x_in.reshape(L, Bt, d_inner)
    zg3 = z_gate.reshape(L, Bt, d_inner)

    # ---- depthwise causal conv1d as shifted adds (VPU) + SiLU ----
    zero_pad = jnp.zeros((d_conv - 1, Bt, d_inner), f32)
    x_padded = jnp.concatenate([zero_pad, x_in3], axis=0)   # (L+d_conv-1, Bt, d_inner)
    acc = jnp.zeros((L, Bt, d_inner), f32) + b_conv_ref[...]
    for k in range(d_conv):
        acc = acc + x_padded[k:k + L] * w_conv_ref[k:k + 1, :]
    xconv3 = _silu(acc)                                      # (L, Bt, d_inner)
    xc2_bf = xconv3.reshape(L * Bt, d_inner).astype(bf16)

    # ---- x_proj (split -> dt_low | B | C, each lane-aligned), dt_proj + softplus ----
    dt_low = jnp.dot(xc2_bf, w_xdt_ref[...], preferred_element_type=f32)  # (L*Bt, dt_rank)
    bcoef = jnp.dot(xc2_bf, w_xb_ref[...], preferred_element_type=f32)    # (L*Bt, d_state)
    ccoef = jnp.dot(xc2_bf, w_xc_ref[...], preferred_element_type=f32)    # (L*Bt, d_state)
    dt = _softplus(
        jnp.dot(dt_low.astype(bf16), w_dtp_ref[...], preferred_element_type=f32)
        + b_dtp_ref[...])                                                 # (L*Bt, d_inner)

    dt3 = dt.reshape(L, Bt, d_inner)
    bcoef3 = bcoef.reshape(L, Bt, d_state)
    ccoef3 = ccoef.reshape(L, Bt, d_state)
    dtx3 = dt3 * xconv3

    # ---- precompute everything the serial scan needs (hoists exp / broadcasts off the
    #      critical path).  Rows [s*Bt:(s+1)*Bt] of each (d_state*Bt, d_inner) time slice
    #      hold SSM state s for all Bt sequences.
    # TODO(synk): for very long L, tile the time axis in chunks so these scratches stay
    #             within the VMEM budget (they are O(L * d_state * Bt * d_inner) bytes).
    for s in range(d_state):
        lo = s * Bt
        dA_scr[:, lo:lo + Bt, :] = jnp.exp(dt3 * A_ref[s:s + 1, :])
        dBx_scr[:, lo:lo + Bt, :] = bcoef3[:, :, s:s + 1] * dtx3
        cb_scr[:, lo:lo + Bt, :] = jnp.broadcast_to(
            ccoef3[:, :, s:s + 1], (L, Bt, d_inner))

    # ---- selective scan:  h_t = exp(dt_t*A) * h_{t-1} + dt_t*B_t*x_t ;
    #                       y_t = sum_s C_t[s] * h_t[s]           (pure FMAs per step) ----
    def one_step(t, h):
        h = dA_scr[t] * h + dBx_scr[t]              # (d_state*Bt, d_inner)
        prod = cb_scr[t] * h
        y_t = prod[0:Bt]
        for s in range(1, d_state):
            y_t = y_t + prod[s * Bt:(s + 1) * Bt]
        y_scr[t] = y_t                              # (Bt, d_inner)
        return h

    unroll = 2 if (L % 2 == 0) else 1

    def body(i, h):
        for u in range(unroll):
            h = one_step(i * unroll + u, h)
        return h

    lax.fori_loop(0, L // unroll, body, jnp.zeros((d_state * Bt, d_inner), f32))

    # ---- D skip + SiLU gating + out_proj ----
    y3 = (y_scr[...] + Dp_ref[...] * xconv3) * _silu(zg3)          # (L, Bt, d_inner)
    out = jnp.dot(y3.reshape(L * Bt, d_inner).astype(bf16),
                  w_out_ref[...], preferred_element_type=f32)      # (L*Bt, D)

    # ---- residual (dropout == identity in eval) + BatchNorm1d (eval: running stats) ----
    z = x_tm + out.reshape(L, Bt, D)
    z = (z - rmean_ref[...]) * lax.rsqrt(rvar_ref[...] + bn_eps) * gamma_ref[...] \
        + beta_ref[...]
    o_ref[...] = z


def encoder_mamba_forward(x, p, *, d_state, d_conv, expand, bn_eps=1e-5):
    B, L, D = x.shape
    d_inner = expand * D
    # batch tile: 8 sequences per grid step fills the 8-sublane vreg dimension
    Bt = 8 if B % 8 == 0 else B

    kernel = functools.partial(
        encoder_mamba_kernel, L=L, Bt=Bt, d_inner=d_inner, d_state=d_state,
        d_conv=d_conv, bn_eps=bn_eps,
    )

    def full_spec(arr):
        n = arr.ndim
        return pl.BlockSpec(arr.shape, lambda b, _n=n: (0,) * _n)

    weight_names = ['w_in_x', 'w_in_z', 'w_conv', 'b_conv', 'w_x_dt', 'w_x_b', 'w_x_c',
                    'w_dtp', 'b_dtp', 'A', 'Dp', 'w_out', 'gamma', 'beta', 'rmean', 'rvar']
    weights = [p[n] for n in weight_names]

    in_specs = [pl.BlockSpec((L, Bt, D), lambda b: (0, b, 0))] + \
               [full_spec(w) for w in weights]

    # kernel works time-major so the serial scan sees (Bt, d_inner) full-sublane tiles;
    # the layout transposes are cheap wrapper-side XLA ops.
    x_tm = jnp.transpose(x, (1, 0, 2))                 # (L, B, D)

    out_tm = pl.pallas_call(
        kernel,
        out_shape=jax.ShapeDtypeStruct((L, B, D), jnp.float32),
        grid_spec=pltpu.PrefetchScalarGridSpec(
            num_scalar_prefetch=0,
            grid=(B // Bt,),
            in_specs=in_specs,
            out_specs=pl.BlockSpec((L, Bt, D), lambda b: (0, b, 0)),
            scratch_shapes=[
                pltpu.VMEM((L, d_state * Bt, d_inner), jnp.float32),  # exp(dt*A)
                pltpu.VMEM((L, d_state * Bt, d_inner), jnp.float32),  # dt*B*x
                pltpu.VMEM((L, d_state * Bt, d_inner), jnp.float32),  # C (lane-broadcast)
                pltpu.VMEM((L, Bt, d_inner), jnp.float32),            # scan output y
            ],
        ),
        compiler_params=pltpu.CompilerParams(
            dimension_semantics=("parallel",),
            vmem_limit_bytes=64 * 1024 * 1024,
        ),
    )(x_tm, *weights)

    return jnp.transpose(out_tm, (1, 0, 2))            # back to (B, L, D)


# ============================== full Encoder_AMM ==================================
def encoder_amm_forward(x, blocks, *, n_heads, d_state, d_conv, expand, bn_eps=1e-5):
    for blk in blocks:
        for tf_p in blk['tf']:
            x = tst_layer_forward(x, tf_p, n_heads=n_heads, bn_eps=bn_eps)
        x = encoder_mamba_forward(x, blk['m1'], d_state=d_state, d_conv=d_conv,
                                  expand=expand, bn_eps=bn_eps)
        x = encoder_mamba_forward(x, blk['m2'], d_state=d_state, d_conv=d_conv,
                                  expand=expand, bn_eps=bn_eps)
    return x


# ---------------------------- deterministic parameters ---------------------------
def _nrm(k, shape, scale=0.1):
    return (scale * jax.random.normal(k, shape)).astype(jnp.float32)


def _bf(a):
    return a.astype(jnp.bfloat16)


def init_tst_params(key, d_model, n_heads, d_ff):
    dk = d_model // n_heads
    ks = jax.random.split(key, 20)
    return {
        'wq': _bf(_nrm(ks[0], (d_model, d_model))),
        'wk': _bf(_nrm(ks[1], (d_model, d_model))),
        'wv': _bf(_nrm(ks[2], (d_model, d_model))),
        'bq': _nrm(ks[3], (1, d_model)),
        'bk': _nrm(ks[4], (1, d_model)),
        'bv': _nrm(ks[5], (1, d_model)),
        'wo': _bf(_nrm(ks[6], (n_heads, dk, d_model))),       # to_out weight, per head
        'bo': _nrm(ks[7], (1, d_model)),
        'g1': 1.0 + _nrm(ks[8], (1, d_model)),                 # norm_attn BatchNorm1d
        'b1': _nrm(ks[9], (1, d_model)),
        'm1': _nrm(ks[10], (1, d_model)),
        'v1': 1.0 + jnp.abs(_nrm(ks[11], (1, d_model))),
        'w1': _bf(_nrm(ks[12], (d_model, d_ff))),              # ff linear 1
        'bf1': _nrm(ks[13], (1, d_ff)),
        'w2': _bf(_nrm(ks[14], (d_ff, d_model))),              # ff linear 2
        'bf2': _nrm(ks[15], (1, d_model)),
        'g2': 1.0 + _nrm(ks[16], (1, d_model)),                # norm_ffn BatchNorm1d
        'b2': _nrm(ks[17], (1, d_model)),
        'm2': _nrm(ks[18], (1, d_model)),
        'v2': 1.0 + jnp.abs(_nrm(ks[19], (1, d_model))),
        'scale': jnp.float32(dk ** (-0.5)),                    # lsa=False -> fixed scale
    }


def init_mamba_params(key, d_model, d_state, d_conv, expand):
    d_inner = expand * d_model
    dt_rank = math.ceil(d_model / 16)
    ks = jax.random.split(key, 14)

    A = -(jnp.arange(1, d_state + 1, dtype=jnp.float32)[:, None]
          * jnp.ones((d_state, d_inner), jnp.float32))   # A = -exp(A_log), Mamba-style init

    return {
        'w_in_x': _bf(_nrm(ks[0], (d_model, d_inner))),
        'w_in_z': _bf(_nrm(ks[1], (d_model, d_inner))),
        'w_conv': _nrm(ks[2], (d_conv, d_inner), 0.3),             # conv1d.weight (K, d_inner)
        'b_conv': _nrm(ks[3], (1, d_inner)),                       # conv1d.bias
        'w_x_dt': _bf(_nrm(ks[4], (d_inner, dt_rank))),
        'w_x_b':  _bf(_nrm(ks[5], (d_inner, d_state))),
        'w_x_c':  _bf(_nrm(ks[6], (d_inner, d_state))),
        'w_dtp':  _bf(_nrm(ks[7], (dt_rank, d_inner), 0.3)),       # dt_proj.weight.T
        'b_dtp':  _nrm(ks[8], (1, d_inner)),                       # dt_proj.bias
        'A':      A,
        'Dp':     jnp.ones((1, d_inner), jnp.float32),             # D skip parameter
        'w_out':  _bf(_nrm(ks[9], (d_inner, d_model))),            # out_proj.weight.T
        'gamma':  1.0 + _nrm(ks[10], (1, d_model)),                # BatchNorm1d.weight
        'beta':   _nrm(ks[11], (1, d_model)),                      # BatchNorm1d.bias
        'rmean':  _nrm(ks[12], (1, d_model)),                      # running_mean
        'rvar':   1.0 + jnp.abs(_nrm(ks[13], (1, d_model))),       # running_var
    }


def init_encoder_amm_params(key, *, n_blocks, n_tf_layers, d_model, n_heads, d_ff,
                            d_state, d_conv, expand):
    blocks = []
    for kb in jax.random.split(key, n_blocks):
        k_tf, k1, k2 = jax.random.split(kb, 3)
        blocks.append({
            'tf': [init_tst_params(kk, d_model, n_heads, d_ff)
                   for kk in jax.random.split(k_tf, n_tf_layers)],
            'm1': init_mamba_params(k1, d_model, d_state, d_conv, expand),
            'm2': init_mamba_params(k2, d_model, d_state, d_conv, expand),
        })
    return blocks


# -------------------------------- pure-JAX references ------------------------------
def tst_layer_ref(x, p, *, n_heads, bn_eps=1e-5):
    B, L, D = x.shape
    dk = D // n_heads
    f = lambda a: a.astype(jnp.float32)

    q = jnp.einsum('bld,de->ble', x, f(p['wq'])) + p['bq'][0]
    k = jnp.einsum('bld,de->ble', x, f(p['wk'])) + p['bk'][0]
    v = jnp.einsum('bld,de->ble', x, f(p['wv'])) + p['bv'][0]
    q4 = q.reshape(B, L, n_heads, dk)
    k4 = k.reshape(B, L, n_heads, dk)
    v4 = v.reshape(B, L, n_heads, dk)

    s = jnp.einsum('bqhd,bkhd->bhqk', q4, k4) * p['scale']
    attn = jax.nn.softmax(s, axis=-1)
    ctx = jnp.einsum('bhqk,bkhd->bqhd', attn, v4)                   # (B, L, H, dk)
    out = jnp.einsum('bqhd,hde->bqe', ctx, f(p['wo'])) + p['bo'][0]

    src = x + out    # dropout == identity (eval)
    src = (src - p['m1'][0]) * lax.rsqrt(p['v1'][0] + bn_eps) * p['g1'][0] + p['b1'][0]

    hid = _gelu_tanh(jnp.einsum('ble,ef->blf', src, f(p['w1'])) + p['bf1'][0])
    ff = jnp.einsum('blf,fe->ble', hid, f(p['w2'])) + p['bf2'][0]

    src2 = src + ff
    src2 = (src2 - p['m2'][0]) * lax.rsqrt(p['v2'][0] + bn_eps) * p['g2'][0] + p['b2'][0]
    return src2


def mamba_block_ref(x, p, *, d_state, d_conv, expand, bn_eps=1e-5):
    B, L, D = x.shape
    f = lambda a: a.astype(jnp.float32)

    x_in = jnp.einsum('bld,de->ble', x, f(p['w_in_x']))
    z_gate = jnp.einsum('bld,de->ble', x, f(p['w_in_z']))

    x_pad = jnp.pad(x_in, ((0, 0), (d_conv - 1, 0), (0, 0)))
    acc = jnp.zeros_like(x_in) + p['b_conv'][0]
    for k in range(d_conv):
        acc = acc + x_pad[:, k:k + L, :] * p['w_conv'][k]
    xc = _silu(acc)

    dt_low = jnp.einsum('ble,er->blr', xc, f(p['w_x_dt']))
    Bm = jnp.einsum('ble,es->bls', xc, f(p['w_x_b']))
    Cm = jnp.einsum('ble,es->bls', xc, f(p['w_x_c']))
    dt = _softplus(jnp.einsum('blr,re->ble', dt_low, f(p['w_dtp'])) + p['b_dtp'][0])

    A = p['A']  # (d_state, d_inner)

    def step(h, inp):
        dt_t, xc_t, B_t, C_t = inp
        dA = jnp.exp(dt_t[:, None, :] * A[None, :, :])
        dBx = B_t[:, :, None] * (dt_t * xc_t)[:, None, :]
        h = dA * h + dBx
        y = jnp.sum(h * C_t[:, :, None], axis=1) + p['Dp'][0] * xc_t
        return h, y

    h0 = jnp.zeros((B, d_state, expand * D), jnp.float32)
    _, ys = lax.scan(step, h0, (jnp.swapaxes(dt, 0, 1), jnp.swapaxes(xc, 0, 1),
                                jnp.swapaxes(Bm, 0, 1), jnp.swapaxes(Cm, 0, 1)))
    y = jnp.swapaxes(ys, 0, 1) * _silu(z_gate)
    out = jnp.einsum('ble,ed->bld', y, f(p['w_out']))

    z = x + out  # dropout == identity (eval)
    z = (z - p['rmean'][0]) * lax.rsqrt(p['rvar'][0] + bn_eps) * p['gamma'][0] + p['beta'][0]
    return z


def encoder_amm_ref(x, blocks, *, n_heads, d_state, d_conv, expand, bn_eps=1e-5):
    for blk in blocks:
        for tf_p in blk['tf']:
            x = tst_layer_ref(x, tf_p, n_heads=n_heads, bn_eps=bn_eps)
        x = mamba_block_ref(x, blk['m1'], d_state=d_state, d_conv=d_conv,
                            expand=expand, bn_eps=bn_eps)
        x = mamba_block_ref(x, blk['m2'], d_state=d_state, d_conv=d_conv,
                            expand=expand, bn_eps=bn_eps)
    return x


# ------------------------------------- main ---------------------------------------
if __name__ == "__main__":
    B, L, d_model = 8, 16, 32          # q_len = L
    n_heads, d_ff = 4, 64
    d_state, d_conv, expand = 21, 4, 2  # Encoder_AMM_block hardcodes d_state=21 for mamba
    n_blocks, n_tf_layers = 1, 1

    key = jax.random.PRNGKey(0)
    kx, kp = jax.random.split(key)
    x = jax.random.normal(kx, (B, L, d_model), dtype=jnp.float32)
    params = init_encoder_amm_params(kp, n_blocks=n_blocks, n_tf_layers=n_tf_layers,
                                     d_model=d_model, n_heads=n_heads, d_ff=d_ff,
                                     d_state=d_state, d_conv=d_conv, expand=expand)

    out = encoder_amm_forward(x, params, n_heads=n_heads, d_state=d_state,
                              d_conv=d_conv, expand=expand)
    out = jax.block_until_ready(out)

    ref = encoder_amm_ref(x, params, n_heads=n_heads, d_state=d_state,
                          d_conv=d_conv, expand=expand)
    err = float(jnp.max(jnp.abs(out - ref)))

    assert out.shape == (B, L, d_model)
    # tolerance sized for bf16 MXU inputs (~2^-8 relative) chained through 3 sub-blocks
    # (TST layer + 2 Mamba blocks) vs. the f32 reference
    assert err < 1.5e-1, f"max abs err too large: {err}"
    print("KERNEL_OK")
</pallas_src>

<mosaic_0001>
module attributes {stable_mosaic.version = 11 : i64} {
  func.func @tst_layer_kernel(%arg0: i32, %arg1: memref<8x16x32xf32, #tpu.memory_space<vmem>>, %arg2: memref<32x32xbf16, #tpu.memory_space<vmem>>, %arg3: memref<32x32xbf16, #tpu.memory_space<vmem>>, %arg4: memref<32x32xbf16, #tpu.memory_space<vmem>>, %arg5: memref<1x32xf32, #tpu.memory_space<vmem>>, %arg6: memref<1x32xf32, #tpu.memory_space<vmem>>, %arg7: memref<1x32xf32, #tpu.memory_space<vmem>>, %arg8: memref<4x8x32xbf16, #tpu.memory_space<vmem>>, %arg9: memref<1x32xf32, #tpu.memory_space<vmem>>, %arg10: memref<1x32xf32, #tpu.memory_space<vmem>>, %arg11: memref<1x32xf32, #tpu.memory_space<vmem>>, %arg12: memref<1x32xf32, #tpu.memory_space<vmem>>, %arg13: memref<1x32xf32, #tpu.memory_space<vmem>>, %arg14: memref<32x64xbf16, #tpu.memory_space<vmem>>, %arg15: memref<1x64xf32, #tpu.memory_space<vmem>>, %arg16: memref<64x32xbf16, #tpu.memory_space<vmem>>, %arg17: memref<1x32xf32, #tpu.memory_space<vmem>>, %arg18: memref<1x32xf32, #tpu.memory_space<vmem>>, %arg19: memref<1x32xf32, #tpu.memory_space<vmem>>, %arg20: memref<1x32xf32, #tpu.memory_space<vmem>>, %arg21: memref<1x32xf32, #tpu.memory_space<vmem>>, %arg22: memref<8x16x32xf32, #tpu.memory_space<vmem>>) attributes {dimension_semantics = [#tpu.dimension_semantics<parallel>], iteration_bounds = array<i64: 1>, scalar_prefetch = 0 : i64, scratch_operands = 0 : i64, tpu.core_type = #tpu.core_type<tc>, window_params = [{transform_indices = @transform_0, window_bounds = array<i64: 8, 16, 32>}, {pipeline_mode = #tpu.pipeline_mode<synchronous>, transform_indices = @transform_1, window_bounds = array<i64: 32, 32>}, {pipeline_mode = #tpu.pipeline_mode<synchronous>, transform_indices = @transform_2, window_bounds = array<i64: 32, 32>}, {pipeline_mode = #tpu.pipeline_mode<synchronous>, transform_indices = @transform_3, window_bounds = array<i64: 32, 32>}, {pipeline_mode = #tpu.pipeline_mode<synchronous>, transform_indices = @transform_4, window_bounds = array<i64: 1, 32>}, {pipeline_mode = #tpu.pipeline_mode<synchronous>, transform_indices = @transform_5, window_bounds = array<i64: 1, 32>}, {pipeline_mode = #tpu.pipeline_mode<synchronous>, transform_indices = @transform_6, window_bounds = array<i64: 1, 32>}, {pipeline_mode = #tpu.pipeline_mode<synchronous>, transform_indices = @transform_7, window_bounds = array<i64: 4, 8, 32>}, {pipeline_mode = #tpu.pipeline_mode<synchronous>, transform_indices = @transform_8, window_bounds = array<i64: 1, 32>}, {pipeline_mode = #tpu.pipeline_mode<synchronous>, transform_indices = @transform_9, window_bounds = array<i64: 1, 32>}, {pipeline_mode = #tpu.pipeline_mode<synchronous>, transform_indices = @transform_10, window_bounds = array<i64: 1, 32>}, {pipeline_mode = #tpu.pipeline_mode<synchronous>, transform_indices = @transform_11, window_bounds = array<i64: 1, 32>}, {pipeline_mode = #tpu.pipeline_mode<synchronous>, transform_indices = @transform_12, window_bounds = array<i64: 1, 32>}, {pipeline_mode = #tpu.pipeline_mode<synchronous>, transform_indices = @transform_13, window_bounds = array<i64: 32, 64>}, {pipeline_mode = #tpu.pipeline_mode<synchronous>, transform_indices = @transform_14, window_bounds = array<i64: 1, 64>}, {pipeline_mode = #tpu.pipeline_mode<synchronous>, transform_indices = @transform_15, window_bounds = array<i64: 64, 32>}, {pipeline_mode = #tpu.pipeline_mode<synchronous>, transform_indices = @transform_16, window_bounds = array<i64: 1, 32>}, {pipeline_mode = #tpu.pipeline_mode<synchronous>, transform_indices = @transform_17, window_bounds = array<i64: 1, 32>}, {pipeline_mode = #tpu.pipeline_mode<synchronous>, transform_indices = @transform_18, window_bounds = array<i64: 1, 32>}, {pipeline_mode = #tpu.pipeline_mode<synchronous>, transform_indices = @transform_19, window_bounds = array<i64: 1, 32>}, {pipeline_mode = #tpu.pipeline_mode<synchronous>, transform_indices = @transform_20, window_bounds = array<i64: 1, 32>}, {transform_indices = @transform_21, window_bounds = array<i64: 8, 16, 32>}]} {
    %c0 = arith.constant 0 : index
    %c0_0 = arith.constant 0 : index
    %c0_1 = arith.constant 0 : index
    %0 = vector.load %arg1[%c0, %c0_0, %c0_1] : memref<8x16x32xf32, #tpu.memory_space<vmem>>, vector<8x16x32xf32>
    %1 = vector.shape_cast %0 : vector<8x16x32xf32> to vector<128x32xf32>
    %2 = arith.truncf %1 : vector<128x32xf32> to vector<128x32xbf16>
    %c0_2 = arith.constant 0 : index
    %c0_3 = arith.constant 0 : index
    %3 = vector.load %arg2[%c0_2, %c0_3] : memref<32x32xbf16, #tpu.memory_space<vmem>>, vector<32x32xbf16>
    %cst = arith.constant dense<0.000000e+00> : vector<128x32xf32>
    %4 = tpu.matmul %2, %3, %cst {dimension_numbers = #tpu.dot_dimension_numbers<[1], [0], [0], [1], [0, 0, 1, 1], [], []>} : vector<128x32xbf16>, vector<32x32xbf16>, vector<128x32xf32> -> vector<128x32xf32>
    %c0_4 = arith.constant 0 : index
    %c0_5 = arith.constant 0 : index
    %5 = vector.load %arg5[%c0_4, %c0_5] : memref<1x32xf32, #tpu.memory_space<vmem>>, vector<1x32xf32>
    %6 = vector.broadcast %5 : vector<1x32xf32> to vector<128x32xf32>
    %7 = arith.addf %4, %6 : vector<128x32xf32>
    %c0_6 = arith.constant 0 : index
    %c0_7 = arith.constant 0 : index
    %8 = vector.load %arg3[%c0_6, %c0_7] : memref<32x32xbf16, #tpu.memory_space<vmem>>, vector<32x32xbf16>
    %cst_8 = arith.constant dense<0.000000e+00> : vector<128x32xf32>
    %9 = tpu.matmul %2, %8, %cst_8 {dimension_numbers = #tpu.dot_dimension_numbers<[1], [0], [0], [1], [0, 0, 1, 1], [], []>} : vector<128x32xbf16>, vector<32x32xbf16>, vector<128x32xf32> -> vector<128x32xf32>
    %c0_9 = arith.constant 0 : index
    %c0_10 = arith.constant 0 : index
    %10 = vector.load %arg6[%c0_9, %c0_10] : memref<1x32xf32, #tpu.memory_space<vmem>>, vector<1x32xf32>
    %11 = vector.broadcast %10 : vector<1x32xf32> to vector<128x32xf32>
    %12 = arith.addf %9, %11 : vector<128x32xf32>
    %c0_11 = arith.constant 0 : index
    %c0_12 = arith.constant 0 : index
    %13 = vector.load %arg4[%c0_11, %c0_12] : memref<32x32xbf16, #tpu.memory_space<vmem>>, vector<32x32xbf16>
    %cst_13 = arith.constant dense<0.000000e+00> : vector<128x32xf32>
    %14 = tpu.matmul %2, %13, %cst_13 {dimension_numbers = #tpu.dot_dimension_numbers<[1], [0], [0], [1], [0, 0, 1, 1], [], []>} : vector<128x32xbf16>, vector<32x32xbf16>, vector<128x32xf32> -> vector<128x32xf32>
    %c0_14 = arith.constant 0 : index
    %c0_15 = arith.constant 0 : index
    %15 = vector.load %arg7[%c0_14, %c0_15] : memref<1x32xf32, #tpu.memory_space<vmem>>, vector<1x32xf32>
    %16 = vector.broadcast %15 : vector<1x32xf32> to vector<128x32xf32>
    %17 = arith.addf %14, %16 : vector<128x32xf32>
    %cst_16 = arith.constant 0.000000e+00 : f32
    %18 = vector.broadcast %cst_16 : f32 to vector<128x32xf32>
    %19 = vector.extract_strided_slice %7 {offsets = [0, 0], sizes = [128, 8], strides = [1, 1]} : vector<128x32xf32> to vector<128x8xf32>
    %20 = vector.shape_cast %19 : vector<128x8xf32> to vector<8x16x8xf32>
    %21 = arith.truncf %20 : vector<8x16x8xf32> to vector<8x16x8xbf16>
    %22 = vector.extract_strided_slice %12 {offsets = [0, 0], sizes = [128, 8], strides = [1, 1]} : vector<128x32xf32> to vector<128x8xf32>
    %23 = vector.shape_cast %22 : vector<128x8xf32> to vector<8x16x8xf32>
    %24 = arith.truncf %23 : vector<8x16x8xf32> to vector<8x16x8xbf16>
    %25 = vector.extract_strided_slice %17 {offsets = [0, 0], sizes = [128, 8], strides = [1, 1]} : vector<128x32xf32> to vector<128x8xf32>
    %26 = vector.shape_cast %25 : vector<128x8xf32> to vector<8x16x8xf32>
    %27 = arith.truncf %26 : vector<8x16x8xf32> to vector<8x16x8xbf16>
    "tpu.trace_start"() <{level = 10 : i32, message = "bqd,bkd->bqk"}> : () -> ()
    %cst_17 = arith.constant dense<0.000000e+00> : vector<8x16x16xf32>
    %28 = tpu.matmul %21, %24, %cst_17 {dimension_numbers = #tpu.dot_dimension_numbers<[2], [2], [1], [1], [0, 0, 0, 1, 1, 1], [0], [0]>} : vector<8x16x8xbf16>, vector<8x16x8xbf16>, vector<8x16x16xf32> -> vector<8x16x16xf32>
    "tpu.trace_stop"() : () -> ()
    %cst_18 = arith.constant 0.353553385 : f32
    %29 = vector.broadcast %cst_18 : f32 to vector<8x16x16xf32>
    %30 = arith.mulf %28, %29 : vector<8x16x16xf32>
    %cst_19 = arith.constant dense<0xFF800000> : vector<8x16xf32>
    %31 = vector.multi_reduction <maximumf>, %30, %cst_19 [2] : vector<8x16x16xf32> to vector<8x16xf32>
    %32 = vector.shape_cast %31 : vector<8x16xf32> to vector<8x16x1xf32>
    %33 = vector.broadcast %32 : vector<8x16x1xf32> to vector<8x16x16xf32>
    %34 = arith.subf %30, %33 : vector<8x16x16xf32>
    %35 = math.exp %34 : vector<8x16x16xf32>
    %cst_20 = arith.constant dense<0.000000e+00> : vector<8x16xf32>
    %36 = vector.multi_reduction <add>, %35, %cst_20 [2] : vector<8x16x16xf32> to vector<8x16xf32>
    %37 = vector.shape_cast %36 : vector<8x16xf32> to vector<8x16x1xf32>
    %38 = tpu.reciprocal %37 {approx = true} : vector<8x16x1xf32> -> vector<8x16x1xf32>
    %39 = vector.broadcast %38 : vector<8x16x1xf32> to vector<8x16x16xf32>
    %40 = arith.mulf %35, %39 : vector<8x16x16xf32>
    %41 = arith.truncf %40 : vector<8x16x16xf32> to vector<8x16x16xbf16>
    "tpu.trace_start"() <{level = 10 : i32, message = "bqk,bkd->bqd"}> : () -> ()
    %cst_21 = arith.constant dense<0.000000e+00> : vector<8x16x8xf32>
    %42 = tpu.matmul %41, %27, %cst_21 {dimension_numbers = #tpu.dot_dimension_numbers<[2], [1], [1], [2], [0, 0, 0, 1, 1, 2], [0], [0]>} : vector<8x16x16xbf16>, vector<8x16x8xbf16>, vector<8x16x8xf32> -> vector<8x16x8xf32>
    "tpu.trace_stop"() : () -> ()
    %43 = vector.shape_cast %42 : vector<8x16x8xf32> to vector<128x8xf32>
    %44 = arith.truncf %43 : vector<128x8xf32> to vector<128x8xbf16>
    %c0_22 = arith.constant 0 : index
    %c0_23 = arith.constant 0 : index
    %c0_24 = arith.constant 0 : index
    %45 = vector.load %arg8[%c0_22, %c0_23, %c0_24] : memref<4x8x32xbf16, #tpu.memory_space<vmem>>, vector<1x8x32xbf16>
    %46 = vector.shape_cast %45 : vector<1x8x32xbf16> to vector<8x32xbf16>
    %cst_25 = arith.constant dense<0.000000e+00> : vector<128x32xf32>
    %47 = tpu.matmul %44, %46, %cst_25 {dimension_numbers = #tpu.dot_dimension_numbers<[1], [0], [0], [1], [0, 0, 1, 1], [], []>} : vector<128x8xbf16>, vector<8x32xbf16>, vector<128x32xf32> -> vector<128x32xf32>
    %48 = arith.addf %18, %47 : vector<128x32xf32>
    %49 = vector.extract_strided_slice %7 {offsets = [0, 8], sizes = [128, 8], strides = [1, 1]} : vector<128x32xf32> to vector<128x8xf32>
    %50 = vector.shape_cast %49 : vector<128x8xf32> to vector<8x16x8xf32>
    %51 = arith.truncf %50 : vector<8x16x8xf32> to vector<8x16x8xbf16>
    %52 = vector.extract_strided_slice %12 {offsets = [0, 8], sizes = [128, 8], strides = [1, 1]} : vector<128x32xf32> to vector<128x8xf32>
    %53 = vector.shape_cast %52 : vector<128x8xf32> to vector<8x16x8xf32>
    %54 = arith.truncf %53 : vector<8x16x8xf32> to vector<8x16x8xbf16>
    %55 = vector.extract_strided_slice %17 {offsets = [0, 8], sizes = [128, 8], strides = [1, 1]} : vector<128x32xf32> to vector<128x8xf32>
    %56 = vector.shape_cast %55 : vector<128x8xf32> to vector<8x16x8xf32>
    %57 = arith.truncf %56 : vector<8x16x8xf32> to vector<8x16x8xbf16>
    "tpu.trace_start"() <{level = 10 : i32, message = "bqd,bkd->bqk"}> : () -> ()
    %cst_26 = arith.constant dense<0.000000e+00> : vector<8x16x16xf32>
    %58 = tpu.matmul %51, %54, %cst_26 {dimension_numbers = #tpu.dot_dimension_numbers<[2], [2], [1], [1], [0, 0, 0, 1, 1, 1], [0], [0]>} : vector<8x16x8xbf16>, vector<8x16x8xbf16>, vector<8x16x16xf32> -> vector<8x16x16xf32>
    "tpu.trace_stop"() : () -> ()
    %cst_27 = arith.constant 0.353553385 : f32
    %59 = vector.broadcast %cst_27 : f32 to vector<8x16x16xf32>
    %60 = arith.mulf %58, %59 : vector<8x16x16xf32>
    %cst_28 = arith.constant dense<0xFF800000> : vector<8x16xf32>
    %61 = vector.multi_reduction <maximumf>, %60, %cst_28 [2] : vector<8x16x16xf32> to vector<8x16xf32>
    %62 = vector.shape_cast %61 : vector<8x16xf32> to vector<8x16x1xf32>
    %63 = vector.broadcast %62 : vector<8x16x1xf32> to vector<8x16x16xf32>
    %64 = arith.subf %60, %63 : vector<8x16x16xf32>
    %65 = math.exp %64 : vector<8x16x16xf32>
    %cst_29 = arith.constant dense<0.000000e+00> : vector<8x16xf32>
    %66 = vector.multi_reduction <add>, %65, %cst_29 [2] : vector<8x16x16xf32> to vector<8x16xf32>
    %67 = vector.shape_cast %66 : vector<8x16xf32> to vector<8x16x1xf32>
    %68 = tpu.reciprocal %67 {approx = true} : vector<8x16x1xf32> -> vector<8x16x1xf32>
    %69 = vector.broadcast %68 : vector<8x16x1xf32> to vector<8x16x16xf32>
    %70 = arith.mulf %65, %69 : vector<8x16x16xf32>
    %71 = arith.truncf %70 : vector<8x16x16xf32> to vector<8x16x16xbf16>
    "tpu.trace_start"() <{level = 10 : i32, message = "bqk,bkd->bqd"}> : () -> ()
    %cst_30 = arith.constant dense<0.000000e+00> : vector<8x16x8xf32>
    %72 = tpu.matmul %71, %57, %cst_30 {dimension_numbers = #tpu.dot_dimension_numbers<[2], [1], [1], [2], [0, 0, 0, 1, 1, 2], [0], [0]>} : vector<8x16x16xbf16>, vector<8x16x8xbf16>, vector<8x16x8xf32> -> vector<8x16x8xf32>
    "tpu.trace_stop"() : () -> ()
    %73 = vector.shape_cast %72 : vector<8x16x8xf32> to vector<128x8xf32>
    %74 = arith.truncf %73 : vector<128x8xf32> to vector<128x8xbf16>
    %c1 = arith.constant 1 : index
    %c0_31 = arith.constant 0 : index
    %c0_32 = arith.constant 0 : index
    %75 = vector.load %arg8[%c1, %c0_31, %c0_32] : memref<4x8x32xbf16, #tpu.memory_space<vmem>>, vector<1x8x32xbf16>
    %76 = vector.shape_cast %75 : vector<1x8x32xbf16> to vector<8x32xbf16>
    %cst_33 = arith.constant dense<0.000000e+00> : vector<128x32xf32>
    %77 = tpu.matmul %74, %76, %cst_33 {dimension_numbers = #tpu.dot_dimension_numbers<[1], [0], [0], [1], [0, 0, 1, 1], [], []>} : vector<128x8xbf16>, vector<8x32xbf16>, vector<128x32xf32> -> vector<128x32xf32>
    %78 = arith.addf %48, %77 : vector<128x32xf32>
    %79 = vector.extract_strided_slice %7 {offsets = [0, 16], sizes = [128, 8], strides = [1, 1]} : vector<128x32xf32> to vector<128x8xf32>
    %80 = vector.shape_cast %79 : vector<128x8xf32> to vector<8x16x8xf32>
    %81 = arith.truncf %80 : vector<8x16x8xf32> to vector<8x16x8xbf16>
    %82 = vector.extract_strided_slice %12 {offsets = [0, 16], sizes = [128, 8], strides = [1, 1]} : vector<128x32xf32> to vector<128x8xf32>
    %83 = vector.shape_cast %82 : vector<128x8xf32> to vector<8x16x8xf32>
    %84 = arith.truncf %83 : vector<8x16x8xf32> to vector<8x16x8xbf16>
    %85 = vector.extract_strided_slice %17 {offsets = [0, 16], sizes = [128, 8], strides = [1, 1]} : vector<128x32xf32> to vector<128x8xf32>
    %86 = vector.shape_cast %85 : vector<128x8xf32> to vector<8x16x8xf32>
    %87 = arith.truncf %86 : vector<8x16x8xf32> to vector<8x16x8xbf16>
    "tpu.trace_start"() <{level = 10 : i32, message = "bqd,bkd->bqk"}> : () -> ()
    %cst_34 = arith.constant dense<0.000000e+00> : vector<8x16x16xf32>
    %88 = tpu.matmul %81, %84, %cst_34 {dimension_numbers = #tpu.dot_dimension_numbers<[2], [2], [1], [1], [0, 0, 0, 1, 1, 1], [0], [0]>} : vector<8x16x8xbf16>, vector<8x16x8xbf16>, vector<8x16x16xf32> -> vector<8x16x16xf32>
    "tpu.trace_stop"() : () -> ()
    %cst_35 = arith.constant 0.353553385 : f32
    %89 = vector.broadcast %cst_35 : f32 to vector<8x16x16xf32>
    %90 = arith.mulf %88, %89 : vector<8x16x16xf32>
    %cst_36 = arith.constant dense<0xFF800000> : vector<8x16xf32>
    %91 = vector.multi_reduction <maximumf>, %90, %cst_36 [2] : vector<8x16x16xf32> to vector<8x16xf32>
    %92 = vector.shape_cast %91 : vector<8x16xf32> to vector<8x16x1xf32>
    %93 = vector.broadcast %92 : vector<8x16x1xf32> to vector<8x16x16xf32>
    %94 = arith.subf %90, %93 : vector<8x16x16xf32>
    %95 = math.exp %94 : vector<8x16x16xf32>
    %cst_37 = arith.constant dense<0.000000e+00> : vector<8x16xf32>
    %96 = vector.multi_reduction <add>, %95, %cst_37 [2] : vector<8x16x16xf32> to vector<8x16xf32>
    %97 = vector.shape_cast %96 : vector<8x16xf32> to vector<8x16x1xf32>
    %98 = tpu.reciprocal %97 {approx = true} : vector<8x16x1xf32> -> vector<8x16x1xf32>
    %99 = vector.broadcast %98 : vector<8x16x1xf32> to vector<8x16x16xf32>
    %100 = arith.mulf %95, %99 : vector<8x16x16xf32>
    %101 = arith.truncf %100 : vector<8x16x16xf32> to vector<8x16x16xbf16>
    "tpu.trace_start"() <{level = 10 : i32, message = "bqk,bkd->bqd"}> : () -> ()
    %cst_38 = arith.constant dense<0.000000e+00> : vector<8x16x8xf32>
    %102 = tpu.matmul %101, %87, %cst_38 {dimension_numbers = #tpu.dot_dimension_numbers<[2], [1], [1], [2], [0, 0, 0, 1, 1, 2], [0], [0]>} : vector<8x16x16xbf16>, vector<8x16x8xbf16>, vector<8x16x8xf32> -> vector<8x16x8xf32>
    "tpu.trace_stop"() : () -> ()
    %103 = vector.shape_cast %102 : vector<8x16x8xf32> to vector<128x8xf32>
    %104 = arith.truncf %103 : vector<128x8xf32> to vector<128x8xbf16>
    %c2 = arith.constant 2 : index
    %c0_39 = arith.constant 0 : index
    %c0_40 = arith.constant 0 : index
    %105 = vector.load %arg8[%c2, %c0_39, %c0_40] : memref<4x8x32xbf16, #tpu.memory_space<vmem>>, vector<1x8x32xbf16>
    %106 = vector.shape_cast %105 : vector<1x8x32xbf16> to vector<8x32xbf16>
    %cst_41 = arith.constant dense<0.000000e+00> : vector<128x32xf32>
    %107 = tpu.matmul %104, %106, %cst_41 {dimension_numbers = #tpu.dot_dimension_numbers<[1], [0], [0], [1], [0, 0, 1, 1], [], []>} : vector<128x8xbf16>, vector<8x32xbf16>, vector<128x32xf32> -> vector<128x32xf32>
    %108 = arith.addf %78, %107 : vector<128x32xf32>
    %109 = vector.extract_strided_slice %7 {offsets = [0, 24], sizes = [128, 8], strides = [1, 1]} : vector<128x32xf32> to vector<128x8xf32>
    %110 = vector.shape_cast %109 : vector<128x8xf32> to vector<8x16x8xf32>
    %111 = arith.truncf %110 : vector<8x16x8xf32> to vector<8x16x8xbf16>
    %112 = vector.extract_strided_slice %12 {offsets = [0, 24], sizes = [128, 8], strides = [1, 1]} : vector<128x32xf32> to vector<128x8xf32>
    %113 = vector.shape_cast %112 : vector<128x8xf32> to vector<8x16x8xf32>
    %114 = arith.truncf %113 : vector<8x16x8xf32> to vector<8x16x8xbf16>
    %115 = vector.extract_strided_slice %17 {offsets = [0, 24], sizes = [128, 8], strides = [1, 1]} : vector<128x32xf32> to vector<128x8xf32>
    %116 = vector.shape_cast %115 : vector<128x8xf32> to vector<8x16x8xf32>
    %117 = arith.truncf %116 : vector<8x16x8xf32> to vector<8x16x8xbf16>
    "tpu.trace_start"() <{level = 10 : i32, message = "bqd,bkd->bqk"}> : () -> ()
    %cst_42 = arith.constant dense<0.000000e+00> : vector<8x16x16xf32>
    %118 = tpu.matmul %111, %114, %cst_42 {dimension_numbers = #tpu.dot_dimension_numbers<[2], [2], [1], [1], [0, 0, 0, 1, 1, 1], [0], [0]>} : vector<8x16x8xbf16>, vector<8x16x8xbf16>, vector<8x16x16xf32> -> vector<8x16x16xf32>
    "tpu.trace_stop"() : () -> ()
    %cst_43 = arith.constant 0.353553385 : f32
    %119 = vector.broadcast %cst_43 : f32 to vector<8x16x16xf32>
    %120 = arith.mulf %118, %119 : vector<8x16x16xf32>
    %cst_44 = arith.constant dense<0xFF800000> : vector<8x16xf32>
    %121 = vector.multi_reduction <maximumf>, %120, %cst_44 [2] : vector<8x16x16xf32> to vector<8x16xf32>
    %122 = vector.shape_cast %121 : vector<8x16xf32> to vector<8x16x1xf32>
    %123 = vector.broadcast %122 : vector<8x16x1xf32> to vector<8x16x16xf32>
    %124 = arith.subf %120, %123 : vector<8x16x16xf32>
    %125 = math.exp %124 : vector<8x16x16xf32>
    %cst_45 = arith.constant dense<0.000000e+00> : vector<8x16xf32>
    %126 = vector.multi_reduction <add>, %125, %cst_45 [2] : vector<8x16x16xf32> to vector<8x16xf32>
    %127 = vector.shape_cast %126 : vector<8x16xf32> to vector<8x16x1xf32>
    %128 = tpu.reciprocal %127 {approx = true} : vector<8x16x1xf32> -> vector<8x16x1xf32>
    %129 = vector.broadcast %128 : vector<8x16x1xf32> to vector<8x16x16xf32>
    %130 = arith.mulf %125, %129 : vector<8x16x16xf32>
    %131 = arith.truncf %130 : vector<8x16x16xf32> to vector<8x16x16xbf16>
    "tpu.trace_start"() <{level = 10 : i32, message = "bqk,bkd->bqd"}> : () -> ()
    %cst_46 = arith.constant dense<0.000000e+00> : vector<8x16x8xf32>
    %132 = tpu.matmul %131, %117, %cst_46 {dimension_numbers = #tpu.dot_dimension_numbers<[2], [1], [1], [2], [0, 0, 0, 1, 1, 2], [0], [0]>} : vector<8x16x16xbf16>, vector<8x16x8xbf16>, vector<8x16x8xf32> -> vector<8x16x8xf32>
    "tpu.trace_stop"() : () -> ()
    %133 = vector.shape_cast %132 : vector<8x16x8xf32> to vector<128x8xf32>
    %134 = arith.truncf %133 : vector<128x8xf32> to vector<128x8xbf16>
    %c3 = arith.constant 3 : index
    %c0_47 = arith.constant 0 : index
    %c0_48 = arith.constant 0 : index
    %135 = vector.load %arg8[%c3, %c0_47, %c0_48] : memref<4x8x32xbf16, #tpu.memory_space<vmem>>, vector<1x8x32xbf16>
    %136 = vector.shape_cast %135 : vector<1x8x32xbf16> to vector<8x32xbf16>
    %cst_49 = arith.constant dense<0.000000e+00> : vector<128x32xf32>
    %137 = tpu.matmul %134, %136, %cst_49 {dimension_numbers = #tpu.dot_dimension_numbers<[1], [0], [0], [1], [0, 0, 1, 1], [], []>} : vector<128x8xbf16>, vector<8x32xbf16>, vector<128x32xf32> -> vector<128x32xf32>
    %138 = arith.addf %108, %137 : vector<128x32xf32>
    %c0_50 = arith.constant 0 : index
    %c0_51 = arith.constant 0 : index
    %139 = vector.load %arg9[%c0_50, %c0_51] : memref<1x32xf32, #tpu.memory_space<vmem>>, vector<1x32xf32>
    %140 = vector.broadcast %139 : vector<1x32xf32> to vector<128x32xf32>
    %141 = arith.addf %138, %140 : vector<128x32xf32>
    %142 = arith.addf %1, %141 : vector<128x32xf32>
    %c0_52 = arith.constant 0 : index
    %c0_53 = arith.constant 0 : index
    %143 = vector.load %arg12[%c0_52, %c0_53] : memref<1x32xf32, #tpu.memory_space<vmem>>, vector<1x32xf32>
    %144 = vector.broadcast %143 : vector<1x32xf32> to vector<128x32xf32>
    %145 = arith.subf %142, %144 : vector<128x32xf32>
    %c0_54 = arith.constant 0 : index
    %c0_55 = arith.constant 0 : index
    %146 = vector.load %arg13[%c0_54, %c0_55] : memref<1x32xf32, #tpu.memory_space<vmem>>, vector<1x32xf32>
    %cst_56 = arith.constant 9.99999974E-6 : f32
    %147 = vector.broadcast %cst_56 : f32 to vector<1x32xf32>
    %148 = arith.addf %146, %147 : vector<1x32xf32>
    %149 = math.rsqrt %148 : vector<1x32xf32>
    %150 = vector.broadcast %149 : vector<1x32xf32> to vector<128x32xf32>
    %151 = arith.mulf %145, %150 : vector<128x32xf32>
    %c0_57 = arith.constant 0 : index
    %c0_58 = arith.constant 0 : index
    %152 = vector.load %arg10[%c0_57, %c0_58] : memref<1x32xf32, #tpu.memory_space<vmem>>, vector<1x32xf32>
    %153 = vector.broadcast %152 : vector<1x32xf32> to vector<128x32xf32>
    %154 = arith.mulf %151, %153 : vector<128x32xf32>
    %c0_59 = arith.constant 0 : index
    %c0_60 = arith.constant 0 : index
    %155 = vector.load %arg11[%c0_59, %c0_60] : memref<1x32xf32, #tpu.memory_space<vmem>>, vector<1x32xf32>
    %156 = vector.broadcast %155 : vector<1x32xf32> to vector<128x32xf32>
    %157 = arith.addf %154, %156 : vector<128x32xf32>
    %158 = arith.truncf %157 : vector<128x32xf32> to vector<128x32xbf16>
    %c0_61 = arith.constant 0 : index
    %c0_62 = arith.constant 0 : index
    %159 = vector.load %arg14[%c0_61, %c0_62] : memref<32x64xbf16, #tpu.memory_space<vmem>>, vector<32x64xbf16>
    %cst_63 = arith.constant dense<0.000000e+00> : vector<128x64xf32>
    %160 = tpu.matmul %158, %159, %cst_63 {dimension_numbers = #tpu.dot_dimension_numbers<[1], [0], [0], [1], [0, 0, 1, 1], [], []>} : vector<128x32xbf16>, vector<32x64xbf16>, vector<128x64xf32> -> vector<128x64xf32>
    %c0_64 = arith.constant 0 : index
    %c0_65 = arith.constant 0 : index
    %161 = vector.load %arg15[%c0_64, %c0_65] : memref<1x64xf32, #tpu.memory_space<vmem>>, vector<1x64xf32>
    %162 = vector.broadcast %161 : vector<1x64xf32> to vector<128x64xf32>
    %163 = arith.addf %160, %162 : vector<128x64xf32>
    %cst_66 = arith.constant 5.000000e-01 : f32
    %164 = vector.broadcast %cst_66 : f32 to vector<128x64xf32>
    %165 = arith.mulf %164, %163 : vector<128x64xf32>
    %cst_67 = arith.constant 4.471500e-02 : f32
    %166 = vector.broadcast %cst_67 : f32 to vector<128x64xf32>
    %167 = arith.mulf %166, %163 : vector<128x64xf32>
    %168 = arith.mulf %167, %163 : vector<128x64xf32>
    %169 = arith.mulf %168, %163 : vector<128x64xf32>
    %170 = arith.addf %163, %169 : vector<128x64xf32>
    %cst_68 = arith.constant 0.797884583 : f32
    %171 = vector.broadcast %cst_68 : f32 to vector<128x64xf32>
    %172 = arith.mulf %171, %170 : vector<128x64xf32>
    %173 = math.tanh %172 : vector<128x64xf32>
    %cst_69 = arith.constant 1.000000e+00 : f32
    %174 = vector.broadcast %cst_69 : f32 to vector<128x64xf32>
    %175 = arith.addf %174, %173 : vector<128x64xf32>
    %176 = arith.mulf %165, %175 : vector<128x64xf32>
    %177 = arith.truncf %176 : vector<128x64xf32> to vector<128x64xbf16>
    %c0_70 = arith.constant 0 : index
    %c0_71 = arith.constant 0 : index
    %178 = vector.load %arg16[%c0_70, %c0_71] : memref<64x32xbf16, #tpu.memory_space<vmem>>, vector<64x32xbf16>
    %cst_72 = arith.constant dense<0.000000e+00> : vector<128x32xf32>
    %179 = tpu.matmul %177, %178, %cst_72 {dimension_numbers = #tpu.dot_dimension_numbers<[1], [0], [0], [1], [0, 0, 1, 1], [], []>} : vector<128x64xbf16>, vector<64x32xbf16>, vector<128x32xf32> -> vector<128x32xf32>
    %c0_73 = arith.constant 0 : index
    %c0_74 = arith.constant 0 : index
    %180 = vector.load %arg17[%c0_73, %c0_74] : memref<1x32xf32, #tpu.memory_space<vmem>>, vector<1x32xf32>
    %181 = vector.broadcast %180 : vector<1x32xf32> to vector<128x32xf32>
    %182 = arith.addf %179, %181 : vector<128x32xf32>
    %183 = arith.addf %157, %182 : vector<128x32xf32>
    %c0_75 = arith.constant 0 : index
    %c0_76 = arith.constant 0 : index
    %184 = vector.load %arg20[%c0_75, %c0_76] : memref<1x32xf32, #tpu.memory_space<vmem>>, vector<1x32xf32>
    %185 = vector.broadcast %184 : vector<1x32xf32> to vector<128x32xf32>
    %186 = arith.subf %183, %185 : vector<128x32xf32>
    %c0_77 = arith.constant 0 : index
    %c0_78 = arith.constant 0 : index
    %187 = vector.load %arg21[%c0_77, %c0_78] : memref<1x32xf32, #tpu.memory_space<vmem>>, vector<1x32xf32>
    %cst_79 = arith.constant 9.99999974E-6 : f32
    %188 = vector.broadcast %cst_79 : f32 to vector<1x32xf32>
    %189 = arith.addf %187, %188 : vector<1x32xf32>
    %190 = math.rsqrt %189 : vector<1x32xf32>
    %191 = vector.broadcast %190 : vector<1x32xf32> to vector<128x32xf32>
    %192 = arith.mulf %186, %191 : vector<128x32xf32>
    %c0_80 = arith.constant 0 : index
    %c0_81 = arith.constant 0 : index
    %193 = vector.load %arg18[%c0_80, %c0_81] : memref<1x32xf32, #tpu.memory_space<vmem>>, vector<1x32xf32>
    %194 = vector.broadcast %193 : vector<1x32xf32> to vector<128x32xf32>
    %195 = arith.mulf %192, %194 : vector<128x32xf32>
    %c0_82 = arith.constant 0 : index
    %c0_83 = arith.constant 0 : index
    %196 = vector.load %arg19[%c0_82, %c0_83] : memref<1x32xf32, #tpu.memory_space<vmem>>, vector<1x32xf32>
    %197 = vector.broadcast %196 : vector<1x32xf32> to vector<128x32xf32>
    %198 = arith.addf %195, %197 : vector<128x32xf32>
    %199 = vector.shape_cast %198 : vector<128x32xf32> to vector<8x16x32xf32>
    %c0_84 = arith.constant 0 : index
    %c0_85 = arith.constant 0 : index
    %c0_86 = arith.constant 0 : index
    %200 = vector.load %arg22[%c0_84, %c0_85, %c0_86] : memref<8x16x32xf32, #tpu.memory_space<vmem>>, vector<8x16x32xf32>
    tpu.vector_store %arg22[%c0_84, %c0_85, %c0_86], %199 {strides = array<i32>} : memref<8x16x32xf32, #tpu.memory_space<vmem>>, vector<8x16x32xf32>,
    return
  }
  func.func @transform_0(%arg0: i32) -> (i32, i32, i32) {
    %c0_i32 = arith.constant 0 : i32
    %c0_i32_0 = arith.constant 0 : i32
    %c0_i32_1 = arith.constant 0 : i32
    return %arg0, %c0_i32, %c0_i32_0 : i32, i32, i32
  }
  func.func @transform_1(%arg0: i32) -> (i32, i32) {
    %c0_i32 = arith.constant 0 : i32
    %c0_i32_0 = arith.constant 0 : i32
    %c0_i32_1 = arith.constant 0 : i32
    return %c0_i32, %c0_i32_0 : i32, i32
  }
  func.func @transform_2(%arg0: i32) -> (i32, i32) {
    %c0_i32 = arith.constant 0 : i32
    %c0_i32_0 = arith.constant 0 : i32
    %c0_i32_1 = arith.constant 0 : i32
    return %c0_i32, %c0_i32_0 : i32, i32
  }
  func.func @transform_3(%arg0: i32) -> (i32, i32) {
    %c0_i32 = arith.constant 0 : i32
    %c0_i32_0 = arith.constant 0 : i32
    %c0_i32_1 = arith.constant 0 : i32
    return %c0_i32, %c0_i32_0 : i32, i32
  }
  func.func @transform_4(%arg0: i32) -> (i32, i32) {
    %c0_i32 = arith.constant 0 : i32
    %c0_i32_0 = arith.constant 0 : i32
    %c0_i32_1 = arith.constant 0 : i32
    return %c0_i32, %c0_i32_0 : i32, i32
  }
  func.func @transform_5(%arg0: i32) -> (i32, i32) {
    %c0_i32 = arith.constant 0 : i32
    %c0_i32_0 = arith.constant 0 : i32
    %c0_i32_1 = arith.constant 0 : i32
    return %c0_i32, %c0_i32_0 : i32, i32
  }
  func.func @transform_6(%arg0: i32) -> (i32, i32) {
    %c0_i32 = arith.constant 0 : i32
    %c0_i32_0 = arith.constant 0 : i32
    %c0_i32_1 = arith.constant 0 : i32
    return %c0_i32, %c0_i32_0 : i32, i32
  }
  func.func @transform_7(%arg0: i32) -> (i32, i32, i32) {
    %c0_i32 = arith.constant 0 : i32
    %c0_i32_0 = arith.constant 0 : i32
    %c0_i32_1 = arith.constant 0 : i32
    %c0_i32_2 = arith.constant 0 : i32
    return %c0_i32, %c0_i32_0, %c0_i32_1 : i32, i32, i32
  }
  func.func @transform_8(%arg0: i32) -> (i32, i32) {
    %c0_i32 = arith.constant 0 : i32
    %c0_i32_0 = arith.constant 0 : i32
    %c0_i32_1 = arith.constant 0 : i32
    return %c0_i32, %c0_i32_0 : i32, i32
  }
  func.func @transform_9(%arg0: i32) -> (i32, i32) {
    %c0_i32 = arith.constant 0 : i32
    %c0_i32_0 = arith.constant 0 : i32
    %c0_i32_1 = arith.constant 0 : i32
    return %c0_i32, %c0_i32_0 : i32, i32
  }
  func.func @transform_10(%arg0: i32) -> (i32, i32) {
    %c0_i32 = arith.constant 0 : i32
    %c0_i32_0 = arith.constant 0 : i32
    %c0_i32_1 = arith.constant 0 : i32
    return %c0_i32, %c0_i32_0 : i32, i32
  }
  func.func @transform_11(%arg0: i32) -> (i32, i32) {
    %c0_i32 = arith.constant 0 : i32
    %c0_i32_0 = arith.constant 0 : i32
    %c0_i32_1 = arith.constant 0 : i32
    return %c0_i32, %c0_i32_0 : i32, i32
  }
  func.func @transform_12(%arg0: i32) -> (i32, i32) {
    %c0_i32 = arith.constant 0 : i32
    %c0_i32_0 = arith.constant 0 : i32
    %c0_i32_1 = arith.constant 0 : i32
    return %c0_i32, %c0_i32_0 : i32, i32
  }
  func.func @transform_13(%arg0: i32) -> (i32, i32) {
    %c0_i32 = arith.constant 0 : i32
    %c0_i32_0 = arith.constant 0 : i32
    %c0_i32_1 = arith.constant 0 : i32
    return %c0_i32, %c0_i32_0 : i32, i32
  }
  func.func @transform_14(%arg0: i32) -> (i32, i32) {
    %c0_i32 = arith.constant 0 : i32
    %c0_i32_0 = arith.constant 0 : i32
    %c0_i32_1 = arith.constant 0 : i32
    return %c0_i32, %c0_i32_0 : i32, i32
  }
  func.func @transform_15(%arg0: i32) -> (i32, i32) {
    %c0_i32 = arith.constant 0 : i32
    %c0_i32_0 = arith.constant 0 : i32
    %c0_i32_1 = arith.constant 0 : i32
    return %c0_i32, %c0_i32_0 : i32, i32
  }
  func.func @transform_16(%arg0: i32) -> (i32, i32) {
    %c0_i32 = arith.constant 0 : i32
    %c0_i32_0 = arith.constant 0 : i32
    %c0_i32_1 = arith.constant 0 : i32
    return %c0_i32, %c0_i32_0 : i32, i32
  }
  func.func @transform_17(%arg0: i32) -> (i32, i32) {
    %c0_i32 = arith.constant 0 : i32
    %c0_i32_0 = arith.constant 0 : i32
    %c0_i32_1 = arith.constant 0 : i32
    return %c0_i32, %c0_i32_0 : i32, i32
  }
  func.func @transform_18(%arg0: i32) -> (i32, i32) {
    %c0_i32 = arith.constant 0 : i32
    %c0_i32_0 = arith.constant 0 : i32
    %c0_i32_1 = arith.constant 0 : i32
    return %c0_i32, %c0_i32_0 : i32, i32
  }
  func.func @transform_19(%arg0: i32) -> (i32, i32) {
    %c0_i32 = arith.constant 0 : i32
    %c0_i32_0 = arith.constant 0 : i32
    %c0_i32_1 = arith.constant 0 : i32
    return %c0_i32, %c0_i32_0 : i32, i32
  }
  func.func @transform_20(%arg0: i32) -> (i32, i32) {
    %c0_i32 = arith.constant 0 : i32
    %c0_i32_0 = arith.constant 0 : i32
    %c0_i32_1 = arith.constant 0 : i32
    return %c0_i32, %c0_i32_0 : i32, i32
  }
  func.func @transform_21(%arg0: i32) -> (i32, i32, i32) {
    %c0_i32 = arith.constant 0 : i32
    %c0_i32_0 = arith.constant 0 : i32
    %c0_i32_1 = arith.constant 0 : i32
    return %arg0, %c0_i32, %c0_i32_0 : i32, i32, i32
  }
}

</mosaic_0001>

<llo_original>
// kernel: tpu_custom_call.1
$region0: #{tpu_custom_call.1}
  #allocation0 [shape = 'u32[]', space=smem, size = 0x4, offset = 0x4, fixed_abs, tag = 'smem constant byte address 0x4 - core index']
  #allocation1 [shape = 'u32[144,128]{1,0:T(1,128)}', space=vmem, size = 0x12000, scoped, tag = 'internal scratch']
  %s0 = inlined_call_operand.hbm [shape: f32[8,16,32], index: 0, kind: input, shape index: {}]
  %s1 = inlined_call_operand.vmem [shape: bf16[32,32], index: 1, kind: input, shape index: {}]
  %s2 = inlined_call_operand.vmem [shape: bf16[32,32], index: 2, kind: input, shape index: {}]
  %s3 = inlined_call_operand.vmem [shape: bf16[32,32], index: 3, kind: input, shape index: {}]
  %s4 = inlined_call_operand.vmem [shape: f32[1,32], index: 4, kind: input, shape index: {}]
  %s5 = inlined_call_operand.vmem [shape: f32[1,32], index: 5, kind: input, shape index: {}]
  %s6 = inlined_call_operand.vmem [shape: f32[1,32], index: 6, kind: input, shape index: {}]
  %s7 = inlined_call_operand.hbm [shape: bf16[4,8,32], index: 7, kind: input, shape index: {}]
  %s8 = inlined_call_operand.vmem [shape: f32[1,32], index: 8, kind: input, shape index: {}]
  %s9 = inlined_call_operand.vmem [shape: f32[1,32], index: 9, kind: input, shape index: {}]
  %s10 = inlined_call_operand.vmem [shape: f32[1,32], index: 10, kind: input, shape index: {}]
  %s11 = inlined_call_operand.vmem [shape: f32[1,32], index: 11, kind: input, shape index: {}]
  %s12 = inlined_call_operand.vmem [shape: f32[1,32], index: 12, kind: input, shape index: {}]
  %s13 = inlined_call_operand.hbm [shape: bf16[32,64], index: 13, kind: input, shape index: {}]
  %s14 = inlined_call_operand.vmem [shape: f32[1,64], index: 14, kind: input, shape index: {}]
  %s15 = inlined_call_operand.vmem [shape: bf16[64,32], index: 15, kind: input, shape index: {}]
  %s16 = inlined_call_operand.vmem [shape: f32[1,32], index: 16, kind: input, shape index: {}]
  %s17 = inlined_call_operand.vmem [shape: f32[1,32], index: 17, kind: input, shape index: {}]
  %s18 = inlined_call_operand.vmem [shape: f32[1,32], index: 18, kind: input, shape index: {}]
  %s19 = inlined_call_operand.vmem [shape: f32[1,32], index: 19, kind: input, shape index: {}]
  %s20 = inlined_call_operand.vmem [shape: f32[1,32], index: 20, kind: input, shape index: {}]
  %s21 = inlined_call_operand.hbm [shape: f32[8,16,32], index: 21, kind: output, shape index: {}]
  %s22 = sld [smem:[#allocation0]]
  $region106: #{tpu_custom_call.1} parent=0
    _
  %s24 = ssub.s32 1, %s22
  %s25 = scalar_select 0, %s24, %s22
  $region1: #{tpu_custom_call.1} parent=0
    #allocation2 [shape = 'u8[65536]{0}', space=vmem, size = 0x10000, scoped, tag = 'input window, operand 0, single buffered']
    #allocation3 [shape = 's32[1]{0}', space=sflag, size = 0x4, scoped, tag = 'scoped memory for tpu_custom_call.1']
    #allocation4 [shape = 's32[1]{0}', space=sflag, size = 0x4, scoped, tag = 'scoped memory for tpu_custom_call.1']
    #allocation5 [shape = 'u8[8192]{0}', space=vmem, size = 0x2000, scoped, tag = 'input window, operand 7, single buffered']
    #allocation6 [shape = 's32[1]{0}', space=sflag, size = 0x4, scoped, tag = 'scoped memory for tpu_custom_call.1']
    #allocation7 [shape = 'u8[8192]{0}', space=vmem, size = 0x2000, scoped, tag = 'input window, operand 13, single buffered']
    #allocation8 [shape = 'u8[65536]{0}', space=vmem, size = 0x10000, scoped, tag = 'output window, operand 0, single buffered']
    %26 = vsyncpa [#allocation3], 0
    %27 = vsyncpa [#allocation6], 0
    %28 = vsyncpa [#allocation4], 0
    // Predicated region
    $region2: #{tpu_custom_call.1} parent=1 // pred_check
      _
    $region3: #{tpu_custom_call.1} parent=1 // pred_check_branch
      %30 = sbr.rel (0) target = $region5
    $region4: #{tpu_custom_call.1} parent=1 // pred_region
      %s32 = ssub.s32 2048, 2048
      %33 = vsyncadd [#allocation3], %s32
      %s34 = sshll.u32 [#allocation2], 4
      %s35 = int_to_ptr.vmem [resolvable:$true] %s34
      %40 = dma.hbm_to_vmem [thread:$0]  %s0, 2048, %s35, [#allocation3], 128, 128, 8
    $region5: #{tpu_custom_call.1} parent=1 // pred_fallthru
      _
    // Predicated region
    $region6: #{tpu_custom_call.1} parent=1 // pred_check
      _
    $region7: #{tpu_custom_call.1} parent=1 // pred_check_branch
      %42 = sbr.rel (0) target = $region9
    $region8: #{tpu_custom_call.1} parent=1 // pred_region
      _
    $region9: #{tpu_custom_call.1} parent=1 // pred_fallthru
      _
    // Predicated region
    $region10: #{tpu_custom_call.1} parent=1 // pred_check
      _
    $region11: #{tpu_custom_call.1} parent=1 // pred_check_branch
      %44 = sbr.rel (0) target = $region13
    $region12: #{tpu_custom_call.1} parent=1 // pred_region
      _
    $region13: #{tpu_custom_call.1} parent=1 // pred_fallthru
      _
    // Predicated region
    $region14: #{tpu_custom_call.1} parent=1 // pred_check
      _
    $region15: #{tpu_custom_call.1} parent=1 // pred_check_branch
      %46 = sbr.rel (0) target = $region17
    $region16: #{tpu_custom_call.1} parent=1 // pred_region
      _
    $region17: #{tpu_custom_call.1} parent=1 // pred_fallthru
      _
    // Predicated region
    $region18: #{tpu_custom_call.1} parent=1 // pred_check
      _
    $region19: #{tpu_custom_call.1} parent=1 // pred_check_branch
      %48 = sbr.rel (0) target = $region21
    $region20: #{tpu_custom_call.1} parent=1 // pred_region
      _
    $region21: #{tpu_custom_call.1} parent=1 // pred_fallthru
      _
    // Predicated region
    $region22: #{tpu_custom_call.1} parent=1 // pred_check
      _
    $region23: #{tpu_custom_call.1} parent=1 // pred_check_branch
      %50 = sbr.rel (0) target = $region25
    $region24: #{tpu_custom_call.1} parent=1 // pred_region
      _
    $region25: #{tpu_custom_call.1} parent=1 // pred_fallthru
      _
    // Predicated region
    $region26: #{tpu_custom_call.1} parent=1 // pred_check
      _
    $region27: #{tpu_custom_call.1} parent=1 // pred_check_branch
      %52 = sbr.rel (0) target = $region29
    $region28: #{tpu_custom_call.1} parent=1 // pred_region
      _
    $region29: #{tpu_custom_call.1} parent=1 // pred_fallthru
      _
    // Predicated region
    $region30: #{tpu_custom_call.1} parent=1 // pred_check
      _
    $region31: #{tpu_custom_call.1} parent=1 // pred_check_branch
      %54 = sbr.rel (0) target = $region33
    $region32: #{tpu_custom_call.1} parent=1 // pred_region
      %s56 = ssub.s32 256, 256
      %57 = vsyncadd [#allocation6], %s56
      %s58 = sshll.u32 [#allocation5], 4
      %s59 = int_to_ptr.vmem [resolvable:$true] %s58
      %64 = dma.hbm_to_vmem [thread:$0]  %s7, 256, %s59, [#allocation6], 64, 64, 4
    $region33: #{tpu_custom_call.1} parent=1 // pred_fallthru
      _
    // Predicated region
    $region34: #{tpu_custom_call.1} parent=1 // pred_check
      _
    $region35: #{tpu_custom_call.1} parent=1 // pred_check_branch
      %66 = sbr.rel (0) target = $region37
    $region36: #{tpu_custom_call.1} parent=1 // pred_region
      _
    $region37: #{tpu_custom_call.1} parent=1 // pred_fallthru
      _
    // Predicated region
    $region38: #{tpu_custom_call.1} parent=1 // pred_check
      _
    $region39: #{tpu_custom_call.1} parent=1 // pred_check_branch
      %68 = sbr.rel (0) target = $region41
    $region40: #{tpu_custom_call.1} parent=1 // pred_region
      _
    $region41: #{tpu_custom_call.1} parent=1 // pred_fallthru
      _
    // Predicated region
    $region42: #{tpu_custom_call.1} parent=1 // pred_check
      _
    $region43: #{tpu_custom_call.1} parent=1 // pred_check_branch
      %70 = sbr.rel (0) target = $region45
    $region44: #{tpu_custom_call.1} parent=1 // pred_region
      _
    $region45: #{tpu_custom_call.1} parent=1 // pred_fallthru
      _
    // Predicated region
    $region46: #{tpu_custom_call.1} parent=1 // pred_check
      _
    $region47: #{tpu_custom_call.1} parent=1 // pred_check_branch
      %72 = sbr.rel (0) target = $region49
    $region48: #{tpu_custom_call.1} parent=1 // pred_region
      _
    $region49: #{tpu_custom_call.1} parent=1 // pred_fallthru
      _
    // Predicated region
    $region50: #{tpu_custom_call.1} parent=1 // pred_check
      _
    $region51: #{tpu_custom_call.1} parent=1 // pred_check_branch
      %74 = sbr.rel (0) target = $region53
    $region52: #{tpu_custom_call.1} parent=1 // pred_region
      _
    $region53: #{tpu_custom_call.1} parent=1 // pred_fallthru
      _
    // Predicated region
    $region54: #{tpu_custom_call.1} parent=1 // pred_check
      _
    $region55: #{tpu_custom_call.1} parent=1 // pred_check_branch
      %76 = sbr.rel (0) target = $region57
    $region56: #{tpu_custom_call.1} parent=1 // pred_region
      %s78 = ssub.s32 256, 256
      %79 = vsyncadd [#allocation6], %s78
      %s80 = sshll.u32 [#allocation7], 4
      %s81 = int_to_ptr.vmem [resolvable:$true] %s80
      %86 = dma.hbm_to_vmem [thread:$0]  %s13, 256, %s81, [#allocation6], 64, 64, 4
    $region57: #{tpu_custom_call.1} parent=1 // pred_fallthru
      _
    // Predicated region
    $region58: #{tpu_custom_call.1} parent=1 // pred_check
      _
    $region59: #{tpu_custom_call.1} parent=1 // pred_check_branch
      %88 = sbr.rel (0) target = $region61
    $region60: #{tpu_custom_call.1} parent=1 // pred_region
      _
    $region61: #{tpu_custom_call.1} parent=1 // pred_fallthru
      _
    // Predicated region
    $region62: #{tpu_custom_call.1} parent=1 // pred_check
      _
    $region63: #{tpu_custom_call.1} parent=1 // pred_check_branch
      %90 = sbr.rel (0) target = $region65
    $region64: #{tpu_custom_call.1} parent=1 // pred_region
      _
    $region65: #{tpu_custom_call.1} parent=1 // pred_fallthru
      _
    // Predicated region
    $region66: #{tpu_custom_call.1} parent=1 // pred_check
      _
    $region67: #{tpu_custom_call.1} parent=1 // pred_check_branch
      %92 = sbr.rel (0) target = $region69
    $region68: #{tpu_custom_call.1} parent=1 // pred_region
      _
    $region69: #{tpu_custom_call.1} parent=1 // pred_fallthru
      _
    // Predicated region
    $region70: #{tpu_custom_call.1} parent=1 // pred_check
      _
    $region71: #{tpu_custom_call.1} parent=1 // pred_check_branch
      %94 = sbr.rel (0) target = $region73
    $region72: #{tpu_custom_call.1} parent=1 // pred_region
      _
    $region73: #{tpu_custom_call.1} parent=1 // pred_fallthru
      _
    // Predicated region
    $region74: #{tpu_custom_call.1} parent=1 // pred_check
      _
    $region75: #{tpu_custom_call.1} parent=1 // pred_check_branch
      %96 = sbr.rel (0) target = $region77
    $region76: #{tpu_custom_call.1} parent=1 // pred_region
      _
    $region77: #{tpu_custom_call.1} parent=1 // pred_fallthru
      _
    // Predicated region
    $region78: #{tpu_custom_call.1} parent=1 // pred_check
      _
    $region79: #{tpu_custom_call.1} parent=1 // pred_check_branch
      %98 = sbr.rel (0) target = $region81
    $region80: #{tpu_custom_call.1} parent=1 // pred_region
      _
    $region81: #{tpu_custom_call.1} parent=1 // pred_fallthru
      _
    // Predicated region
    $region82: #{tpu_custom_call.1} parent=1 // pred_check
      _
    $region83: #{tpu_custom_call.1} parent=1 // pred_check_branch
      %100 = sbr.rel (0) target = $region85
    $region84: #{tpu_custom_call.1} parent=1 // pred_region
      _
    $region85: #{tpu_custom_call.1} parent=1 // pred_fallthru
      _
    // Predicated region
    $region86: #{tpu_custom_call.1} parent=1 // pred_check
      _
    $region87: #{tpu_custom_call.1} parent=1 // pred_check_branch
      %102 = sbr.rel (0) target = $region89
    $region88: #{tpu_custom_call.1} parent=1 // pred_region
      %103 = dma.done [#allocation3], 2048
    $region89: #{tpu_custom_call.1} parent=1 // pred_fallthru
      _
    // Predicated region
    $region90: #{tpu_custom_call.1} parent=1 // pred_check
      _
    $region91: #{tpu_custom_call.1} parent=1 // pred_check_branch
      %105 = sbr.rel (0) target = $region93
    $region92: #{tpu_custom_call.1} parent=1 // pred_region
      %106 = dma.done [#allocation6], 256
    $region93: #{tpu_custom_call.1} parent=1 // pred_fallthru
      _
    // Predicated region
    $region94: #{tpu_custom_call.1} parent=1 // pred_check
      _
    $region95: #{tpu_custom_call.1} parent=1 // pred_check_branch
      %108 = sbr.rel (0) target = $region97
    $region96: #{tpu_custom_call.1} parent=1 // pred_region
      %109 = dma.done [#allocation6], 256
    $region97: #{tpu_custom_call.1} parent=1 // pred_fallthru
      _
    %v111 = vld [vmem:[#allocation2] sm:$0xff]
    %v112 = vld [vmem:[#allocation2 + $0x8] sm:$0xff]
    %v113 = vld [vmem:[#allocation2 + $0x10] sm:$0xff]
    %v114 = vld [vmem:[#allocation2 + $0x18] sm:$0xff]
    %v115 = vld [vmem:[#allocation2 + $0x20] sm:$0xff]
    %v116 = vld [vmem:[#allocation2 + $0x28] sm:$0xff]
    %v117 = vld [vmem:[#allocation2 + $0x30] sm:$0xff]
    %v118 = vld [vmem:[#allocation2 + $0x38] sm:$0xff]
    %v119 = vld [vmem:[#allocation2 + $0x40] sm:$0xff]
    %v120 = vld [vmem:[#allocation2 + $0x48] sm:$0xff]
    %v121 = vld [vmem:[#allocation2 + $0x50] sm:$0xff]
    %v122 = vld [vmem:[#allocation2 + $0x58] sm:$0xff]
    %v123 = vld [vmem:[#allocation2 + $0x60] sm:$0xff]
    %v124 = vld [vmem:[#allocation2 + $0x68] sm:$0xff]
    %v125 = vld [vmem:[#allocation2 + $0x70] sm:$0xff]
    %v126 = vld [vmem:[#allocation2 + $0x78] sm:$0xff]
    %v127 = vpack.c.bf16 %v112, %v111
    %v128 = vpack.c.bf16 %v114, %v113
    %v129 = vpack.c.bf16 %v116, %v115
    %v130 = vpack.c.bf16 %v118, %v117
    %v131 = vpack.c.bf16 %v120, %v119
    %v132 = vpack.c.bf16 %v122, %v121
    %v133 = vpack.c.bf16 %v124, %v123
    %v134 = vpack.c.bf16 %v126, %v125
    %v135 = vld [vmem:[%s1] sm:$0xf]
    %v136 = vld [vmem:[%s1 + $0x4] sm:$0xf]
    %v137 = vld [vmem:[%s1 + $0x8] sm:$0xf]
    %v138 = vld [vmem:[%s1 + $0xc] sm:$0xf]
    %v139 = vld [vmem:[%s4] sm:$0x1]
    %v141 = vlaneseq
    %v142 = vshrl.u32 %v141, 7
    %v143 = vsub.s32 0, %v142
    %v144 = vrot.slane %v139, %v143
    %v150 = vunpack.c.l.b16 %v135
    %v151 = vunpack.c.l.b16 %v136
    %v152 = vunpack.c.l.b16 %v137
    %v153 = vunpack.c.l.b16 %v138
    %v154 = vpack.c.b16 %v151, %v150
    %v155 = vpack.c.b16 %v153, %v152
    %vm158 = vcmask 261120
    %v160 = vsel %vm158, %v127, 0
    %v163 = vsel %vm158, %v128, 0
    %v166 = vsel %vm158, %v129, 0
    %v169 = vsel %vm158, %v130, 0
    %v172 = vsel %vm158, %v131, 0
    %v175 = vsel %vm158, %v132, 0
    %v178 = vsel %vm158, %v133, 0
    %v181 = vsel %vm158, %v134, 0
    %183 = vmatprep.subr.bf16.mxu0 0
    %184 = vmatpush1.bf16.msra.mxu0 0
    %185 = vmatprep.subr.bf16.mxu0 0
    %186 = vmatpush1.bf16.msra.mxu0 0
    %187 = vmatprep.subr.bf16.mxu0 0
    %188 = vmatpush1.bf16.msra.mxu0 0
    %189 = vmatprep.subr.bf16.mxu0 0
    %190 = vmatpush1.bf16.msra.mxu0 0
    %191 = vmatprep.subr.bf16.mxu0 0
    %192 = vmatpush1.bf16.msra.mxu0 0
    %193 = vmatprep.subr.bf16.mxu0 0
    %194 = vmatpush1.bf16.msra.mxu0 0
    %195 = vmatprep.subr.bf16.mxu0 0
    %196 = vmatpush1.bf16.msra.mxu0 %v155
    %197 = vmatprep.subr.bf16.mxu0 0
    %198 = vmatpush1.bf16.msra.mxu0 %v154
    %199 = vmatprep.subr.bf16.mxu0 0
    %200 = vmatpush2.bf16.msra.mxu0 0
    %201 = vmatprep.subr.bf16.mxu0 0
    %202 = vmatpush2.bf16.msra.mxu0 0
    %203 = vmatprep.subr.bf16.mxu0 0
    %204 = vmatpush2.bf16.msra.mxu0 0
    %205 = vmatprep.subr.bf16.mxu0 0
    %206 = vmatpush2.bf16.msra.mxu0 0
    %207 = vmatprep.subr.bf16.mxu0 0
    %208 = vmatpush2.bf16.msra.mxu0 0
    %209 = vmatprep.subr.bf16.mxu0 0
    %210 = vmatpush2.bf16.msra.mxu0 0
    %211 = vmatprep.subr.bf16.mxu0 0
    %212 = vmatpush2.bf16.msra.mxu0 0
    %213 = vmatprep.subr.bf16.mxu0 0
    %214 = vmatpush2.bf16.msra.mxu0 0
    %215 = vmatprep.mubr.bf16.mxu0 0
    %216 = vmatmul.mubr.bf16.gmra.mxu0 %v160
    %v217 = vpop.f32.mrf.mxu0
    %v218 = vadd.f32 %v144, %v217
    %v219 = vpop.f32.mrf.mxu0
    %v220 = vpop.f32.mrf.mxu0
    %v221 = vadd.f32 %v144, %v220
    %v222 = vpop.f32.mrf.mxu0
    %223 = vmatprep.mubr.bf16.mxu0 0
    %224 = vmatmul.mubr.bf16.gmra.mxu0 %v163
    %v225 = vpop.f32.mrf.mxu0
    %v226 = vadd.f32 %v144, %v225
    %v227 = vpop.f32.mrf.mxu0
    %v228 = vpop.f32.mrf.mxu0
    %v229 = vadd.f32 %v144, %v228
    %v230 = vpop.f32.mrf.mxu0
    %231 = vmatprep.mubr.bf16.mxu0 0
    %232 = vmatmul.mubr.bf16.gmra.mxu0 %v166
    %v233 = vpop.f32.mrf.mxu0
    %v234 = vadd.f32 %v144, %v233
    %v235 = vpop.f32.mrf.mxu0
    %v236 = vpop.f32.mrf.mxu0
    %v237 = vadd.f32 %v144, %v236
    %v238 = vpop.f32.mrf.mxu0
    %239 = vmatprep.mubr.bf16.mxu0 0
    %240 = vmatmul.mubr.bf16.gmra.mxu0 %v169
    %v241 = vpop.f32.mrf.mxu0
    %v242 = vadd.f32 %v144, %v241
    %v243 = vpop.f32.mrf.mxu0
    %v244 = vpop.f32.mrf.mxu0
    %v245 = vadd.f32 %v144, %v244
    %v246 = vpop.f32.mrf.mxu0
    %247 = vmatprep.mubr.bf16.mxu0 0
    %248 = vmatmul.mubr.bf16.gmra.mxu0 %v172
    %v249 = vpop.f32.mrf.mxu0
    %v250 = vadd.f32 %v144, %v249
    %v251 = vpop.f32.mrf.mxu0
    %v252 = vpop.f32.mrf.mxu0
    %v253 = vadd.f32 %v144, %v252
    %v254 = vpop.f32.mrf.mxu0
    %255 = vmatprep.mubr.bf16.mxu0 0
    %256 = vmatmul.mubr.bf16.gmra.mxu0 %v175
    %v257 = vpop.f32.mrf.mxu0
    %v258 = vadd.f32 %v144, %v257
    %v259 = vpop.f32.mrf.mxu0
    %v260 = vpop.f32.mrf.mxu0
    %v261 = vadd.f32 %v144, %v260
    %v262 = vpop.f32.mrf.mxu0
    %263 = vmatprep.mubr.bf16.mxu0 0
    %264 = vmatmul.mubr.bf16.gmra.mxu0 %v178
    %v265 = vpop.f32.mrf.mxu0
    %v266 = vadd.f32 %v144, %v265
    %v267 = vpop.f32.mrf.mxu0
    %v268 = vpop.f32.mrf.mxu0
    %v269 = vadd.f32 %v144, %v268
    %v270 = vpop.f32.mrf.mxu0
    %271 = vmatprep.mubr.bf16.mxu0 0
    %272 = vmatmul.mubr.bf16.gmra.mxu0 %v181
    %v273 = vpop.f32.mrf.mxu0
    %v274 = vadd.f32 %v144, %v273
    %v275 = vpop.f32.mrf.mxu0
    %v276 = vpop.f32.mrf.mxu0
    %v277 = vadd.f32 %v144, %v276
    %v278 = vpop.f32.mrf.mxu0
    %279 = vdwg.mxu0
    %v280 = vld [vmem:[%s2] sm:$0xf]
    %v281 = vld [vmem:[%s2 + $0x4] sm:$0xf]
    %v282 = vld [vmem:[%s2 + $0x8] sm:$0xf]
    %v283 = vld [vmem:[%s2 + $0xc] sm:$0xf]
    %v284 = vld [vmem:[%s5] sm:$0x1]
    %v286 = vlaneseq
    %v287 = vshrl.u32 %v286, 7
    %v288 = vsub.s32 0, %v287
    %v289 = vrot.slane %v284, %v288
    %v295 = vunpack.c.l.b16 %v280
    %v296 = vunpack.c.l.b16 %v281
    %v297 = vunpack.c.l.b16 %v282
    %v298 = vunpack.c.l.b16 %v283
    %v299 = vpack.c.b16 %v296, %v295
    %v300 = vpack.c.b16 %v298, %v297
    %303 = vmatprep.subr.bf16.mxu0 0
    %304 = vmatpush1.bf16.msra.mxu0 0
    %305 = vmatprep.subr.bf16.mxu0 0
    %306 = vmatpush1.bf16.msra.mxu0 0
    %307 = vmatprep.subr.bf16.mxu0 0
    %308 = vmatpush1.bf16.msra.mxu0 0
    %309 = vmatprep.subr.bf16.mxu0 0
    %310 = vmatpush1.bf16.msra.mxu0 0
    %311 = vmatprep.subr.bf16.mxu0 0
    %312 = vmatpush1.bf16.msra.mxu0 0
    %313 = vmatprep.subr.bf16.mxu0 0
    %314 = vmatpush1.bf16.msra.mxu0 0
    %315 = vmatprep.subr.bf16.mxu0 0
    %316 = vmatpush1.bf16.msra.mxu0 %v300
    %317 = vmatprep.subr.bf16.mxu0 0
    %318 = vmatpush1.bf16.msra.mxu0 %v299
    %319 = vmatprep.subr.bf16.mxu0 0
    %320 = vmatpush2.bf16.msra.mxu0 0
    %321 = vmatprep.subr.bf16.mxu0 0
    %322 = vmatpush2.bf16.msra.mxu0 0
    %323 = vmatprep.subr.bf16.mxu0 0
    %324 = vmatpush2.bf16.msra.mxu0 0
    %325 = vmatprep.subr.bf16.mxu0 0
    %326 = vmatpush2.bf16.msra.mxu0 0
    %327 = vmatprep.subr.bf16.mxu0 0
    %328 = vmatpush2.bf16.msra.mxu0 0
    %329 = vmatprep.subr.bf16.mxu0 0
    %330 = vmatpush2.bf16.msra.mxu0 0
    %331 = vmatprep.subr.bf16.mxu0 0
    %332 = vmatpush2.bf16.msra.mxu0 0
    %333 = vmatprep.subr.bf16.mxu0 0
    %334 = vmatpush2.bf16.msra.mxu0 0
    %335 = vmatprep.mubr.bf16.mxu0 0
    %336 = vmatmul.mubr.bf16.gmra.mxu0 %v160
    %v337 = vpop.f32.mrf.mxu0
    %v338 = vadd.f32 %v289, %v337
    %v339 = vpop.f32.mrf.mxu0
    %v340 = vpop.f32.mrf.mxu0
    %v341 = vadd.f32 %v289, %v340
    %v342 = vpop.f32.mrf.mxu0
    %343 = vmatprep.mubr.bf16.mxu0 0
    %344 = vmatmul.mubr.bf16.gmra.mxu0 %v163
    %v345 = vpop.f32.mrf.mxu0
    %v346 = vadd.f32 %v289, %v345
    %v347 = vpop.f32.mrf.mxu0
    %v348 = vpop.f32.mrf.mxu0
    %v349 = vadd.f32 %v289, %v348
    %v350 = vpop.f32.mrf.mxu0
    %351 = vmatprep.mubr.bf16.mxu0 0
    %352 = vmatmul.mubr.bf16.gmra.mxu0 %v166
    %v353 = vpop.f32.mrf.mxu0
    %v354 = vadd.f32 %v289, %v353
    %v355 = vpop.f32.mrf.mxu0
    %v356 = vpop.f32.mrf.mxu0
    %v357 = vadd.f32 %v289, %v356
    %v358 = vpop.f32.mrf.mxu0
    %359 = vmatprep.mubr.bf16.mxu0 0
    %360 = vmatmul.mubr.bf16.gmra.mxu0 %v169
    %v361 = vpop.f32.mrf.mxu0
    %v362 = vadd.f32 %v289, %v361
    %v363 = vpop.f32.mrf.mxu0
    %v364 = vpop.f32.mrf.mxu0
    %v365 = vadd.f32 %v289, %v364
    %v366 = vpop.f32.mrf.mxu0
    %367 = vmatprep.mubr.bf16.mxu0 0
    %368 = vmatmul.mubr.bf16.gmra.mxu0 %v172
    %v369 = vpop.f32.mrf.mxu0
    %v370 = vadd.f32 %v289, %v369
    %v371 = vpop.f32.mrf.mxu0
    %v372 = vpop.f32.mrf.mxu0
    %v373 = vadd.f32 %v289, %v372
    %v374 = vpop.f32.mrf.mxu0
    %375 = vmatprep.mubr.bf16.mxu0 0
    %376 = vmatmul.mubr.bf16.gmra.mxu0 %v175
    %v377 = vpop.f32.mrf.mxu0
    %v378 = vadd.f32 %v289, %v377
    %v379 = vpop.f32.mrf.mxu0
    %v380 = vpop.f32.mrf.mxu0
    %v381 = vadd.f32 %v289, %v380
    %v382 = vpop.f32.mrf.mxu0
    %383 = vmatprep.mubr.bf16.mxu0 0
    %384 = vmatmul.mubr.bf16.gmra.mxu0 %v178
    %v385 = vpop.f32.mrf.mxu0
    %v386 = vadd.f32 %v289, %v385
    %v387 = vpop.f32.mrf.mxu0
    %v388 = vpop.f32.mrf.mxu0
    %v389 = vadd.f32 %v289, %v388
    %v390 = vpop.f32.mrf.mxu0
    %391 = vmatprep.mubr.bf16.mxu0 0
    %392 = vmatmul.mubr.bf16.gmra.mxu0 %v181
    %v393 = vpop.f32.mrf.mxu0
    %v394 = vadd.f32 %v289, %v393
    %v395 = vpop.f32.mrf.mxu0
    %v396 = vpop.f32.mrf.mxu0
    %v397 = vadd.f32 %v289, %v396
    %v398 = vpop.f32.mrf.mxu0
    %399 = vdwg.mxu0
    %v400 = vld [vmem:[%s3] sm:$0xf]
    %v401 = vld [vmem:[%s3 + $0x4] sm:$0xf]
    %v402 = vld [vmem:[%s3 + $0x8] sm:$0xf]
    %v403 = vld [vmem:[%s3 + $0xc] sm:$0xf]
    %v404 = vld [vmem:[%s6] sm:$0x1]
    %v406 = vlaneseq
    %v407 = vshrl.u32 %v406, 7
    %v408 = vsub.s32 0, %v407
    %v409 = vrot.slane %v404, %v408
    %v415 = vunpack.c.l.b16 %v400
    %v416 = vunpack.c.l.b16 %v401
    %v417 = vunpack.c.l.b16 %v402
    %v418 = vunpack.c.l.b16 %v403
    %v419 = vpack.c.b16 %v416, %v415
    %v420 = vpack.c.b16 %v418, %v417
    %423 = vmatprep.subr.bf16.mxu0 0
    %424 = vmatpush1.bf16.msra.mxu0 0
    %425 = vmatprep.subr.bf16.mxu0 0
    %426 = vmatpush1.bf16.msra.mxu0 0
    %427 = vmatprep.subr.bf16.mxu0 0
    %428 = vmatpush1.bf16.msra.mxu0 0
    %429 = vmatprep.subr.bf16.mxu0 0
    %430 = vmatpush1.bf16.msra.mxu0 0
    %431 = vmatprep.subr.bf16.mxu0 0
    %432 = vmatpush1.bf16.msra.mxu0 0
    %433 = vmatprep.subr.bf16.mxu0 0
    %434 = vmatpush1.bf16.msra.mxu0 0
    %435 = vmatprep.subr.bf16.mxu0 0
    %436 = vmatpush1.bf16.msra.mxu0 %v420
    %437 = vmatprep.subr.bf16.mxu0 0
    %438 = vmatpush1.bf16.msra.mxu0 %v419
    %439 = vmatprep.subr.bf16.mxu0 0
    %440 = vmatpush2.bf16.msra.mxu0 0
    %441 = vmatprep.subr.bf16.mxu0 0
    %442 = vmatpush2.bf16.msra.mxu0 0
    %443 = vmatprep.subr.bf16.mxu0 0
    %444 = vmatpush2.bf16.msra.mxu0 0
    %445 = vmatprep.subr.bf16.mxu0 0
    %446 = vmatpush2.bf16.msra.mxu0 0
    %447 = vmatprep.subr.bf16.mxu0 0
    %448 = vmatpush2.bf16.msra.mxu0 0
    %449 = vmatprep.subr.bf16.mxu0 0
    %450 = vmatpush2.bf16.msra.mxu0 0
    %451 = vmatprep.subr.bf16.mxu0 0
    %452 = vmatpush2.bf16.msra.mxu0 0
    %453 = vmatprep.subr.bf16.mxu0 0
    %454 = vmatpush2.bf16.msra.mxu0 0
    %455 = vmatprep.mubr.bf16.mxu0 0
    %456 = vmatmul.mubr.bf16.gmra.mxu0 %v160
    %v457 = vpop.f32.mrf.mxu0
    %v458 = vadd.f32 %v409, %v457
    %v459 = vpop.f32.mrf.mxu0
    %v460 = vpop.f32.mrf.mxu0
    %v461 = vadd.f32 %v409, %v460
    %v462 = vpop.f32.mrf.mxu0
    %463 = vmatprep.mubr.bf16.mxu0 0
    %464 = vmatmul.mubr.bf16.gmra.mxu0 %v163
    %v465 = vpop.f32.mrf.mxu0
    %v466 = vadd.f32 %v409, %v465
    %v467 = vpop.f32.mrf.mxu0
    %v468 = vpop.f32.mrf.mxu0
    %v469 = vadd.f32 %v409, %v468
    %v470 = vpop.f32.mrf.mxu0
    %471 = vmatprep.mubr.bf16.mxu0 0
    %472 = vmatmul.mubr.bf16.gmra.mxu0 %v166
    %v473 = vpop.f32.mrf.mxu0
    %v474 = vadd.f32 %v409, %v473
    %v475 = vpop.f32.mrf.mxu0
    %v476 = vpop.f32.mrf.mxu0
    %v477 = vadd.f32 %v409, %v476
    %v478 = vpop.f32.mrf.mxu0
    %479 = vmatprep.mubr.bf16.mxu0 0
    %480 = vmatmul.mubr.bf16.gmra.mxu0 %v169
    %v481 = vpop.f32.mrf.mxu0
    %v482 = vadd.f32 %v409, %v481
    %v483 = vpop.f32.mrf.mxu0
    %v484 = vpop.f32.mrf.mxu0
    %v485 = vadd.f32 %v409, %v484
    %v486 = vpop.f32.mrf.mxu0
    %487 = vmatprep.mubr.bf16.mxu0 0
    %488 = vmatmul.mubr.bf16.gmra.mxu0 %v172
    %v489 = vpop.f32.mrf.mxu0
    %v490 = vadd.f32 %v409, %v489
    %v491 = vpop.f32.mrf.mxu0
    %v492 = vpop.f32.mrf.mxu0
    %v493 = vadd.f32 %v409, %v492
    %v494 = vpop.f32.mrf.mxu0
    %495 = vmatprep.mubr.bf16.mxu0 0
    %496 = vmatmul.mubr.bf16.gmra.mxu0 %v175
    %v497 = vpop.f32.mrf.mxu0
    %v498 = vadd.f32 %v409, %v497
    %v499 = vpop.f32.mrf.mxu0
    %v500 = vpop.f32.mrf.mxu0
    %v501 = vadd.f32 %v409, %v500
    %v502 = vpop.f32.mrf.mxu0
    %503 = vmatprep.mubr.bf16.mxu0 0
    %504 = vmatmul.mubr.bf16.gmra.mxu0 %v178
    %v505 = vpop.f32.mrf.mxu0
    %v506 = vadd.f32 %v409, %v505
    %v507 = vpop.f32.mrf.mxu0
    %v508 = vpop.f32.mrf.mxu0
    %v509 = vadd.f32 %v409, %v508
    %v510 = vpop.f32.mrf.mxu0
    %511 = vmatprep.mubr.bf16.mxu0 0
    %512 = vmatmul.mubr.bf16.gmra.mxu0 %v181
    %v513 = vpop.f32.mrf.mxu0
    %v514 = vadd.f32 %v409, %v513
    %v515 = vpop.f32.mrf.mxu0
    %v516 = vpop.f32.mrf.mxu0
    %v517 = vadd.f32 %v409, %v516
    %v518 = vpop.f32.mrf.mxu0
    %519 = vdwg.mxu0
    %v520 = vpack.c.bf16 %v221, %v218
    %v521 = vpack.c.bf16 %v229, %v226
    %v522 = vpack.c.bf16 %v237, %v234
    %v523 = vpack.c.bf16 %v245, %v242
    %v524 = vpack.c.bf16 %v253, %v250
    %v525 = vpack.c.bf16 %v261, %v258
    %v526 = vpack.c.bf16 %v269, %v266
    %v527 = vpack.c.bf16 %v277, %v274
    %v528 = vpack.c.bf16 %v341, %v338
    %v529 = vpack.c.bf16 %v349, %v346
    %v530 = vpack.c.bf16 %v357, %v354
    %v531 = vpack.c.bf16 %v365, %v362
    %v532 = vpack.c.bf16 %v373, %v370
    %v533 = vpack.c.bf16 %v381, %v378
    %v534 = vpack.c.bf16 %v389, %v386
    %v535 = vpack.c.bf16 %v397, %v394
    %v536 = vpack.c.bf16 %v461, %v458
    %v537 = vpack.c.bf16 %v469, %v466
    %v538 = vpack.c.bf16 %v477, %v474
    %v539 = vpack.c.bf16 %v485, %v482
    %v540 = vpack.c.bf16 %v493, %v490
    %v541 = vpack.c.bf16 %v501, %v498
    %v542 = vpack.c.bf16 %v509, %v506
    %v543 = vpack.c.bf16 %v517, %v514
    %vm544 = vcmask 64512
    %v546 = vsel %vm544, %v520, 0
    %v549 = vsel %vm544, %v528, 0
    %551 = vmatprep.subr.bf16.mxu0 0
    %552 = vmatpush1.bf16.xpose.msra.mxu0 0
    %553 = vmatprep.subr.bf16.mxu0 0
    %554 = vmatpush1.bf16.xpose.msra.mxu0 0
    %555 = vmatprep.subr.bf16.mxu0 0
    %556 = vmatpush1.bf16.xpose.msra.mxu0 0
    %557 = vmatprep.subr.bf16.mxu0 0
    %558 = vmatpush1.bf16.xpose.msra.mxu0 0
    %559 = vmatprep.subr.bf16.mxu0 0
    %560 = vmatpush1.bf16.xpose.msra.mxu0 0
    %561 = vmatprep.subr.bf16.mxu0 0
    %562 = vmatpush1.bf16.xpose.msra.mxu0 0
    %563 = vmatprep.subr.bf16.mxu0 0
    %564 = vmatpush1.bf16.xpose.msra.mxu0 0
    %565 = vmatprep.subr.bf16.mxu0 0
    %566 = vmatpush1.bf16.xpose.msra.mxu0 %v549
    %567 = vmatprep.subr.bf16.mxu0 0
    %568 = vmatpush2.bf16.xpose.msra.mxu0 0
    %569 = vmatprep.subr.bf16.mxu0 0
    %570 = vmatpush2.bf16.xpose.msra.mxu0 0
    %571 = vmatprep.subr.bf16.mxu0 0
    %572 = vmatpush2.bf16.xpose.msra.mxu0 0
    %573 = vmatprep.subr.bf16.mxu0 0
    %574 = vmatpush2.bf16.xpose.msra.mxu0 0
    %575 = vmatprep.subr.bf16.mxu0 0
    %576 = vmatpush2.bf16.xpose.msra.mxu0 0
    %577 = vmatprep.subr.bf16.mxu0 0
    %578 = vmatpush2.bf16.xpose.msra.mxu0 0
    %579 = vmatprep.subr.bf16.mxu0 0
    %580 = vmatpush2.bf16.xpose.msra.mxu0 0
    %581 = vmatprep.subr.bf16.mxu0 0
    %582 = vmatpush2.bf16.xpose.msra.mxu0 0
    %583 = vmatprep.mubr.bf16.mxu0 0
    %584 = vmatmul.mubr.bf16.gmra.mxu0 %v546
    %v585 = vpop.f32.mrf.mxu0
    %v586 = vadd.f32 0.0, %v585
    %v587 = vpop.f32.mrf.mxu0
    %v588 = vpop.f32.mrf.mxu0
    %v589 = vadd.f32 0.0, %v588
    %v590 = vpop.f32.mrf.mxu0
    %591 = vdwg.mxu0
    %v593 = vsel %vm544, %v521, 0
    %v596 = vsel %vm544, %v529, 0
    %598 = vmatprep.subr.bf16.mxu0 0
    %599 = vmatpush1.bf16.xpose.msra.mxu0 0
    %600 = vmatprep.subr.bf16.mxu0 0
    %601 = vmatpush1.bf16.xpose.msra.mxu0 0
    %602 = vmatprep.subr.bf16.mxu0 0
    %603 = vmatpush1.bf16.xpose.msra.mxu0 0
    %604 = vmatprep.subr.bf16.mxu0 0
    %605 = vmatpush1.bf16.xpose.msra.mxu0 0
    %606 = vmatprep.subr.bf16.mxu0 0
    %607 = vmatpush1.bf16.xpose.msra.mxu0 0
    %608 = vmatprep.subr.bf16.mxu0 0
    %609 = vmatpush1.bf16.xpose.msra.mxu0 0
    %610 = vmatprep.subr.bf16.mxu0 0
    %611 = vmatpush1.bf16.xpose.msra.mxu0 0
    %612 = vmatprep.subr.bf16.mxu0 0
    %613 = vmatpush1.bf16.xpose.msra.mxu0 %v596
    %614 = vmatprep.subr.bf16.mxu0 0
    %615 = vmatpush2.bf16.xpose.msra.mxu0 0
    %616 = vmatprep.subr.bf16.mxu0 0
    %617 = vmatpush2.bf16.xpose.msra.mxu0 0
    %618 = vmatprep.subr.bf16.mxu0 0
    %619 = vmatpush2.bf16.xpose.msra.mxu0 0
    %620 = vmatprep.subr.bf16.mxu0 0
    %621 = vmatpush2.bf16.xpose.msra.mxu0 0
    %622 = vmatprep.subr.bf16.mxu0 0
    %623 = vmatpush2.bf16.xpose.msra.mxu0 0
    %624 = vmatprep.subr.bf16.mxu0 0
    %625 = vmatpush2.bf16.xpose.msra.mxu0 0
    %626 = vmatprep.subr.bf16.mxu0 0
    %627 = vmatpush2.bf16.xpose.msra.mxu0 0
    %628 = vmatprep.subr.bf16.mxu0 0
    %629 = vmatpush2.bf16.xpose.msra.mxu0 0
    %630 = vmatprep.mubr.bf16.mxu0 0
    %631 = vmatmul.mubr.bf16.gmra.mxu0 %v593
    %v632 = vpop.f32.mrf.mxu0
    %v633 = vadd.f32 0.0, %v632
    %v634 = vpop.f32.mrf.mxu0
    %v635 = vpop.f32.mrf.mxu0
    %v636 = vadd.f32 0.0, %v635
    %v637 = vpop.f32.mrf.mxu0
    %638 = vdwg.mxu0
    %v640 = vsel %vm544, %v522, 0
    %v643 = vsel %vm544, %v530, 0
    %645 = vmatprep.subr.bf16.mxu0 0
    %646 = vmatpush1.bf16.xpose.msra.mxu0 0
    %647 = vmatprep.subr.bf16.mxu0 0
    %648 = vmatpush1.bf16.xpose.msra.mxu0 0
    %649 = vmatprep.subr.bf16.mxu0 0
    %650 = vmatpush1.bf16.xpose.msra.mxu0 0
    %651 = vmatprep.subr.bf16.mxu0 0
    %652 = vmatpush1.bf16.xpose.msra.mxu0 0
    %653 = vmatprep.subr.bf16.mxu0 0
    %654 = vmatpush1.bf16.xpose.msra.mxu0 0
    %655 = vmatprep.subr.bf16.mxu0 0
    %656 = vmatpush1.bf16.xpose.msra.mxu0 0
    %657 = vmatprep.subr.bf16.mxu0 0
    %658 = vmatpush1.bf16.xpose.msra.mxu0 0
    %659 = vmatprep.subr.bf16.mxu0 0
    %660 = vmatpush1.bf16.xpose.msra.mxu0 %v643
    %661 = vmatprep.subr.bf16.mxu0 0
    %662 = vmatpush2.bf16.xpose.msra.mxu0 0
    %663 = vmatprep.subr.bf16.mxu0 0
    %664 = vmatpush2.bf16.xpose.msra.mxu0 0
    %665 = vmatprep.subr.bf16.mxu0 0
    %666 = vmatpush2.bf16.xpose.msra.mxu0 0
    %667 = vmatprep.subr.bf16.mxu0 0
    %668 = vmatpush2.bf16.xpose.msra.mxu0 0
    %669 = vmatprep.subr.bf16.mxu0 0
    %670 = vmatpush2.bf16.xpose.msra.mxu0 0
    %671 = vmatprep.subr.bf16.mxu0 0
    %672 = vmatpush2.bf16.xpose.msra.mxu0 0
    %673 = vmatprep.subr.bf16.mxu0 0
    %674 = vmatpush2.bf16.xpose.msra.mxu0 0
    %675 = vmatprep.subr.bf16.mxu0 0
    %676 = vmatpush2.bf16.xpose.msra.mxu0 0
    %677 = vmatprep.mubr.bf16.mxu0 0
    %678 = vmatmul.mubr.bf16.gmra.mxu0 %v640
    %v679 = vpop.f32.mrf.mxu0
    %v680 = vadd.f32 0.0, %v679
    %v681 = vpop.f32.mrf.mxu0
    %v682 = vpop.f32.mrf.mxu0
    %v683 = vadd.f32 0.0, %v682
    %v684 = vpop.f32.mrf.mxu0
    %685 = vdwg.mxu0
    %v687 = vsel %vm544, %v523, 0
    %v690 = vsel %vm544, %v531, 0
    %692 = vmatprep.subr.bf16.mxu0 0
    %693 = vmatpush1.bf16.xpose.msra.mxu0 0
    %694 = vmatprep.subr.bf16.mxu0 0
    %695 = vmatpush1.bf16.xpose.msra.mxu0 0
    %696 = vmatprep.subr.bf16.mxu0 0
    %697 = vmatpush1.bf16.xpose.msra.mxu0 0
    %698 = vmatprep.subr.bf16.mxu0 0
    %699 = vmatpush1.bf16.xpose.msra.mxu0 0
    %700 = vmatprep.subr.bf16.mxu0 0
    %701 = vmatpush1.bf16.xpose.msra.mxu0 0
    %702 = vmatprep.subr.bf16.mxu0 0
    %703 = vmatpush1.bf16.xpose.msra.mxu0 0
    %704 = vmatprep.subr.bf16.mxu0 0
    %705 = vmatpush1.bf16.xpose.msra.mxu0 0
    %706 = vmatprep.subr.bf16.mxu0 0
    %707 = vmatpush1.bf16.xpose.msra.mxu0 %v690
    %708 = vmatprep.subr.bf16.mxu0 0
    %709 = vmatpush2.bf16.xpose.msra.mxu0 0
    %710 = vmatprep.subr.bf16.mxu0 0
    %711 = vmatpush2.bf16.xpose.msra.mxu0 0
    %712 = vmatprep.subr.bf16.mxu0 0
    %713 = vmatpush2.bf16.xpose.msra.mxu0 0
    %714 = vmatprep.subr.bf16.mxu0 0
    %715 = vmatpush2.bf16.xpose.msra.mxu0 0
    %716 = vmatprep.subr.bf16.mxu0 0
    %717 = vmatpush2.bf16.xpose.msra.mxu0 0
    %718 = vmatprep.subr.bf16.mxu0 0
    %719 = vmatpush2.bf16.xpose.msra.mxu0 0
    %720 = vmatprep.subr.bf16.mxu0 0
    %721 = vmatpush2.bf16.xpose.msra.mxu0 0
    %722 = vmatprep.subr.bf16.mxu0 0
    %723 = vmatpush2.bf16.xpose.msra.mxu0 0
    %724 = vmatprep.mubr.bf16.mxu0 0
    %725 = vmatmul.mubr.bf16.gmra.mxu0 %v687
    %v726 = vpop.f32.mrf.mxu0
    %v727 = vadd.f32 0.0, %v726
    %v728 = vpop.f32.mrf.mxu0
    %v729 = vpop.f32.mrf.mxu0
    %v730 = vadd.f32 0.0, %v729
    %v731 = vpop.f32.mrf.mxu0
    %732 = vdwg.mxu0
    %v734 = vsel %vm544, %v524, 0
    %v737 = vsel %vm544, %v532, 0
    %739 = vmatprep.subr.bf16.mxu0 0
    %740 = vmatpush1.bf16.xpose.msra.mxu0 0
    %741 = vmatprep.subr.bf16.mxu0 0
    %742 = vmatpush1.bf16.xpose.msra.mxu0 0
    %743 = vmatprep.subr.bf16.mxu0 0
    %744 = vmatpush1.bf16.xpose.msra.mxu0 0
    %745 = vmatprep.subr.bf16.mxu0 0
    %746 = vmatpush1.bf16.xpose.msra.mxu0 0
    %747 = vmatprep.subr.bf16.mxu0 0
    %748 = vmatpush1.bf16.xpose.msra.mxu0 0
    %749 = vmatprep.subr.bf16.mxu0 0
    %750 = vmatpush1.bf16.xpose.msra.mxu0 0
    %751 = vmatprep.subr.bf16.mxu0 0
    %752 = vmatpush1.bf16.xpose.msra.mxu0 0
    %753 = vmatprep.subr.bf16.mxu0 0
    %754 = vmatpush1.bf16.xpose.msra.mxu0 %v737
    %755 = vmatprep.subr.bf16.mxu0 0
    %756 = vmatpush2.bf16.xpose.msra.mxu0 0
    %757 = vmatprep.subr.bf16.mxu0 0
    %758 = vmatpush2.bf16.xpose.msra.mxu0 0
    %759 = vmatprep.subr.bf16.mxu0 0
    %760 = vmatpush2.bf16.xpose.msra.mxu0 0
    %761 = vmatprep.subr.bf16.mxu0 0
    %762 = vmatpush2.bf16.xpose.msra.mxu0 0
    %763 = vmatprep.subr.bf16.mxu0 0
    %764 = vmatpush2.bf16.xpose.msra.mxu0 0
    %765 = vmatprep.subr.bf16.mxu0 0
    %766 = vmatpush2.bf16.xpose.msra.mxu0 0
    %767 = vmatprep.subr.bf16.mxu0 0
    %768 = vmatpush2.bf16.xpose.msra.mxu0 0
    %769 = vmatprep.subr.bf16.mxu0 0
    %770 = vmatpush2.bf16.xpose.msra.mxu0 0
    %771 = vmatprep.mubr.bf16.mxu0 0
    %772 = vmatmul.mubr.bf16.gmra.mxu0 %v734
    %v773 = vpop.f32.mrf.mxu0
    %v774 = vadd.f32 0.0, %v773
    %v775 = vpop.f32.mrf.mxu0
    %v776 = vpop.f32.mrf.mxu0
    %v777 = vadd.f32 0.0, %v776
    %v778 = vpop.f32.mrf.mxu0
    %779 = vdwg.mxu0
    %v781 = vsel %vm544, %v525, 0
    %v784 = vsel %vm544, %v533, 0
    %786 = vmatprep.subr.bf16.mxu0 0
    %787 = vmatpush1.bf16.xpose.msra.mxu0 0
    %788 = vmatprep.subr.bf16.mxu0 0
    %789 = vmatpush1.bf16.xpose.msra.mxu0 0
    %790 = vmatprep.subr.bf16.mxu0 0
    %791 = vmatpush1.bf16.xpose.msra.mxu0 0
    %792 = vmatprep.subr.bf16.mxu0 0
    %793 = vmatpush1.bf16.xpose.msra.mxu0 0
    %794 = vmatprep.subr.bf16.mxu0 0
    %795 = vmatpush1.bf16.xpose.msra.mxu0 0
    %796 = vmatprep.subr.bf16.mxu0 0
    %797 = vmatpush1.bf16.xpose.msra.mxu0 0
    %798 = vmatprep.subr.bf16.mxu0 0
    %799 = vmatpush1.bf16.xpose.msra.mxu0 0
    %800 = vmatprep.subr.bf16.mxu0 0
    %801 = vmatpush1.bf16.xpose.msra.mxu0 %v784
    %802 = vmatprep.subr.bf16.mxu0 0
    %803 = vmatpush2.bf16.xpose.msra.mxu0 0
    %804 = vmatprep.subr.bf16.mxu0 0
    %805 = vmatpush2.bf16.xpose.msra.mxu0 0
    %806 = vmatprep.subr.bf16.mxu0 0
    %807 = vmatpush2.bf16.xpose.msra.mxu0 0
    %808 = vmatprep.subr.bf16.mxu0 0
    %809 = vmatpush2.bf16.xpose.msra.mxu0 0
    %810 = vmatprep.subr.bf16.mxu0 0
    %811 = vmatpush2.bf16.xpose.msra.mxu0 0
    %812 = vmatprep.subr.bf16.mxu0 0
    %813 = vmatpush2.bf16.xpose.msra.mxu0 0
    %814 = vmatprep.subr.bf16.mxu0 0
    %815 = vmatpush2.bf16.xpose.msra.mxu0 0
    %816 = vmatprep.subr.bf16.mxu0 0
    %817 = vmatpush2.bf16.xpose.msra.mxu0 0
    %818 = vmatprep.mubr.bf16.mxu0 0
    %819 = vmatmul.mubr.bf16.gmra.mxu0 %v781
    %v820 = vpop.f32.mrf.mxu0
    %v821 = vadd.f32 0.0, %v820
    %v822 = vpop.f32.mrf.mxu0
    %v823 = vpop.f32.mrf.mxu0
    %v824 = vadd.f32 0.0, %v823
    %v825 = vpop.f32.mrf.mxu0
    %826 = vdwg.mxu0
    %v828 = vsel %vm544, %v526, 0
    %v831 = vsel %vm544, %v534, 0
    %833 = vmatprep.subr.bf16.mxu0 0
    %834 = vmatpush1.bf16.xpose.msra.mxu0 0
    %835 = vmatprep.subr.bf16.mxu0 0
    %836 = vmatpush1.bf16.xpose.msra.mxu0 0
    %837 = vmatprep.subr.bf16.mxu0 0
    %838 = vmatpush1.bf16.xpose.msra.mxu0 0
    %839 = vmatprep.subr.bf16.mxu0 0
    %840 = vmatpush1.bf16.xpose.msra.mxu0 0
    %841 = vmatprep.subr.bf16.mxu0 0
    %842 = vmatpush1.bf16.xpose.msra.mxu0 0
    %843 = vmatprep.subr.bf16.mxu0 0
    %844 = vmatpush1.bf16.xpose.msra.mxu0 0
    %845 = vmatprep.subr.bf16.mxu0 0
    %846 = vmatpush1.bf16.xpose.msra.mxu0 0
    %847 = vmatprep.subr.bf16.mxu0 0
    %848 = vmatpush1.bf16.xpose.msra.mxu0 %v831
    %849 = vmatprep.subr.bf16.mxu0 0
    %850 = vmatpush2.bf16.xpose.msra.mxu0 0
    %851 = vmatprep.subr.bf16.mxu0 0
    %852 = vmatpush2.bf16.xpose.msra.mxu0 0
    %853 = vmatprep.subr.bf16.mxu0 0
    %854 = vmatpush2.bf16.xpose.msra.mxu0 0
    %855 = vmatprep.subr.bf16.mxu0 0
    %856 = vmatpush2.bf16.xpose.msra.mxu0 0
    %857 = vmatprep.subr.bf16.mxu0 0
    %858 = vmatpush2.bf16.xpose.msra.mxu0 0
    %859 = vmatprep.subr.bf16.mxu0 0
    %860 = vmatpush2.bf16.xpose.msra.mxu0 0
    %861 = vmatprep.subr.bf16.mxu0 0
    %862 = vmatpush2.bf16.xpose.msra.mxu0 0
    %863 = vmatprep.subr.bf16.mxu0 0
    %864 = vmatpush2.bf16.xpose.msra.mxu0 0
    %865 = vmatprep.mubr.bf16.mxu0 0
    %866 = vmatmul.mubr.bf16.gmra.mxu0 %v828
    %v867 = vpop.f32.mrf.mxu0
    %v868 = vadd.f32 0.0, %v867
    %v869 = vpop.f32.mrf.mxu0
    %v870 = vpop.f32.mrf.mxu0
    %v871 = vadd.f32 0.0, %v870
    %v872 = vpop.f32.mrf.mxu0
    %873 = vdwg.mxu0
    %v875 = vsel %vm544, %v527, 0
    %v878 = vsel %vm544, %v535, 0
    %880 = vmatprep.subr.bf16.mxu0 0
    %881 = vmatpush1.bf16.xpose.msra.mxu0 0
    %882 = vmatprep.subr.bf16.mxu0 0
    %883 = vmatpush1.bf16.xpose.msra.mxu0 0
    %884 = vmatprep.subr.bf16.mxu0 0
    %885 = vmatpush1.bf16.xpose.msra.mxu0 0
    %886 = vmatprep.subr.bf16.mxu0 0
    %887 = vmatpush1.bf16.xpose.msra.mxu0 0
    %888 = vmatprep.subr.bf16.mxu0 0
    %889 = vmatpush1.bf16.xpose.msra.mxu0 0
    %890 = vmatprep.subr.bf16.mxu0 0
    %891 = vmatpush1.bf16.xpose.msra.mxu0 0
    %892 = vmatprep.subr.bf16.mxu0 0
    %893 = vmatpush1.bf16.xpose.msra.mxu0 0
    %894 = vmatprep.subr.bf16.mxu0 0
    %895 = vmatpush1.bf16.xpose.msra.mxu0 %v878
    %896 = vmatprep.subr.bf16.mxu0 0
    %897 = vmatpush2.bf16.xpose.msra.mxu0 0
    %898 = vmatprep.subr.bf16.mxu0 0
    %899 = vmatpush2.bf16.xpose.msra.mxu0 0
    %900 = vmatprep.subr.bf16.mxu0 0
    %901 = vmatpush2.bf16.xpose.msra.mxu0 0
    %902 = vmatprep.subr.bf16.mxu0 0
    %903 = vmatpush2.bf16.xpose.msra.mxu0 0
    %904 = vmatprep.subr.bf16.mxu0 0
    %905 = vmatpush2.bf16.xpose.msra.mxu0 0
    %906 = vmatprep.subr.bf16.mxu0 0
    %907 = vmatpush2.bf16.xpose.msra.mxu0 0
    %908 = vmatprep.subr.bf16.mxu0 0
    %909 = vmatpush2.bf16.xpose.msra.mxu0 0
    %910 = vmatprep.subr.bf16.mxu0 0
    %911 = vmatpush2.bf16.xpose.msra.mxu0 0
    %912 = vmatprep.mubr.bf16.mxu0 0
    %913 = vmatmul.mubr.bf16.gmra.mxu0 %v875
    %v914 = vpop.f32.mrf.mxu0
    %v915 = vadd.f32 0.0, %v914
    %v916 = vpop.f32.mrf.mxu0
    %v917 = vpop.f32.mrf.mxu0
    %v918 = vadd.f32 0.0, %v917
    %v919 = vpop.f32.mrf.mxu0
    %920 = vdwg.mxu0
    %v921 = vmul.f32 %v586, 0.35355338
    %v922 = vmul.f32 %v589, 0.35355338
    %v923 = vmul.f32 %v633, 0.35355338
    %v924 = vmul.f32 %v636, 0.35355338
    %v925 = vmul.f32 %v680, 0.35355338
    %v926 = vmul.f32 %v683, 0.35355338
    %v927 = vmul.f32 %v727, 0.35355338
    %v928 = vmul.f32 %v730, 0.35355338
    %v929 = vmul.f32 %v774, 0.35355338
    %v930 = vmul.f32 %v777, 0.35355338
    %v931 = vmul.f32 %v821, 0.35355338
    %v932 = vmul.f32 %v824, 0.35355338
    %v933 = vmul.f32 %v868, 0.35355338
    %v934 = vmul.f32 %v871, 0.35355338
    %v935 = vmul.f32 %v915, 0.35355338
    %v936 = vmul.f32 %v918, 0.35355338
    %vm937 = vcmask 130048
    %v938 = vsel %vm937, %v921, -inf
    %939 = vmax.xlane.f32.xlu0 %v938
    %v940 = vpop.xlane.xlu0 %939
    %v941 = vsel %vm937, %v922, -inf
    %942 = vmax.xlane.f32.xlu0 %v941
    %v943 = vpop.xlane.xlu0 %942
    %v944 = vsel %vm937, %v923, -inf
    %945 = vmax.xlane.f32.xlu0 %v944
    %v946 = vpop.xlane.xlu0 %945
    %v947 = vsel %vm937, %v924, -inf
    %948 = vmax.xlane.f32.xlu0 %v947
    %v949 = vpop.xlane.xlu0 %948
    %v950 = vsel %vm937, %v925, -inf
    %951 = vmax.xlane.f32.xlu0 %v950
    %v952 = vpop.xlane.xlu0 %951
    %v953 = vsel %vm937, %v926, -inf
    %954 = vmax.xlane.f32.xlu0 %v953
    %v955 = vpop.xlane.xlu0 %954
    %v956 = vsel %vm937, %v927, -inf
    %957 = vmax.xlane.f32.xlu0 %v956
    %v958 = vpop.xlane.xlu0 %957
    %v959 = vsel %vm937, %v928, -inf
    %960 = vmax.xlane.f32.xlu0 %v959
    %v961 = vpop.xlane.xlu0 %960
    %v962 = vsel %vm937, %v929, -inf
    %963 = vmax.xlane.f32.xlu0 %v962
    %v964 = vpop.xlane.xlu0 %963
    %v965 = vsel %vm937, %v930, -inf
    %966 = vmax.xlane.f32.xlu0 %v965
    %v967 = vpop.xlane.xlu0 %966
    %v968 = vsel %vm937, %v931, -inf
    %969 = vmax.xlane.f32.xlu0 %v968
    %v970 = vpop.xlane.xlu0 %969
    %v971 = vsel %vm937, %v932, -inf
    %972 = vmax.xlane.f32.xlu0 %v971
    %v973 = vpop.xlane.xlu0 %972
    %v974 = vsel %vm937, %v933, -inf
    %975 = vmax.xlane.f32.xlu0 %v974
    %v976 = vpop.xlane.xlu0 %975
    %v977 = vsel %vm937, %v934, -inf
    %978 = vmax.xlane.f32.xlu0 %v977
    %v979 = vpop.xlane.xlu0 %978
    %v980 = vsel %vm937, %v935, -inf
    %981 = vmax.xlane.f32.xlu0 %v980
    %v982 = vpop.xlane.xlu0 %981
    %v983 = vsel %vm937, %v936, -inf
    %984 = vmax.xlane.f32.xlu0 %v983
    %v985 = vpop.xlane.xlu0 %984
    %v986 = vsub.f32 %v921, %v940
    %v987 = vsub.f32 %v922, %v943
    %v988 = vsub.f32 %v923, %v946
    %v989 = vsub.f32 %v924, %v949
    %v990 = vsub.f32 %v925, %v952
    %v991 = vsub.f32 %v926, %v955
    %v992 = vsub.f32 %v927, %v958
    %v993 = vsub.f32 %v928, %v961
    %v994 = vsub.f32 %v929, %v964
    %v995 = vsub.f32 %v930, %v967
    %v996 = vsub.f32 %v931, %v970
    %v997 = vsub.f32 %v932, %v973
    %v998 = vsub.f32 %v933, %v976
    %v999 = vsub.f32 %v934, %v979
    %v1000 = vsub.f32 %v935, %v982
    %v1001 = vsub.f32 %v936, %v985
    %v1002 = vmul.f32 %v986, 1.442695
    %v1003 = vpow.pop %v1002
    %v1004 = vmul.f32 %v987, 1.442695
    %v1005 = vpow.pop %v1004
    %v1006 = vmul.f32 %v988, 1.442695
    %v1007 = vpow.pop %v1006
    %v1008 = vmul.f32 %v989, 1.442695
    %v1009 = vpow.pop %v1008
    %v1010 = vmul.f32 %v990, 1.442695
    %v1011 = vpow.pop %v1010
    %v1012 = vmul.f32 %v991, 1.442695
    %v1013 = vpow.pop %v1012
    %v1014 = vmul.f32 %v992, 1.442695
    %v1015 = vpow.pop %v1014
    %v1016 = vmul.f32 %v993, 1.442695
    %v1017 = vpow.pop %v1016
    %v1018 = vmul.f32 %v994, 1.442695
    %v1019 = vpow.pop %v1018
    %v1020 = vmul.f32 %v995, 1.442695
    %v1021 = vpow.pop %v1020
    %v1022 = vmul.f32 %v996, 1.442695
    %v1023 = vpow.pop %v1022
    %v1024 = vmul.f32 %v997, 1.442695
    %v1025 = vpow.pop %v1024
    %v1026 = vmul.f32 %v998, 1.442695
    %v1027 = vpow.pop %v1026
    %v1028 = vmul.f32 %v999, 1.442695
    %v1029 = vpow.pop %v1028
    %v1030 = vmul.f32 %v1000, 1.442695
    %v1031 = vpow.pop %v1030
    %v1032 = vmul.f32 %v1001, 1.442695
    %v1033 = vpow.pop %v1032
    %v1034 = vsel %vm937, %v1003, 0.0
    %1035 = vadd.xlane.f32.xlu0 %v1034
    %v1036 = vpop.xlane.xlu0 %1035
    %v1037 = vsel %vm937, %v1005, 0.0
    %1038 = vadd.xlane.f32.xlu0 %v1037
    %v1039 = vpop.xlane.xlu0 %1038
    %v1040 = vsel %vm937, %v1007, 0.0
    %1041 = vadd.xlane.f32.xlu0 %v1040
    %v1042 = vpop.xlane.xlu0 %1041
    %v1043 = vsel %vm937, %v1009, 0.0
    %1044 = vadd.xlane.f32.xlu0 %v1043
    %v1045 = vpop.xlane.xlu0 %1044
    %v1046 = vsel %vm937, %v1011, 0.0
    %1047 = vadd.xlane.f32.xlu0 %v1046
    %v1048 = vpop.xlane.xlu0 %1047
    %v1049 = vsel %vm937, %v1013, 0.0
    %1050 = vadd.xlane.f32.xlu0 %v1049
    %v1051 = vpop.xlane.xlu0 %1050
    %v1052 = vsel %vm937, %v1015, 0.0
    %1053 = vadd.xlane.f32.xlu0 %v1052
    %v1054 = vpop.xlane.xlu0 %1053
    %v1055 = vsel %vm937, %v1017, 0.0
    %1056 = vadd.xlane.f32.xlu0 %v1055
    %v1057 = vpop.xlane.xlu0 %1056
    %v1058 = vsel %vm937, %v1019, 0.0
    %1059 = vadd.xlane.f32.xlu0 %v1058
    %v1060 = vpop.xlane.xlu0 %1059
    %v1061 = vsel %vm937, %v1021, 0.0
    %1062 = vadd.xlane.f32.xlu0 %v1061
    %v1063 = vpop.xlane.xlu0 %1062
    %v1064 = vsel %vm937, %v1023, 0.0
    %1065 = vadd.xlane.f32.xlu0 %v1064
    %v1066 = vpop.xlane.xlu0 %1065
    %v1067 = vsel %vm937, %v1025, 0.0
    %1068 = vadd.xlane.f32.xlu0 %v1067
    %v1069 = vpop.xlane.xlu0 %1068
    %v1070 = vsel %vm937, %v1027, 0.0
    %1071 = vadd.xlane.f32.xlu0 %v1070
    %v1072 = vpop.xlane.xlu0 %1071
    %v1073 = vsel %vm937, %v1029, 0.0
    %1074 = vadd.xlane.f32.xlu0 %v1073
    %v1075 = vpop.xlane.xlu0 %1074
    %v1076 = vsel %vm937, %v1031, 0.0
    %1077 = vadd.xlane.f32.xlu0 %v1076
    %v1078 = vpop.xlane.xlu0 %1077
    %v1079 = vsel %vm937, %v1033, 0.0
    %1080 = vadd.xlane.f32.xlu0 %v1079
    %v1081 = vpop.xlane.xlu0 %1080
    %v1082 = vrcp.pop %v1036
    %v1083 = vrcp.pop %v1039
    %v1084 = vrcp.pop %v1042
    %v1085 = vrcp.pop %v1045
    %v1086 = vrcp.pop %v1048
    %v1087 = vrcp.pop %v1051
    %v1088 = vrcp.pop %v1054
    %v1089 = vrcp.pop %v1057
    %v1090 = vrcp.pop %v1060
    %v1091 = vrcp.pop %v1063
    %v1092 = vrcp.pop %v1066
    %v1093 = vrcp.pop %v1069
    %v1094 = vrcp.pop %v1072
    %v1095 = vrcp.pop %v1075
    %v1096 = vrcp.pop %v1078
    %v1097 = vrcp.pop %v1081
    %v1098 = vmul.f32 %v1003, %v1082
    %v1099 = vmul.f32 %v1005, %v1083
    %v1100 = vmul.f32 %v1007, %v1084
    %v1101 = vmul.f32 %v1009, %v1085
    %v1102 = vmul.f32 %v1011, %v1086
    %v1103 = vmul.f32 %v1013, %v1087
    %v1104 = vmul.f32 %v1015, %v1088
    %v1105 = vmul.f32 %v1017, %v1089
    %v1106 = vmul.f32 %v1019, %v1090
    %v1107 = vmul.f32 %v1021, %v1091
    %v1108 = vmul.f32 %v1023, %v1092
    %v1109 = vmul.f32 %v1025, %v1093
    %v1110 = vmul.f32 %v1027, %v1094
    %v1111 = vmul.f32 %v1029, %v1095
    %v1112 = vmul.f32 %v1031, %v1096
    %v1113 = vmul.f32 %v1033, %v1097
    %v1114 = vpack.c.bf16 %v1099, %v1098
    %v1115 = vpack.c.bf16 %v1101, %v1100
    %v1116 = vpack.c.bf16 %v1103, %v1102
    %v1117 = vpack.c.bf16 %v1105, %v1104
    %v1118 = vpack.c.bf16 %v1107, %v1106
    %v1119 = vpack.c.bf16 %v1109, %v1108
    %v1120 = vpack.c.bf16 %v1111, %v1110
    %v1121 = vpack.c.bf16 %v1113, %v1112
    %v1123 = vsel %vm937, %v1114, 0
    %1125 = vmatprep.subr.bf16.mxu0 0
    %1126 = vmatpush1.bf16.msra.mxu0 0
    %1127 = vmatprep.subr.bf16.mxu0 0
    %1128 = vmatpush1.bf16.msra.mxu0 0
    %1129 = vmatprep.subr.bf16.mxu0 0
    %1130 = vmatpush1.bf16.msra.mxu0 0
    %1131 = vmatprep.subr.bf16.mxu0 0
    %1132 = vmatpush1.bf16.msra.mxu0 0
    %1133 = vmatprep.subr.bf16.mxu0 0
    %1134 = vmatpush1.bf16.msra.mxu0 0
    %1135 = vmatprep.subr.bf16.mxu0 0
    %1136 = vmatpush1.bf16.msra.mxu0 0
    %1137 = vmatprep.subr.bf16.mxu0 0
    %1138 = vmatpush1.bf16.msra.mxu0 0
    %1139 = vmatprep.subr.bf16.mxu0 0
    %1140 = vmatpush1.bf16.msra.mxu0 %v536
    %1141 = vmatprep.subr.bf16.mxu0 0
    %1142 = vmatpush2.bf16.msra.mxu0 0
    %1143 = vmatprep.subr.bf16.mxu0 0
    %1144 = vmatpush2.bf16.msra.mxu0 0
    %1145 = vmatprep.subr.bf16.mxu0 0
    %1146 = vmatpush2.bf16.msra.mxu0 0
    %1147 = vmatprep.subr.bf16.mxu0 0
    %1148 = vmatpush2.bf16.msra.mxu0 0
    %1149 = vmatprep.subr.bf16.mxu0 0
    %1150 = vmatpush2.bf16.msra.mxu0 0
    %1151 = vmatprep.subr.bf16.mxu0 0
    %1152 = vmatpush2.bf16.msra.mxu0 0
    %1153 = vmatprep.subr.bf16.mxu0 0
    %1154 = vmatpush2.bf16.msra.mxu0 0
    %1155 = vmatprep.subr.bf16.mxu0 0
    %1156 = vmatpush2.bf16.msra.mxu0 0
    %1157 = vmatprep.mubr.bf16.mxu0 0
    %1158 = vmatmul.mubr.bf16.gmra.mxu0 %v1123
    %v1159 = vpop.f32.mrf.mxu0
    %v1160 = vadd.f32 0.0, %v1159
    %v1161 = vpop.f32.mrf.mxu0
    %v1162 = vpop.f32.mrf.mxu0
    %v1163 = vadd.f32 0.0, %v1162
    %v1164 = vpop.f32.mrf.mxu0
    %1165 = vdwg.mxu0
    %v1167 = vsel %vm937, %v1115, 0
    %1169 = vmatprep.subr.bf16.mxu0 0
    %1170 = vmatpush1.bf16.msra.mxu0 0
    %1171 = vmatprep.subr.bf16.mxu0 0
    %1172 = vmatpush1.bf16.msra.mxu0 0
    %1173 = vmatprep.subr.bf16.mxu0 0
    %1174 = vmatpush1.bf16.msra.mxu0 0
    %1175 = vmatprep.subr.bf16.mxu0 0
    %1176 = vmatpush1.bf16.msra.mxu0 0
    %1177 = vmatprep.subr.bf16.mxu0 0
    %1178 = vmatpush1.bf16.msra.mxu0 0
    %1179 = vmatprep.subr.bf16.mxu0 0
    %1180 = vmatpush1.bf16.msra.mxu0 0
    %1181 = vmatprep.subr.bf16.mxu0 0
    %1182 = vmatpush1.bf16.msra.mxu0 0
    %1183 = vmatprep.subr.bf16.mxu0 0
    %1184 = vmatpush1.bf16.msra.mxu0 %v537
    %1185 = vmatprep.subr.bf16.mxu0 0
    %1186 = vmatpush2.bf16.msra.mxu0 0
    %1187 = vmatprep.subr.bf16.mxu0 0
    %1188 = vmatpush2.bf16.msra.mxu0 0
    %1189 = vmatprep.subr.bf16.mxu0 0
    %1190 = vmatpush2.bf16.msra.mxu0 0
    %1191 = vmatprep.subr.bf16.mxu0 0
    %1192 = vmatpush2.bf16.msra.mxu0 0
    %1193 = vmatprep.subr.bf16.mxu0 0
    %1194 = vmatpush2.bf16.msra.mxu0 0
    %1195 = vmatprep.subr.bf16.mxu0 0
    %1196 = vmatpush2.bf16.msra.mxu0 0
    %1197 = vmatprep.subr.bf16.mxu0 0
    %1198 = vmatpush2.bf16.msra.mxu0 0
    %1199 = vmatprep.subr.bf16.mxu0 0
    %1200 = vmatpush2.bf16.msra.mxu0 0
    %1201 = vmatprep.mubr.bf16.mxu0 0
    %1202 = vmatmul.mubr.bf16.gmra.mxu0 %v1167
    %v1203 = vpop.f32.mrf.mxu0
    %v1204 = vadd.f32 0.0, %v1203
    %v1205 = vpop.f32.mrf.mxu0
    %v1206 = vpop.f32.mrf.mxu0
    %v1207 = vadd.f32 0.0, %v1206
    %v1208 = vpop.f32.mrf.mxu0
    %1209 = vdwg.mxu0
    %v1211 = vsel %vm937, %v1116, 0
    %1213 = vmatprep.subr.bf16.mxu0 0
    %1214 = vmatpush1.bf16.msra.mxu0 0
    %1215 = vmatprep.subr.bf16.mxu0 0
    %1216 = vmatpush1.bf16.msra.mxu0 0
    %1217 = vmatprep.subr.bf16.mxu0 0
    %1218 = vmatpush1.bf16.msra.mxu0 0
    %1219 = vmatprep.subr.bf16.mxu0 0
    %1220 = vmatpush1.bf16.msra.mxu0 0
    %1221 = vmatprep.subr.bf16.mxu0 0
    %1222 = vmatpush1.bf16.msra.mxu0 0
    %1223 = vmatprep.subr.bf16.mxu0 0
    %1224 = vmatpush1.bf16.msra.mxu0 0
    %1225 = vmatprep.subr.bf16.mxu0 0
    %1226 = vmatpush1.bf16.msra.mxu0 0
    %1227 = vmatprep.subr.bf16.mxu0 0
    %1228 = vmatpush1.bf16.msra.mxu0 %v538
    %1229 = vmatprep.subr.bf16.mxu0 0
    %1230 = vmatpush2.bf16.msra.mxu0 0
    %1231 = vmatprep.subr.bf16.mxu0 0
    %1232 = vmatpush2.bf16.msra.mxu0 0
    %1233 = vmatprep.subr.bf16.mxu0 0
    %1234 = vmatpush2.bf16.msra.mxu0 0
    %1235 = vmatprep.subr.bf16.mxu0 0
    %1236 = vmatpush2.bf16.msra.mxu0 0
    %1237 = vmatprep.subr.bf16.mxu0 0
    %1238 = vmatpush2.bf16.msra.mxu0 0
    %1239 = vmatprep.subr.bf16.mxu0 0
    %1240 = vmatpush2.bf16.msra.mxu0 0
    %1241 = vmatprep.subr.bf16.mxu0 0
    %1242 = vmatpush2.bf16.msra.mxu0 0
    %1243 = vmatprep.subr.bf16.mxu0 0
    %1244 = vmatpush2.bf16.msra.mxu0 0
    %1245 = vmatprep.mubr.bf16.mxu0 0
    %1246 = vmatmul.mubr.bf16.gmra.mxu0 %v1211
    %v1247 = vpop.f32.mrf.mxu0
    %v1248 = vadd.f32 0.0, %v1247
    %v1249 = vpop.f32.mrf.mxu0
    %v1250 = vpop.f32.mrf.mxu0
    %v1251 = vadd.f32 0.0, %v1250
    %v1252 = vpop.f32.mrf.mxu0
    %1253 = vdwg.mxu0
    %v1255 = vsel %vm937, %v1117, 0
    %1257 = vmatprep.subr.bf16.mxu0 0
    %1258 = vmatpush1.bf16.msra.mxu0 0
    %1259 = vmatprep.subr.bf16.mxu0 0
    %1260 = vmatpush1.bf16.msra.mxu0 0
    %1261 = vmatprep.subr.bf16.mxu0 0
    %1262 = vmatpush1.bf16.msra.mxu0 0
    %1263 = vmatprep.subr.bf16.mxu0 0
    %1264 = vmatpush1.bf16.msra.mxu0 0
    %1265 = vmatprep.subr.bf16.mxu0 0
    %1266 = vmatpush1.bf16.msra.mxu0 0
    %1267 = vmatprep.subr.bf16.mxu0 0
    %1268 = vmatpush1.bf16.msra.mxu0 0
    %1269 = vmatprep.subr.bf16.mxu0 0
    %1270 = vmatpush1.bf16.msra.mxu0 0
    %1271 = vmatprep.subr.bf16.mxu0 0
    %1272 = vmatpush1.bf16.msra.mxu0 %v539
    %1273 = vmatprep.subr.bf16.mxu0 0
    %1274 = vmatpush2.bf16.msra.mxu0 0
    %1275 = vmatprep.subr.bf16.mxu0 0
    %1276 = vmatpush2.bf16.msra.mxu0 0
    %1277 = vmatprep.subr.bf16.mxu0 0
    %1278 = vmatpush2.bf16.msra.mxu0 0
    %1279 = vmatprep.subr.bf16.mxu0 0
    %1280 = vmatpush2.bf16.msra.mxu0 0
    %1281 = vmatprep.subr.bf16.mxu0 0
    %1282 = vmatpush2.bf16.msra.mxu0 0
    %1283 = vmatprep.subr.bf16.mxu0 0
    %1284 = vmatpush2.bf16.msra.mxu0 0
    %1285 = vmatprep.subr.bf16.mxu0 0
    %1286 = vmatpush2.bf16.msra.mxu0 0
    %1287 = vmatprep.subr.bf16.mxu0 0
    %1288 = vmatpush2.bf16.msra.mxu0 0
    %1289 = vmatprep.mubr.bf16.mxu0 0
    %1290 = vmatmul.mubr.bf16.gmra.mxu0 %v1255
    %v1291 = vpop.f32.mrf.mxu0
    %v1292 = vadd.f32 0.0, %v1291
    %v1293 = vpop.f32.mrf.mxu0
    %v1294 = vpop.f32.mrf.mxu0
    %v1295 = vadd.f32 0.0, %v1294
    %v1296 = vpop.f32.mrf.mxu0
    %1297 = vdwg.mxu0
    %v1299 = vsel %vm937, %v1118, 0
    %1301 = vmatprep.subr.bf16.mxu0 0
    %1302 = vmatpush1.bf16.msra.mxu0 0
    %1303 = vmatprep.subr.bf16.mxu0 0
    %1304 = vmatpush1.bf16.msra.mxu0 0
    %1305 = vmatprep.subr.bf16.mxu0 0
    %1306 = vmatpush1.bf16.msra.mxu0 0
    %1307 = vmatprep.subr.bf16.mxu0 0
    %1308 = vmatpush1.bf16.msra.mxu0 0
    %1309 = vmatprep.subr.bf16.mxu0 0
    %1310 = vmatpush1.bf16.msra.mxu0 0
    %1311 = vmatprep.subr.bf16.mxu0 0
    %1312 = vmatpush1.bf16.msra.mxu0 0
    %1313 = vmatprep.subr.bf16.mxu0 0
    %1314 = vmatpush1.bf16.msra.mxu0 0
    %1315 = vmatprep.subr.bf16.mxu0 0
    %1316 = vmatpush1.bf16.msra.mxu0 %v540
    %1317 = vmatprep.subr.bf16.mxu0 0
    %1318 = vmatpush2.bf16.msra.mxu0 0
    %1319 = vmatprep.subr.bf16.mxu0 0
    %1320 = vmatpush2.bf16.msra.mxu0 0
    %1321 = vmatprep.subr.bf16.mxu0 0
    %1322 = vmatpush2.bf16.msra.mxu0 0
    %1323 = vmatprep.subr.bf16.mxu0 0
    %1324 = vmatpush2.bf16.msra.mxu0 0
    %1325 = vmatprep.subr.bf16.mxu0 0
    %1326 = vmatpush2.bf16.msra.mxu0 0
    %1327 = vmatprep.subr.bf16.mxu0 0
    %1328 = vmatpush2.bf16.msra.mxu0 0
    %1329 = vmatprep.subr.bf16.mxu0 0
    %1330 = vmatpush2.bf16.msra.mxu0 0
    %1331 = vmatprep.subr.bf16.mxu0 0
    %1332 = vmatpush2.bf16.msra.mxu0 0
    %1333 = vmatprep.mubr.bf16.mxu0 0
    %1334 = vmatmul.mubr.bf16.gmra.mxu0 %v1299
    %v1335 = vpop.f32.mrf.mxu0
    %v1336 = vadd.f32 0.0, %v1335
    %v1337 = vpop.f32.mrf.mxu0
    %v1338 = vpop.f32.mrf.mxu0
    %v1339 = vadd.f32 0.0, %v1338
    %v1340 = vpop.f32.mrf.mxu0
    %1341 = vdwg.mxu0
    %v1343 = vsel %vm937, %v1119, 0
    %1345 = vmatprep.subr.bf16.mxu0 0
    %1346 = vmatpush1.bf16.msra.mxu0 0
    %1347 = vmatprep.subr.bf16.mxu0 0
    %1348 = vmatpush1.bf16.msra.mxu0 0
    %1349 = vmatprep.subr.bf16.mxu0 0
    %1350 = vmatpush1.bf16.msra.mxu0 0
    %1351 = vmatprep.subr.bf16.mxu0 0
    %1352 = vmatpush1.bf16.msra.mxu0 0
    %1353 = vmatprep.subr.bf16.mxu0 0
    %1354 = vmatpush1.bf16.msra.mxu0 0
    %1355 = vmatprep.subr.bf16.mxu0 0
    %1356 = vmatpush1.bf16.msra.mxu0 0
    %1357 = vmatprep.subr.bf16.mxu0 0
    %1358 = vmatpush1.bf16.msra.mxu0 0
    %1359 = vmatprep.subr.bf16.mxu0 0
    %1360 = vmatpush1.bf16.msra.mxu0 %v541
    %1361 = vmatprep.subr.bf16.mxu0 0
    %1362 = vmatpush2.bf16.msra.mxu0 0
    %1363 = vmatprep.subr.bf16.mxu0 0
    %1364 = vmatpush2.bf16.msra.mxu0 0
    %1365 = vmatprep.subr.bf16.mxu0 0
    %1366 = vmatpush2.bf16.msra.mxu0 0
    %1367 = vmatprep.subr.bf16.mxu0 0
    %1368 = vmatpush2.bf16.msra.mxu0 0
    %1369 = vmatprep.subr.bf16.mxu0 0
    %1370 = vmatpush2.bf16.msra.mxu0 0
    %1371 = vmatprep.subr.bf16.mxu0 0
    %1372 = vmatpush2.bf16.msra.mxu0 0
    %1373 = vmatprep.subr.bf16.mxu0 0
    %1374 = vmatpush2.bf16.msra.mxu0 0
    %1375 = vmatprep.subr.bf16.mxu0 0
    %1376 = vmatpush2.bf16.msra.mxu0 0
    %1377 = vmatprep.mubr.bf16.mxu0 0
    %1378 = vmatmul.mubr.bf16.gmra.mxu0 %v1343
    %v1379 = vpop.f32.mrf.mxu0
    %v1380 = vadd.f32 0.0, %v1379
    %v1381 = vpop.f32.mrf.mxu0
    %v1382 = vpop.f32.mrf.mxu0
    %v1383 = vadd.f32 0.0, %v1382
    %v1384 = vpop.f32.mrf.mxu0
    %1385 = vdwg.mxu0
    %v1387 = vsel %vm937, %v1120, 0
    %1389 = vmatprep.subr.bf16.mxu0 0
    %1390 = vmatpush1.bf16.msra.mxu0 0
    %1391 = vmatprep.subr.bf16.mxu0 0
    %1392 = vmatpush1.bf16.msra.mxu0 0
    %1393 = vmatprep.subr.bf16.mxu0 0
    %1394 = vmatpush1.bf16.msra.mxu0 0
    %1395 = vmatprep.subr.bf16.mxu0 0
    %1396 = vmatpush1.bf16.msra.mxu0 0
    %1397 = vmatprep.subr.bf16.mxu0 0
    %1398 = vmatpush1.bf16.msra.mxu0 0
    %1399 = vmatprep.subr.bf16.mxu0 0
    %1400 = vmatpush1.bf16.msra.mxu0 0
    %1401 = vmatprep.subr.bf16.mxu0 0
    %1402 = vmatpush1.bf16.msra.mxu0 0
    %1403 = vmatprep.subr.bf16.mxu0 0
    %1404 = vmatpush1.bf16.msra.mxu0 %v542
    %1405 = vmatprep.subr.bf16.mxu0 0
    %1406 = vmatpush2.bf16.msra.mxu0 0
    %1407 = vmatprep.subr.bf16.mxu0 0
    %1408 = vmatpush2.bf16.msra.mxu0 0
    %1409 = vmatprep.subr.bf16.mxu0 0
    %1410 = vmatpush2.bf16.msra.mxu0 0
    %1411 = vmatprep.subr.bf16.mxu0 0
    %1412 = vmatpush2.bf16.msra.mxu0 0
    %1413 = vmatprep.subr.bf16.mxu0 0
    %1414 = vmatpush2.bf16.msra.mxu0 0
    %1415 = vmatprep.subr.bf16.mxu0 0
    %1416 = vmatpush2.bf16.msra.mxu0 0
    %1417 = vmatprep.subr.bf16.mxu0 0
    %1418 = vmatpush2.bf16.msra.mxu0 0
    %1419 = vmatprep.subr.bf16.mxu0 0
    %1420 = vmatpush2.bf16.msra.mxu0 0
    %1421 = vmatprep.mubr.bf16.mxu0 0
    %1422 = vmatmul.mubr.bf16.gmra.mxu0 %v1387
    %v1423 = vpop.f32.mrf.mxu0
    %v1424 = vadd.f32 0.0, %v1423
    %v1425 = vpop.f32.mrf.mxu0
    %v1426 = vpop.f32.mrf.mxu0
    %v1427 = vadd.f32 0.0, %v1426
    %v1428 = vpop.f32.mrf.mxu0
    %1429 = vdwg.mxu0
    %v1431 = vsel %vm937, %v1121, 0
    %1433 = vmatprep.subr.bf16.mxu0 0
    %1434 = vmatpush1.bf16.msra.mxu0 0
    %1435 = vmatprep.subr.bf16.mxu0 0
    %1436 = vmatpush1.bf16.msra.mxu0 0
    %1437 = vmatprep.subr.bf16.mxu0 0
    %1438 = vmatpush1.bf16.msra.mxu0 0
    %1439 = vmatprep.subr.bf16.mxu0 0
    %1440 = vmatpush1.bf16.msra.mxu0 0
    %1441 = vmatprep.subr.bf16.mxu0 0
    %1442 = vmatpush1.bf16.msra.mxu0 0
    %1443 = vmatprep.subr.bf16.mxu0 0
    %1444 = vmatpush1.bf16.msra.mxu0 0
    %1445 = vmatprep.subr.bf16.mxu0 0
    %1446 = vmatpush1.bf16.msra.mxu0 0
    %1447 = vmatprep.subr.bf16.mxu0 0
    %1448 = vmatpush1.bf16.msra.mxu0 %v543
    %1449 = vmatprep.subr.bf16.mxu0 0
    %1450 = vmatpush2.bf16.msra.mxu0 0
    %1451 = vmatprep.subr.bf16.mxu0 0
    %1452 = vmatpush2.bf16.msra.mxu0 0
    %1453 = vmatprep.subr.bf16.mxu0 0
    %1454 = vmatpush2.bf16.msra.mxu0 0
    %1455 = vmatprep.subr.bf16.mxu0 0
    %1456 = vmatpush2.bf16.msra.mxu0 0
    %1457 = vmatprep.subr.bf16.mxu0 0
    %1458 = vmatpush2.bf16.msra.mxu0 0
    %1459 = vmatprep.subr.bf16.mxu0 0
    %1460 = vmatpush2.bf16.msra.mxu0 0
    %1461 = vmatprep.subr.bf16.mxu0 0
    %1462 = vmatpush2.bf16.msra.mxu0 0
    %1463 = vmatprep.subr.bf16.mxu0 0
    %1464 = vmatpush2.bf16.msra.mxu0 0
    %1465 = vmatprep.mubr.bf16.mxu0 0
    %1466 = vmatmul.mubr.bf16.gmra.mxu0 %v1431
    %v1467 = vpop.f32.mrf.mxu0
    %v1468 = vadd.f32 0.0, %v1467
    %v1469 = vpop.f32.mrf.mxu0
    %v1470 = vpop.f32.mrf.mxu0
    %v1471 = vadd.f32 0.0, %v1470
    %v1472 = vpop.f32.mrf.mxu0
    %1473 = vdwg.mxu0
    %v1474 = vpack.c.bf16 %v1163, %v1160
    %v1475 = vpack.c.bf16 %v1207, %v1204
    %v1476 = vpack.c.bf16 %v1251, %v1248
    %v1477 = vpack.c.bf16 %v1295, %v1292
    %v1478 = vpack.c.bf16 %v1339, %v1336
    %v1479 = vpack.c.bf16 %v1383, %v1380
    %v1480 = vpack.c.bf16 %v1427, %v1424
    %v1481 = vpack.c.bf16 %v1471, %v1468
    %v1482 = vld [vmem:[#allocation5] sm:$0xf]
    %1484 = vrot.lane.b32.xlu0 %v520, 120
    %v1485 = vpop.permute.xlu0 %1484
    %1487 = vrot.lane.b32.xlu0 %v528, 120
    %v1488 = vpop.permute.xlu0 %1487
    %v1490 = vsel %vm544, %v1485, 0
    %v1493 = vsel %vm544, %v1488, 0
    %1495 = vmatprep.subr.bf16.mxu0 0
    %1496 = vmatpush1.bf16.xpose.msra.mxu0 0
    %1497 = vmatprep.subr.bf16.mxu0 0
    %1498 = vmatpush1.bf16.xpose.msra.mxu0 0
    %1499 = vmatprep.subr.bf16.mxu0 0
    %1500 = vmatpush1.bf16.xpose.msra.mxu0 0
    %1501 = vmatprep.subr.bf16.mxu0 0
    %1502 = vmatpush1.bf16.xpose.msra.mxu0 0
    %1503 = vmatprep.subr.bf16.mxu0 0
    %1504 = vmatpush1.bf16.xpose.msra.mxu0 0
    %1505 = vmatprep.subr.bf16.mxu0 0
    %1506 = vmatpush1.bf16.xpose.msra.mxu0 0
    %1507 = vmatprep.subr.bf16.mxu0 0
    %1508 = vmatpush1.bf16.xpose.msra.mxu0 0
    %1509 = vmatprep.subr.bf16.mxu0 0
    %1510 = vmatpush1.bf16.xpose.msra.mxu0 %v1493
    %1511 = vmatprep.subr.bf16.mxu0 0
    %1512 = vmatpush2.bf16.xpose.msra.mxu0 0
    %1513 = vmatprep.subr.bf16.mxu0 0
    %1514 = vmatpush2.bf16.xpose.msra.mxu0 0
    %1515 = vmatprep.subr.bf16.mxu0 0
    %1516 = vmatpush2.bf16.xpose.msra.mxu0 0
    %1517 = vmatprep.subr.bf16.mxu0 0
    %1518 = vmatpush2.bf16.xpose.msra.mxu0 0
    %1519 = vmatprep.subr.bf16.mxu0 0
    %1520 = vmatpush2.bf16.xpose.msra.mxu0 0
    %1521 = vmatprep.subr.bf16.mxu0 0
    %1522 = vmatpush2.bf16.xpose.msra.mxu0 0
    %1523 = vmatprep.subr.bf16.mxu0 0
    %1524 = vmatpush2.bf16.xpose.msra.mxu0 0
    %1525 = vmatprep.subr.bf16.mxu0 0
    %1526 = vmatpush2.bf16.xpose.msra.mxu0 0
    %1527 = vmatprep.mubr.bf16.mxu0 0
    %1528 = vmatmul.mubr.bf16.gmra.mxu0 %v1490
    %v1529 = vpop.f32.mrf.mxu0
    %v1530 = vadd.f32 0.0, %v1529
    %v1531 = vpop.f32.mrf.mxu0
    %v1532 = vpop.f32.mrf.mxu0
    %v1533 = vadd.f32 0.0, %v1532
    %v1534 = vpop.f32.mrf.mxu0
    %1535 = vdwg.mxu0
    %1537 = vrot.lane.b32.xlu0 %v521, 120
    %v1538 = vpop.permute.xlu0 %1537
    %1540 = vrot.lane.b32.xlu0 %v529, 120
    %v1541 = vpop.permute.xlu0 %1540
    %v1543 = vsel %vm544, %v1538, 0
    %v1546 = vsel %vm544, %v1541, 0
    %1548 = vmatprep.subr.bf16.mxu0 0
    %1549 = vmatpush1.bf16.xpose.msra.mxu0 0
    %1550 = vmatprep.subr.bf16.mxu0 0
    %1551 = vmatpush1.bf16.xpose.msra.mxu0 0
    %1552 = vmatprep.subr.bf16.mxu0 0
    %1553 = vmatpush1.bf16.xpose.msra.mxu0 0
    %1554 = vmatprep.subr.bf16.mxu0 0
    %1555 = vmatpush1.bf16.xpose.msra.mxu0 0
    %1556 = vmatprep.subr.bf16.mxu0 0
    %1557 = vmatpush1.bf16.xpose.msra.mxu0 0
    %1558 = vmatprep.subr.bf16.mxu0 0
    %1559 = vmatpush1.bf16.xpose.msra.mxu0 0
    %1560 = vmatprep.subr.bf16.mxu0 0
    %1561 = vmatpush1.bf16.xpose.msra.mxu0 0
    %1562 = vmatprep.subr.bf16.mxu0 0
    %1563 = vmatpush1.bf16.xpose.msra.mxu0 %v1546
    %1564 = vmatprep.subr.bf16.mxu0 0
    %1565 = vmatpush2.bf16.xpose.msra.mxu0 0
    %1566 = vmatprep.subr.bf16.mxu0 0
    %1567 = vmatpush2.bf16.xpose.msra.mxu0 0
    %1568 = vmatprep.subr.bf16.mxu0 0
    %1569 = vmatpush2.bf16.xpose.msra.mxu0 0
    %1570 = vmatprep.subr.bf16.mxu0 0
    %1571 = vmatpush2.bf16.xpose.msra.mxu0 0
    %1572 = vmatprep.subr.bf16.mxu0 0
    %1573 = vmatpush2.bf16.xpose.msra.mxu0 0
    %1574 = vmatprep.subr.bf16.mxu0 0
    %1575 = vmatpush2.bf16.xpose.msra.mxu0 0
    %1576 = vmatprep.subr.bf16.mxu0 0
    %1577 = vmatpush2.bf16.xpose.msra.mxu0 0
    %1578 = vmatprep.subr.bf16.mxu0 0
    %1579 = vmatpush2.bf16.xpose.msra.mxu0 0
    %1580 = vmatprep.mubr.bf16.mxu0 0
    %1581 = vmatmul.mubr.bf16.gmra.mxu0 %v1543
    %v1582 = vpop.f32.mrf.mxu0
    %v1583 = vadd.f32 0.0, %v1582
    %v1584 = vpop.f32.mrf.mxu0
    %v1585 = vpop.f32.mrf.mxu0
    %v1586 = vadd.f32 0.0, %v1585
    %v1587 = vpop.f32.mrf.mxu0
    %1588 = vdwg.mxu0
    %1590 = vrot.lane.b32.xlu0 %v522, 120
    %v1591 = vpop.permute.xlu0 %1590
    %1593 = vrot.lane.b32.xlu0 %v530, 120
    %v1594 = vpop.permute.xlu0 %1593
    %v1596 = vsel %vm544, %v1591, 0
    %v1599 = vsel %vm544, %v1594, 0
    %1601 = vmatprep.subr.bf16.mxu0 0
    %1602 = vmatpush1.bf16.xpose.msra.mxu0 0
    %1603 = vmatprep.subr.bf16.mxu0 0
    %1604 = vmatpush1.bf16.xpose.msra.mxu0 0
    %1605 = vmatprep.subr.bf16.mxu0 0
    %1606 = vmatpush1.bf16.xpose.msra.mxu0 0
    %1607 = vmatprep.subr.bf16.mxu0 0
    %1608 = vmatpush1.bf16.xpose.msra.mxu0 0
    %1609 = vmatprep.subr.bf16.mxu0 0
    %1610 = vmatpush1.bf16.xpose.msra.mxu0 0
    %1611 = vmatprep.subr.bf16.mxu0 0
    %1612 = vmatpush1.bf16.xpose.msra.mxu0 0
    %1613 = vmatprep.subr.bf16.mxu0 0
    %1614 = vmatpush1.bf16.xpose.msra.mxu0 0
    %1615 = vmatprep.subr.bf16.mxu0 0
    %1616 = vmatpush1.bf16.xpose.msra.mxu0 %v1599
    %1617 = vmatprep.subr.bf16.mxu0 0
    %1618 = vmatpush2.bf16.xpose.msra.mxu0 0
    %1619 = vmatprep.subr.bf16.mxu0 0
    %1620 = vmatpush2.bf16.xpose.msra.mxu0 0
    %1621 = vmatprep.subr.bf16.mxu0 0
    %1622 = vmatpush2.bf16.xpose.msra.mxu0 0
    %1623 = vmatprep.subr.bf16.mxu0 0
    %1624 = vmatpush2.bf16.xpose.msra.mxu0 0
    %1625 = vmatprep.subr.bf16.mxu0 0
    %1626 = vmatpush2.bf16.xpose.msra.mxu0 0
    %1627 = vmatprep.subr.bf16.mxu0 0
    %1628 = vmatpush2.bf16.xpose.msra.mxu0 0
    %1629 = vmatprep.subr.bf16.mxu0 0
    %1630 = vmatpush2.bf16.xpose.msra.mxu0 0
    %1631 = vmatprep.subr.bf16.mxu0 0
    %1632 = vmatpush2.bf16.xpose.msra.mxu0 0
    %1633 = vmatprep.mubr.bf16.mxu0 0
    %1634 = vmatmul.mubr.bf16.gmra.mxu0 %v1596
    %v1635 = vpop.f32.mrf.mxu0
    %v1636 = vadd.f32 0.0, %v1635
    %v1637 = vpop.f32.mrf.mxu0
    %v1638 = vpop.f32.mrf.mxu0
    %v1639 = vadd.f32 0.0, %v1638
    %v1640 = vpop.f32.mrf.mxu0
    %1641 = vdwg.mxu0
    %1643 = vrot.lane.b32.xlu0 %v523, 120
    %v1644 = vpop.permute.xlu0 %1643
    %1646 = vrot.lane.b32.xlu0 %v531, 120
    %v1647 = vpop.permute.xlu0 %1646
    %v1649 = vsel %vm544, %v1644, 0
    %v1652 = vsel %vm544, %v1647, 0
    %1654 = vmatprep.subr.bf16.mxu0 0
    %1655 = vmatpush1.bf16.xpose.msra.mxu0 0
    %1656 = vmatprep.subr.bf16.mxu0 0
    %1657 = vmatpush1.bf16.xpose.msra.mxu0 0
    %1658 = vmatprep.subr.bf16.mxu0 0
    %1659 = vmatpush1.bf16.xpose.msra.mxu0 0
    %1660 = vmatprep.subr.bf16.mxu0 0
    %1661 = vmatpush1.bf16.xpose.msra.mxu0 0
    %1662 = vmatprep.subr.bf16.mxu0 0
    %1663 = vmatpush1.bf16.xpose.msra.mxu0 0
    %1664 = vmatprep.subr.bf16.mxu0 0
    %1665 = vmatpush1.bf16.xpose.msra.mxu0 0
    %1666 = vmatprep.subr.bf16.mxu0 0
    %1667 = vmatpush1.bf16.xpose.msra.mxu0 0
    %1668 = vmatprep.subr.bf16.mxu0 0
    %1669 = vmatpush1.bf16.xpose.msra.mxu0 %v1652
    %1670 = vmatprep.subr.bf16.mxu0 0
    %1671 = vmatpush2.bf16.xpose.msra.mxu0 0
    %1672 = vmatprep.subr.bf16.mxu0 0
    %1673 = vmatpush2.bf16.xpose.msra.mxu0 0
    %1674 = vmatprep.subr.bf16.mxu0 0
    %1675 = vmatpush2.bf16.xpose.msra.mxu0 0
    %1676 = vmatprep.subr.bf16.mxu0 0
    %1677 = vmatpush2.bf16.xpose.msra.mxu0 0
    %1678 = vmatprep.subr.bf16.mxu0 0
    %1679 = vmatpush2.bf16.xpose.msra.mxu0 0
    %1680 = vmatprep.subr.bf16.mxu0 0
    %1681 = vmatpush2.bf16.xpose.msra.mxu0 0
    %1682 = vmatprep.subr.bf16.mxu0 0
    %1683 = vmatpush2.bf16.xpose.msra.mxu0 0
    %1684 = vmatprep.subr.bf16.mxu0 0
    %1685 = vmatpush2.bf16.xpose.msra.mxu0 0
    %1686 = vmatprep.mubr.bf16.mxu0 0
    %1687 = vmatmul.mubr.bf16.gmra.mxu0 %v1649
    %v1688 = vpop.f32.mrf.mxu0
    %v1689 = vadd.f32 0.0, %v1688
    %v1690 = vpop.f32.mrf.mxu0
    %v1691 = vpop.f32.mrf.mxu0
    %v1692 = vadd.f32 0.0, %v1691
    %v1693 = vpop.f32.mrf.mxu0
    %1694 = vdwg.mxu0
    %1696 = vrot.lane.b32.xlu0 %v524, 120
    %v1697 = vpop.permute.xlu0 %1696
    %1699 = vrot.lane.b32.xlu0 %v532, 120
    %v1700 = vpop.permute.xlu0 %1699
    %v1702 = vsel %vm544, %v1697, 0
    %v1705 = vsel %vm544, %v1700, 0
    %1707 = vmatprep.subr.bf16.mxu0 0
    %1708 = vmatpush1.bf16.xpose.msra.mxu0 0
    %1709 = vmatprep.subr.bf16.mxu0 0
    %1710 = vmatpush1.bf16.xpose.msra.mxu0 0
    %1711 = vmatprep.subr.bf16.mxu0 0
    %1712 = vmatpush1.bf16.xpose.msra.mxu0 0
    %1713 = vmatprep.subr.bf16.mxu0 0
    %1714 = vmatpush1.bf16.xpose.msra.mxu0 0
    %1715 = vmatprep.subr.bf16.mxu0 0
    %1716 = vmatpush1.bf16.xpose.msra.mxu0 0
    %1717 = vmatprep.subr.bf16.mxu0 0
    %1718 = vmatpush1.bf16.xpose.msra.mxu0 0
    %1719 = vmatprep.subr.bf16.mxu0 0
    %1720 = vmatpush1.bf16.xpose.msra.mxu0 0
    %1721 = vmatprep.subr.bf16.mxu0 0
    %1722 = vmatpush1.bf16.xpose.msra.mxu0 %v1705
    %1723 = vmatprep.subr.bf16.mxu0 0
    %1724 = vmatpush2.bf16.xpose.msra.mxu0 0
    %1725 = vmatprep.subr.bf16.mxu0 0
    %1726 = vmatpush2.bf16.xpose.msra.mxu0 0
    %1727 = vmatprep.subr.bf16.mxu0 0
    %1728 = vmatpush2.bf16.xpose.msra.mxu0 0
    %1729 = vmatprep.subr.bf16.mxu0 0
    %1730 = vmatpush2.bf16.xpose.msra.mxu0 0
    %1731 = vmatprep.subr.bf16.mxu0 0
    %1732 = vmatpush2.bf16.xpose.msra.mxu0 0
    %1733 = vmatprep.subr.bf16.mxu0 0
    %1734 = vmatpush2.bf16.xpose.msra.mxu0 0
    %1735 = vmatprep.subr.bf16.mxu0 0
    %1736 = vmatpush2.bf16.xpose.msra.mxu0 0
    %1737 = vmatprep.subr.bf16.mxu0 0
    %1738 = vmatpush2.bf16.xpose.msra.mxu0 0
    %1739 = vmatprep.mubr.bf16.mxu0 0
    %1740 = vmatmul.mubr.bf16.gmra.mxu0 %v1702
    %v1741 = vpop.f32.mrf.mxu0
    %v1742 = vadd.f32 0.0, %v1741
    %v1743 = vpop.f32.mrf.mxu0
    %v1744 = vpop.f32.mrf.mxu0
    %v1745 = vadd.f32 0.0, %v1744
    %v1746 = vpop.f32.mrf.mxu0
    %1747 = vdwg.mxu0
    %1749 = vrot.lane.b32.xlu0 %v525, 120
    %v1750 = vpop.permute.xlu0 %1749
    %1752 = vrot.lane.b32.xlu0 %v533, 120
    %v1753 = vpop.permute.xlu0 %1752
    %v1755 = vsel %vm544, %v1750, 0
    %v1758 = vsel %vm544, %v1753, 0
    %1760 = vmatprep.subr.bf16.mxu0 0
    %1761 = vmatpush1.bf16.xpose.msra.mxu0 0
    %1762 = vmatprep.subr.bf16.mxu0 0
    %1763 = vmatpush1.bf16.xpose.msra.mxu0 0
    %1764 = vmatprep.subr.bf16.mxu0 0
    %1765 = vmatpush1.bf16.xpose.msra.mxu0 0
    %1766 = vmatprep.subr.bf16.mxu0 0
    %1767 = vmatpush1.bf16.xpose.msra.mxu0 0
    %1768 = vmatprep.subr.bf16.mxu0 0
    %1769 = vmatpush1.bf16.xpose.msra.mxu0 0
    %1770 = vmatprep.subr.bf16.mxu0 0
    %1771 = vmatpush1.bf16.xpose.msra.mxu0 0
    %1772 = vmatprep.subr.bf16.mxu0 0
    %1773 = vmatpush1.bf16.xpose.msra.mxu0 0
    %1774 = vmatprep.subr.bf16.mxu0 0
    %1775 = vmatpush1.bf16.xpose.msra.mxu0 %v1758
    %1776 = vmatprep.subr.bf16.mxu0 0
    %1777 = vmatpush2.bf16.xpose.msra.mxu0 0
    %1778 = vmatprep.subr.bf16.mxu0 0
    %1779 = vmatpush2.bf16.xpose.msra.mxu0 0
    %1780 = vmatprep.subr.bf16.mxu0 0
    %1781 = vmatpush2.bf16.xpose.msra.mxu0 0
    %1782 = vmatprep.subr.bf16.mxu0 0
    %1783 = vmatpush2.bf16.xpose.msra.mxu0 0
    %1784 = vmatprep.subr.bf16.mxu0 0
    %1785 = vmatpush2.bf16.xpose.msra.mxu0 0
    %1786 = vmatprep.subr.bf16.mxu0 0
    %1787 = vmatpush2.bf16.xpose.msra.mxu0 0
    %1788 = vmatprep.subr.bf16.mxu0 0
    %1789 = vmatpush2.bf16.xpose.msra.mxu0 0
    %1790 = vmatprep.subr.bf16.mxu0 0
    %1791 = vmatpush2.bf16.xpose.msra.mxu0 0
    %1792 = vmatprep.mubr.bf16.mxu0 0
    %1793 = vmatmul.mubr.bf16.gmra.mxu0 %v1755
    %v1794 = vpop.f32.mrf.mxu0
    %v1795 = vadd.f32 0.0, %v1794
    %v1796 = vpop.f32.mrf.mxu0
    %v1797 = vpop.f32.mrf.mxu0
    %v1798 = vadd.f32 0.0, %v1797
    %v1799 = vpop.f32.mrf.mxu0
    %1800 = vdwg.mxu0
    %1802 = vrot.lane.b32.xlu0 %v526, 120
    %v1803 = vpop.permute.xlu0 %1802
    %1805 = vrot.lane.b32.xlu0 %v534, 120
    %v1806 = vpop.permute.xlu0 %1805
    %v1808 = vsel %vm544, %v1803, 0
    %v1811 = vsel %vm544, %v1806, 0
    %1813 = vmatprep.subr.bf16.mxu0 0
    %1814 = vmatpush1.bf16.xpose.msra.mxu0 0
    %1815 = vmatprep.subr.bf16.mxu0 0
    %1816 = vmatpush1.bf16.xpose.msra.mxu0 0
    %1817 = vmatprep.subr.bf16.mxu0 0
    %1818 = vmatpush1.bf16.xpose.msra.mxu0 0
    %1819 = vmatprep.subr.bf16.mxu0 0
    %1820 = vmatpush1.bf16.xpose.msra.mxu0 0
    %1821 = vmatprep.subr.bf16.mxu0 0
    %1822 = vmatpush1.bf16.xpose.msra.mxu0 0
    %1823 = vmatprep.subr.bf16.mxu0 0
    %1824 = vmatpush1.bf16.xpose.msra.mxu0 0
    %1825 = vmatprep.subr.bf16.mxu0 0
    %1826 = vmatpush1.bf16.xpose.msra.mxu0 0
    %1827 = vmatprep.subr.bf16.mxu0 0
    %1828 = vmatpush1.bf16.xpose.msra.mxu0 %v1811
    %1829 = vmatprep.subr.bf16.mxu0 0
    %1830 = vmatpush2.bf16.xpose.msra.mxu0 0
    %1831 = vmatprep.subr.bf16.mxu0 0
    %1832 = vmatpush2.bf16.xpose.msra.mxu0 0
    %1833 = vmatprep.subr.bf16.mxu0 0
    %1834 = vmatpush2.bf16.xpose.msra.mxu0 0
    %1835 = vmatprep.subr.bf16.mxu0 0
    %1836 = vmatpush2.bf16.xpose.msra.mxu0 0
    %1837 = vmatprep.subr.bf16.mxu0 0
    %1838 = vmatpush2.bf16.xpose.msra.mxu0 0
    %1839 = vmatprep.subr.bf16.mxu0 0
    %1840 = vmatpush2.bf16.xpose.msra.mxu0 0
    %1841 = vmatprep.subr.bf16.mxu0 0
    %1842 = vmatpush2.bf16.xpose.msra.mxu0 0
    %1843 = vmatprep.subr.bf16.mxu0 0
    %1844 = vmatpush2.bf16.xpose.msra.mxu0 0
    %1845 = vmatprep.mubr.bf16.mxu0 0
    %1846 = vmatmul.mubr.bf16.gmra.mxu0 %v1808
    %v1847 = vpop.f32.mrf.mxu0
    %v1848 = vadd.f32 0.0, %v1847
    %v1849 = vpop.f32.mrf.mxu0
    %v1850 = vpop.f32.mrf.mxu0
    %v1851 = vadd.f32 0.0, %v1850
    %v1852 = vpop.f32.mrf.mxu0
    %1853 = vdwg.mxu0
    %1855 = vrot.lane.b32.xlu0 %v527, 120
    %v1856 = vpop.permute.xlu0 %1855
    %1858 = vrot.lane.b32.xlu0 %v535, 120
    %v1859 = vpop.permute.xlu0 %1858
    %v1861 = vsel %vm544, %v1856, 0
    %v1864 = vsel %vm544, %v1859, 0
    %1866 = vmatprep.subr.bf16.mxu0 0
    %1867 = vmatpush1.bf16.xpose.msra.mxu0 0
    %1868 = vmatprep.subr.bf16.mxu0 0
    %1869 = vmatpush1.bf16.xpose.msra.mxu0 0
    %1870 = vmatprep.subr.bf16.mxu0 0
    %1871 = vmatpush1.bf16.xpose.msra.mxu0 0
    %1872 = vmatprep.subr.bf16.mxu0 0
    %1873 = vmatpush1.bf16.xpose.msra.mxu0 0
    %1874 = vmatprep.subr.bf16.mxu0 0
    %1875 = vmatpush1.bf16.xpose.msra.mxu0 0
    %1876 = vmatprep.subr.bf16.mxu0 0
    %1877 = vmatpush1.bf16.xpose.msra.mxu0 0
    %1878 = vmatprep.subr.bf16.mxu0 0
    %1879 = vmatpush1.bf16.xpose.msra.mxu0 0
    %1880 = vmatprep.subr.bf16.mxu0 0
    %1881 = vmatpush1.bf16.xpose.msra.mxu0 %v1864
    %1882 = vmatprep.subr.bf16.mxu0 0
    %1883 = vmatpush2.bf16.xpose.msra.mxu0 0
    %1884 = vmatprep.subr.bf16.mxu0 0
    %1885 = vmatpush2.bf16.xpose.msra.mxu0 0
    %1886 = vmatprep.subr.bf16.mxu0 0
    %1887 = vmatpush2.bf16.xpose.msra.mxu0 0
    %1888 = vmatprep.subr.bf16.mxu0 0
    %1889 = vmatpush2.bf16.xpose.msra.mxu0 0
    %1890 = vmatprep.subr.bf16.mxu0 0
    %1891 = vmatpush2.bf16.xpose.msra.mxu0 0
    %1892 = vmatprep.subr.bf16.mxu0 0
    %1893 = vmatpush2.bf16.xpose.msra.mxu0 0
    %1894 = vmatprep.subr.bf16.mxu0 0
    %1895 = vmatpush2.bf16.xpose.msra.mxu0 0
    %1896 = vmatprep.subr.bf16.mxu0 0
    %1897 = vmatpush2.bf16.xpose.msra.mxu0 0
    %1898 = vmatprep.mubr.bf16.mxu0 0
    %1899 = vmatmul.mubr.bf16.gmra.mxu0 %v1861
    %v1900 = vpop.f32.mrf.mxu0
    %v1901 = vadd.f32 0.0, %v1900
    %v1902 = vpop.f32.mrf.mxu0
    %v1903 = vpop.f32.mrf.mxu0
    %v1904 = vadd.f32 0.0, %v1903
    %v1905 = vpop.f32.mrf.mxu0
    %1906 = vdwg.mxu0
    %v1907 = vmul.f32 %v1530, 0.35355338
    %v1908 = vmul.f32 %v1533, 0.35355338
    %v1909 = vmul.f32 %v1583, 0.35355338
    %v1910 = vmul.f32 %v1586, 0.35355338
    %v1911 = vmul.f32 %v1636, 0.35355338
    %v1912 = vmul.f32 %v1639, 0.35355338
    %v1913 = vmul.f32 %v1689, 0.35355338
    %v1914 = vmul.f32 %v1692, 0.35355338
    %v1915 = vmul.f32 %v1742, 0.35355338
    %v1916 = vmul.f32 %v1745, 0.35355338
    %v1917 = vmul.f32 %v1795, 0.35355338
    %v1918 = vmul.f32 %v1798, 0.35355338
    %v1919 = vmul.f32 %v1848, 0.35355338
    %v1920 = vmul.f32 %v1851, 0.35355338
    %v1921 = vmul.f32 %v1901, 0.35355338
    %v1922 = vmul.f32 %v1904, 0.35355338
    %v1923 = vsel %vm937, %v1907, -inf
    %1924 = vmax.xlane.f32.xlu0 %v1923
    %v1925 = vpop.xlane.xlu0 %1924
    %v1926 = vsel %vm937, %v1908, -inf
    %1927 = vmax.xlane.f32.xlu0 %v1926
    %v1928 = vpop.xlane.xlu0 %1927
    %v1929 = vsel %vm937, %v1909, -inf
    %1930 = vmax.xlane.f32.xlu0 %v1929
    %v1931 = vpop.xlane.xlu0 %1930
    %v1932 = vsel %vm937, %v1910, -inf
    %1933 = vmax.xlane.f32.xlu0 %v1932
    %v1934 = vpop.xlane.xlu0 %1933
    %v1935 = vsel %vm937, %v1911, -inf
    %1936 = vmax.xlane.f32.xlu0 %v1935
    %v1937 = vpop.xlane.xlu0 %1936
    %v1938 = vsel %vm937, %v1912, -inf
    %1939 = vmax.xlane.f32.xlu0 %v1938
    %v1940 = vpop.xlane.xlu0 %1939
    %v1941 = vsel %vm937, %v1913, -inf
    %1942 = vmax.xlane.f32.xlu0 %v1941
    %v1943 = vpop.xlane.xlu0 %1942
    %v1944 = vsel %vm937, %v1914, -inf
    %1945 = vmax.xlane.f32.xlu0 %v1944
    %v1946 = vpop.xlane.xlu0 %1945
    %v1947 = vsel %vm937, %v1915, -inf
    %1948 = vmax.xlane.f32.xlu0 %v1947
    %v1949 = vpop.xlane.xlu0 %1948
    %v1950 = vsel %vm937, %v1916, -inf
    %1951 = vmax.xlane.f32.xlu0 %v1950
    %v1952 = vpop.xlane.xlu0 %1951
    %v1953 = vsel %vm937, %v1917, -inf
    %1954 = vmax.xlane.f32.xlu0 %v1953
    %v1955 = vpop.xlane.xlu0 %1954
    %v1956 = vsel %vm937, %v1918, -inf
    %1957 = vmax.xlane.f32.xlu0 %v1956
    %v1958 = vpop.xlane.xlu0 %1957
    %v1959 = vsel %vm937, %v1919, -inf
    %1960 = vmax.xlane.f32.xlu0 %v1959
    %v1961 = vpop.xlane.xlu0 %1960
    %v1962 = vsel %vm937, %v1920, -inf
    %1963 = vmax.xlane.f32.xlu0 %v1962
    %v1964 = vpop.xlane.xlu0 %1963
    %v1965 = vsel %vm937, %v1921, -inf
    %1966 = vmax.xlane.f32.xlu0 %v1965
    %v1967 = vpop.xlane.xlu0 %1966
    %v1968 = vsel %vm937, %v1922, -inf
    %1969 = vmax.xlane.f32.xlu0 %v1968
    %v1970 = vpop.xlane.xlu0 %1969
    %v1971 = vsub.f32 %v1907, %v1925
    %v1972 = vsub.f32 %v1908, %v1928
    %v1973 = vsub.f32 %v1909, %v1931
    %v1974 = vsub.f32 %v1910, %v1934
    %v1975 = vsub.f32 %v1911, %v1937
    %v1976 = vsub.f32 %v1912, %v1940
    %v1977 = vsub.f32 %v1913, %v1943
    %v1978 = vsub.f32 %v1914, %v1946
    %v1979 = vsub.f32 %v1915, %v1949
    %v1980 = vsub.f32 %v1916, %v1952
    %v1981 = vsub.f32 %v1917, %v1955
    %v1982 = vsub.f32 %v1918, %v1958
    %v1983 = vsub.f32 %v1919, %v1961
    %v1984 = vsub.f32 %v1920, %v1964
    %v1985 = vsub.f32 %v1921, %v1967
    %v1986 = vsub.f32 %v1922, %v1970
    %v1987 = vmul.f32 %v1971, 1.442695
    %v1988 = vpow.pop %v1987
    %v1989 = vmul.f32 %v1972, 1.442695
    %v1990 = vpow.pop %v1989
    %v1991 = vmul.f32 %v1973, 1.442695
    %v1992 = vpow.pop %v1991
    %v1993 = vmul.f32 %v1974, 1.442695
    %v1994 = vpow.pop %v1993
    %v1995 = vmul.f32 %v1975, 1.442695
    %v1996 = vpow.pop %v1995
    %v1997 = vmul.f32 %v1976, 1.442695
    %v1998 = vpow.pop %v1997
    %v1999 = vmul.f32 %v1977, 1.442695
    %v2000 = vpow.pop %v1999
    %v2001 = vmul.f32 %v1978, 1.442695
    %v2002 = vpow.pop %v2001
    %v2003 = vmul.f32 %v1979, 1.442695
    %v2004 = vpow.pop %v2003
    %v2005 = vmul.f32 %v1980, 1.442695
    %v2006 = vpow.pop %v2005
    %v2007 = vmul.f32 %v1981, 1.442695
    %v2008 = vpow.pop %v2007
    %v2009 = vmul.f32 %v1982, 1.442695
    %v2010 = vpow.pop %v2009
    %v2011 = vmul.f32 %v1983, 1.442695
    %v2012 = vpow.pop %v2011
    %v2013 = vmul.f32 %v1984, 1.442695
    %v2014 = vpow.pop %v2013
    %v2015 = vmul.f32 %v1985, 1.442695
    %v2016 = vpow.pop %v2015
    %v2017 = vmul.f32 %v1986, 1.442695
    %v2018 = vpow.pop %v2017
    %v2019 = vsel %vm937, %v1988, 0.0
    %2020 = vadd.xlane.f32.xlu0 %v2019
    %v2021 = vpop.xlane.xlu0 %2020
    %v2022 = vsel %vm937, %v1990, 0.0
    %2023 = vadd.xlane.f32.xlu0 %v2022
    %v2024 = vpop.xlane.xlu0 %2023
    %v2025 = vsel %vm937, %v1992, 0.0
    %2026 = vadd.xlane.f32.xlu0 %v2025
    %v2027 = vpop.xlane.xlu0 %2026
    %v2028 = vsel %vm937, %v1994, 0.0
    %2029 = vadd.xlane.f32.xlu0 %v2028
    %v2030 = vpop.xlane.xlu0 %2029
    %v2031 = vsel %vm937, %v1996, 0.0
    %2032 = vadd.xlane.f32.xlu0 %v2031
    %v2033 = vpop.xlane.xlu0 %2032
    %v2034 = vsel %vm937, %v1998, 0.0
    %2035 = vadd.xlane.f32.xlu0 %v2034
    %v2036 = vpop.xlane.xlu0 %2035
    %v2037 = vsel %vm937, %v2000, 0.0
    %2038 = vadd.xlane.f32.xlu0 %v2037
    %v2039 = vpop.xlane.xlu0 %2038
    %v2040 = vsel %vm937, %v2002, 0.0
    %2041 = vadd.xlane.f32.xlu0 %v2040
    %v2042 = vpop.xlane.xlu0 %2041
    %v2043 = vsel %vm937, %v2004, 0.0
    %2044 = vadd.xlane.f32.xlu0 %v2043
    %v2045 = vpop.xlane.xlu0 %2044
    %v2046 = vsel %vm937, %v2006, 0.0
    %2047 = vadd.xlane.f32.xlu0 %v2046
    %v2048 = vpop.xlane.xlu0 %2047
    %v2049 = vsel %vm937, %v2008, 0.0
    %2050 = vadd.xlane.f32.xlu0 %v2049
    %v2051 = vpop.xlane.xlu0 %2050
    %v2052 = vsel %vm937, %v2010, 0.0
    %2053 = vadd.xlane.f32.xlu0 %v2052
    %v2054 = vpop.xlane.xlu0 %2053
    %v2055 = vsel %vm937, %v2012, 0.0
    %2056 = vadd.xlane.f32.xlu0 %v2055
    %v2057 = vpop.xlane.xlu0 %2056
    %v2058 = vsel %vm937, %v2014, 0.0
    %2059 = vadd.xlane.f32.xlu0 %v2058
    %v2060 = vpop.xlane.xlu0 %2059
    %v2061 = vsel %vm937, %v2016, 0.0
    %2062 = vadd.xlane.f32.xlu0 %v2061
    %v2063 = vpop.xlane.xlu0 %2062
    %v2064 = vsel %vm937, %v2018, 0.0
    %2065 = vadd.xlane.f32.xlu0 %v2064
    %v2066 = vpop.xlane.xlu0 %2065
    %v2067 = vrcp.pop %v2021
    %v2068 = vrcp.pop %v2024
    %v2069 = vrcp.pop %v2027
    %v2070 = vrcp.pop %v2030
    %v2071 = vrcp.pop %v2033
    %v2072 = vrcp.pop %v2036
    %v2073 = vrcp.pop %v2039
    %v2074 = vrcp.pop %v2042
    %v2075 = vrcp.pop %v2045
    %v2076 = vrcp.pop %v2048
    %v2077 = vrcp.pop %v2051
    %v2078 = vrcp.pop %v2054
    %v2079 = vrcp.pop %v2057
    %v2080 = vrcp.pop %v2060
    %v2081 = vrcp.pop %v2063
    %v2082 = vrcp.pop %v2066
    %v2083 = vmul.f32 %v1988, %v2067
    %v2084 = vmul.f32 %v1990, %v2068
    %v2085 = vmul.f32 %v1992, %v2069
    %v2086 = vmul.f32 %v1994, %v2070
    %v2087 = vmul.f32 %v1996, %v2071
    %v2088 = vmul.f32 %v1998, %v2072
    %v2089 = vmul.f32 %v2000, %v2073
    %v2090 = vmul.f32 %v2002, %v2074
    %v2091 = vmul.f32 %v2004, %v2075
    %v2092 = vmul.f32 %v2006, %v2076
    %v2093 = vmul.f32 %v2008, %v2077
    %v2094 = vmul.f32 %v2010, %v2078
    %v2095 = vmul.f32 %v2012, %v2079
    %v2096 = vmul.f32 %v2014, %v2080
    %v2097 = vmul.f32 %v2016, %v2081
    %v2098 = vmul.f32 %v2018, %v2082
    %v2099 = vpack.c.bf16 %v2084, %v2083
    %v2100 = vpack.c.bf16 %v2086, %v2085
    %v2101 = vpack.c.bf16 %v2088, %v2087
    %v2102 = vpack.c.bf16 %v2090, %v2089
    %v2103 = vpack.c.bf16 %v2092, %v2091
    %v2104 = vpack.c.bf16 %v2094, %v2093
    %v2105 = vpack.c.bf16 %v2096, %v2095
    %v2106 = vpack.c.bf16 %v2098, %v2097
    %2108 = vrot.lane.b32.xlu0 %v536, 120
    %v2109 = vpop.permute.xlu0 %2108
    %v2112 = vsel %vm937, %v2099, 0
    %2114 = vmatprep.subr.bf16.mxu0 0
    %2115 = vmatpush1.bf16.msra.mxu0 0
    %2116 = vmatprep.subr.bf16.mxu0 0
    %2117 = vmatpush1.bf16.msra.mxu0 0
    %2118 = vmatprep.subr.bf16.mxu0 0
    %2119 = vmatpush1.bf16.msra.mxu0 0
    %2120 = vmatprep.subr.bf16.mxu0 0
    %2121 = vmatpush1.bf16.msra.mxu0 0
    %2122 = vmatprep.subr.bf16.mxu0 0
    %2123 = vmatpush1.bf16.msra.mxu0 0
    %2124 = vmatprep.subr.bf16.mxu0 0
    %2125 = vmatpush1.bf16.msra.mxu0 0
    %2126 = vmatprep.subr.bf16.mxu0 0
    %2127 = vmatpush1.bf16.msra.mxu0 0
    %2128 = vmatprep.subr.bf16.mxu0 0
    %2129 = vmatpush1.bf16.msra.mxu0 %v2109
    %2130 = vmatprep.subr.bf16.mxu0 0
    %2131 = vmatpush2.bf16.msra.mxu0 0
    %2132 = vmatprep.subr.bf16.mxu0 0
    %2133 = vmatpush2.bf16.msra.mxu0 0
    %2134 = vmatprep.subr.bf16.mxu0 0
    %2135 = vmatpush2.bf16.msra.mxu0 0
    %2136 = vmatprep.subr.bf16.mxu0 0
    %2137 = vmatpush2.bf16.msra.mxu0 0
    %2138 = vmatprep.subr.bf16.mxu0 0
    %2139 = vmatpush2.bf16.msra.mxu0 0
    %2140 = vmatprep.subr.bf16.mxu0 0
    %2141 = vmatpush2.bf16.msra.mxu0 0
    %2142 = vmatprep.subr.bf16.mxu0 0
    %2143 = vmatpush2.bf16.msra.mxu0 0
    %2144 = vmatprep.subr.bf16.mxu0 0
    %2145 = vmatpush2.bf16.msra.mxu0 0
    %2146 = vmatprep.mubr.bf16.mxu0 0
    %2147 = vmatmul.mubr.bf16.gmra.mxu0 %v2112
    %v2148 = vpop.f32.mrf.mxu0
    %v2149 = vadd.f32 0.0, %v2148
    %v2150 = vpop.f32.mrf.mxu0
    %v2151 = vpop.f32.mrf.mxu0
    %v2152 = vadd.f32 0.0, %v2151
    %v2153 = vpop.f32.mrf.mxu0
    %2154 = vdwg.mxu0
    %2156 = vrot.lane.b32.xlu0 %v537, 120
    %v2157 = vpop.permute.xlu0 %2156
    %v2160 = vsel %vm937, %v2100, 0
    %2162 = vmatprep.subr.bf16.mxu0 0
    %2163 = vmatpush1.bf16.msra.mxu0 0
    %2164 = vmatprep.subr.bf16.mxu0 0
    %2165 = vmatpush1.bf16.msra.mxu0 0
    %2166 = vmatprep.subr.bf16.mxu0 0
    %2167 = vmatpush1.bf16.msra.mxu0 0
    %2168 = vmatprep.subr.bf16.mxu0 0
    %2169 = vmatpush1.bf16.msra.mxu0 0
    %2170 = vmatprep.subr.bf16.mxu0 0
    %2171 = vmatpush1.bf16.msra.mxu0 0
    %2172 = vmatprep.subr.bf16.mxu0 0
    %2173 = vmatpush1.bf16.msra.mxu0 0
    %2174 = vmatprep.subr.bf16.mxu0 0
    %2175 = vmatpush1.bf16.msra.mxu0 0
    %2176 = vmatprep.subr.bf16.mxu0 0
    %2177 = vmatpush1.bf16.msra.mxu0 %v2157
    %2178 = vmatprep.subr.bf16.mxu0 0
    %2179 = vmatpush2.bf16.msra.mxu0 0
    %2180 = vmatprep.subr.bf16.mxu0 0
    %2181 = vmatpush2.bf16.msra.mxu0 0
    %2182 = vmatprep.subr.bf16.mxu0 0
    %2183 = vmatpush2.bf16.msra.mxu0 0
    %2184 = vmatprep.subr.bf16.mxu0 0
    %2185 = vmatpush2.bf16.msra.mxu0 0
    %2186 = vmatprep.subr.bf16.mxu0 0
    %2187 = vmatpush2.bf16.msra.mxu0 0
    %2188 = vmatprep.subr.bf16.mxu0 0
    %2189 = vmatpush2.bf16.msra.mxu0 0
    %2190 = vmatprep.subr.bf16.mxu0 0
    %2191 = vmatpush2.bf16.msra.mxu0 0
    %2192 = vmatprep.subr.bf16.mxu0 0
    %2193 = vmatpush2.bf16.msra.mxu0 0
    %2194 = vmatprep.mubr.bf16.mxu0 0
    %2195 = vmatmul.mubr.bf16.gmra.mxu0 %v2160
    %v2196 = vpop.f32.mrf.mxu0
    %v2197 = vadd.f32 0.0, %v2196
    %v2198 = vpop.f32.mrf.mxu0
    %v2199 = vpop.f32.mrf.mxu0
    %v2200 = vadd.f32 0.0, %v2199
    %v2201 = vpop.f32.mrf.mxu0
    %2202 = vdwg.mxu0
    %2204 = vrot.lane.b32.xlu0 %v538, 120
    %v2205 = vpop.permute.xlu0 %2204
    %v2208 = vsel %vm937, %v2101, 0
    %2210 = vmatprep.subr.bf16.mxu0 0
    %2211 = vmatpush1.bf16.msra.mxu0 0
    %2212 = vmatprep.subr.bf16.mxu0 0
    %2213 = vmatpush1.bf16.msra.mxu0 0
    %2214 = vmatprep.subr.bf16.mxu0 0
    %2215 = vmatpush1.bf16.msra.mxu0 0
    %2216 = vmatprep.subr.bf16.mxu0 0
    %2217 = vmatpush1.bf16.msra.mxu0 0
    %2218 = vmatprep.subr.bf16.mxu0 0
    %2219 = vmatpush1.bf16.msra.mxu0 0
    %2220 = vmatprep.subr.bf16.mxu0 0
    %2221 = vmatpush1.bf16.msra.mxu0 0
    %2222 = vmatprep.subr.bf16.mxu0 0
    %2223 = vmatpush1.bf16.msra.mxu0 0
    %2224 = vmatprep.subr.bf16.mxu0 0
    %2225 = vmatpush1.bf16.msra.mxu0 %v2205
    %2226 = vmatprep.subr.bf16.mxu0 0
    %2227 = vmatpush2.bf16.msra.mxu0 0
    %2228 = vmatprep.subr.bf16.mxu0 0
    %2229 = vmatpush2.bf16.msra.mxu0 0
    %2230 = vmatprep.subr.bf16.mxu0 0
    %2231 = vmatpush2.bf16.msra.mxu0 0
    %2232 = vmatprep.subr.bf16.mxu0 0
    %2233 = vmatpush2.bf16.msra.mxu0 0
    %2234 = vmatprep.subr.bf16.mxu0 0
    %2235 = vmatpush2.bf16.msra.mxu0 0
    %2236 = vmatprep.subr.bf16.mxu0 0
    %2237 = vmatpush2.bf16.msra.mxu0 0
    %2238 = vmatprep.subr.bf16.mxu0 0
    %2239 = vmatpush2.bf16.msra.mxu0 0
    %2240 = vmatprep.subr.bf16.mxu0 0
    %2241 = vmatpush2.bf16.msra.mxu0 0
    %2242 = vmatprep.mubr.bf16.mxu0 0
    %2243 = vmatmul.mubr.bf16.gmra.mxu0 %v2208
    %v2244 = vpop.f32.mrf.mxu0
    %v2245 = vadd.f32 0.0, %v2244
    %v2246 = vpop.f32.mrf.mxu0
    %v2247 = vpop.f32.mrf.mxu0
    %v2248 = vadd.f32 0.0, %v2247
    %v2249 = vpop.f32.mrf.mxu0
    %2250 = vdwg.mxu0
    %2252 = vrot.lane.b32.xlu0 %v539, 120
    %v2253 = vpop.permute.xlu0 %2252
    %v2256 = vsel %vm937, %v2102, 0
    %2258 = vmatprep.subr.bf16.mxu0 0
    %2259 = vmatpush1.bf16.msra.mxu0 0
    %2260 = vmatprep.subr.bf16.mxu0 0
    %2261 = vmatpush1.bf16.msra.mxu0 0
    %2262 = vmatprep.subr.bf16.mxu0 0
    %2263 = vmatpush1.bf16.msra.mxu0 0
    %2264 = vmatprep.subr.bf16.mxu0 0
    %2265 = vmatpush1.bf16.msra.mxu0 0
    %2266 = vmatprep.subr.bf16.mxu0 0
    %2267 = vmatpush1.bf16.msra.mxu0 0
    %2268 = vmatprep.subr.bf16.mxu0 0
    %2269 = vmatpush1.bf16.msra.mxu0 0
    %2270 = vmatprep.subr.bf16.mxu0 0
    %2271 = vmatpush1.bf16.msra.mxu0 0
    %2272 = vmatprep.subr.bf16.mxu0 0
    %2273 = vmatpush1.bf16.msra.mxu0 %v2253
    %2274 = vmatprep.subr.bf16.mxu0 0
    %2275 = vmatpush2.bf16.msra.mxu0 0
    %2276 = vmatprep.subr.bf16.mxu0 0
    %2277 = vmatpush2.bf16.msra.mxu0 0
    %2278 = vmatprep.subr.bf16.mxu0 0
    %2279 = vmatpush2.bf16.msra.mxu0 0
    %2280 = vmatprep.subr.bf16.mxu0 0
    %2281 = vmatpush2.bf16.msra.mxu0 0
    %2282 = vmatprep.subr.bf16.mxu0 0
    %2283 = vmatpush2.bf16.msra.mxu0 0
    %2284 = vmatprep.subr.bf16.mxu0 0
    %2285 = vmatpush2.bf16.msra.mxu0 0
    %2286 = vmatprep.subr.bf16.mxu0 0
    %2287 = vmatpush2.bf16.msra.mxu0 0
    %2288 = vmatprep.subr.bf16.mxu0 0
    %2289 = vmatpush2.bf16.msra.mxu0 0
    %2290 = vmatprep.mubr.bf16.mxu0 0
    %2291 = vmatmul.mubr.bf16.gmra.mxu0 %v2256
    %v2292 = vpop.f32.mrf.mxu0
    %v2293 = vadd.f32 0.0, %v2292
    %v2294 = vpop.f32.mrf.mxu0
    %v2295 = vpop.f32.mrf.mxu0
    %v2296 = vadd.f32 0.0, %v2295
    %v2297 = vpop.f32.mrf.mxu0
    %2298 = vdwg.mxu0
    %2300 = vrot.lane.b32.xlu0 %v540, 120
    %v2301 = vpop.permute.xlu0 %2300
    %v2304 = vsel %vm937, %v2103, 0
    %2306 = vmatprep.subr.bf16.mxu0 0
    %2307 = vmatpush1.bf16.msra.mxu0 0
    %2308 = vmatprep.subr.bf16.mxu0 0
    %2309 = vmatpush1.bf16.msra.mxu0 0
    %2310 = vmatprep.subr.bf16.mxu0 0
    %2311 = vmatpush1.bf16.msra.mxu0 0
    %2312 = vmatprep.subr.bf16.mxu0 0
    %2313 = vmatpush1.bf16.msra.mxu0 0
    %2314 = vmatprep.subr.bf16.mxu0 0
    %2315 = vmatpush1.bf16.msra.mxu0 0
    %2316 = vmatprep.subr.bf16.mxu0 0
    %2317 = vmatpush1.bf16.msra.mxu0 0
    %2318 = vmatprep.subr.bf16.mxu0 0
    %2319 = vmatpush1.bf16.msra.mxu0 0
    %2320 = vmatprep.subr.bf16.mxu0 0
    %2321 = vmatpush1.bf16.msra.mxu0 %v2301
    %2322 = vmatprep.subr.bf16.mxu0 0
    %2323 = vmatpush2.bf16.msra.mxu0 0
    %2324 = vmatprep.subr.bf16.mxu0 0
    %2325 = vmatpush2.bf16.msra.mxu0 0
    %2326 = vmatprep.subr.bf16.mxu0 0
    %2327 = vmatpush2.bf16.msra.mxu0 0
    %2328 = vmatprep.subr.bf16.mxu0 0
    %2329 = vmatpush2.bf16.msra.mxu0 0
    %2330 = vmatprep.subr.bf16.mxu0 0
    %2331 = vmatpush2.bf16.msra.mxu0 0
    %2332 = vmatprep.subr.bf16.mxu0 0
    %2333 = vmatpush2.bf16.msra.mxu0 0
    %2334 = vmatprep.subr.bf16.mxu0 0
    %2335 = vmatpush2.bf16.msra.mxu0 0
    %2336 = vmatprep.subr.bf16.mxu0 0
    %2337 = vmatpush2.bf16.msra.mxu0 0
    %2338 = vmatprep.mubr.bf16.mxu0 0
    %2339 = vmatmul.mubr.bf16.gmra.mxu0 %v2304
    %v2340 = vpop.f32.mrf.mxu0
    %v2341 = vadd.f32 0.0, %v2340
    %v2342 = vpop.f32.mrf.mxu0
    %v2343 = vpop.f32.mrf.mxu0
    %v2344 = vadd.f32 0.0, %v2343
    %v2345 = vpop.f32.mrf.mxu0
    %2346 = vdwg.mxu0
    %2348 = vrot.lane.b32.xlu0 %v541, 120
    %v2349 = vpop.permute.xlu0 %2348
    %v2352 = vsel %vm937, %v2104, 0
    %2354 = vmatprep.subr.bf16.mxu0 0
    %2355 = vmatpush1.bf16.msra.mxu0 0
    %2356 = vmatprep.subr.bf16.mxu0 0
    %2357 = vmatpush1.bf16.msra.mxu0 0
    %2358 = vmatprep.subr.bf16.mxu0 0
    %2359 = vmatpush1.bf16.msra.mxu0 0
    %2360 = vmatprep.subr.bf16.mxu0 0
    %2361 = vmatpush1.bf16.msra.mxu0 0
    %2362 = vmatprep.subr.bf16.mxu0 0
    %2363 = vmatpush1.bf16.msra.mxu0 0
    %2364 = vmatprep.subr.bf16.mxu0 0
    %2365 = vmatpush1.bf16.msra.mxu0 0
    %2366 = vmatprep.subr.bf16.mxu0 0
    %2367 = vmatpush1.bf16.msra.mxu0 0
    %2368 = vmatprep.subr.bf16.mxu0 0
    %2369 = vmatpush1.bf16.msra.mxu0 %v2349
    %2370 = vmatprep.subr.bf16.mxu0 0
    %2371 = vmatpush2.bf16.msra.mxu0 0
    %2372 = vmatprep.subr.bf16.mxu0 0
    %2373 = vmatpush2.bf16.msra.mxu0 0
    %2374 = vmatprep.subr.bf16.mxu0 0
    %2375 = vmatpush2.bf16.msra.mxu0 0
    %2376 = vmatprep.subr.bf16.mxu0 0
    %2377 = vmatpush2.bf16.msra.mxu0 0
    %2378 = vmatprep.subr.bf16.mxu0 0
    %2379 = vmatpush2.bf16.msra.mxu0 0
    %2380 = vmatprep.subr.bf16.mxu0 0
    %2381 = vmatpush2.bf16.msra.mxu0 0
    %2382 = vmatprep.subr.bf16.mxu0 0
    %2383 = vmatpush2.bf16.msra.mxu0 0
    %2384 = vmatprep.subr.bf16.mxu0 0
    %2385 = vmatpush2.bf16.msra.mxu0 0
    %2386 = vmatprep.mubr.bf16.mxu0 0
    %2387 = vmatmul.mubr.bf16.gmra.mxu0 %v2352
    %v2388 = vpop.f32.mrf.mxu0
    %v2389 = vadd.f32 0.0, %v2388
    %v2390 = vpop.f32.mrf.mxu0
    %v2391 = vpop.f32.mrf.mxu0
    %v2392 = vadd.f32 0.0, %v2391
    %v2393 = vpop.f32.mrf.mxu0
    %2394 = vdwg.mxu0
    %2396 = vrot.lane.b32.xlu0 %v542, 120
    %v2397 = vpop.permute.xlu0 %2396
    %v2400 = vsel %vm937, %v2105, 0
    %2402 = vmatprep.subr.bf16.mxu0 0
    %2403 = vmatpush1.bf16.msra.mxu0 0
    %2404 = vmatprep.subr.bf16.mxu0 0
    %2405 = vmatpush1.bf16.msra.mxu0 0
    %2406 = vmatprep.subr.bf16.mxu0 0
    %2407 = vmatpush1.bf16.msra.mxu0 0
    %2408 = vmatprep.subr.bf16.mxu0 0
    %2409 = vmatpush1.bf16.msra.mxu0 0
    %2410 = vmatprep.subr.bf16.mxu0 0
    %2411 = vmatpush1.bf16.msra.mxu0 0
    %2412 = vmatprep.subr.bf16.mxu0 0
    %2413 = vmatpush1.bf16.msra.mxu0 0
    %2414 = vmatprep.subr.bf16.mxu0 0
    %2415 = vmatpush1.bf16.msra.mxu0 0
    %2416 = vmatprep.subr.bf16.mxu0 0
    %2417 = vmatpush1.bf16.msra.mxu0 %v2397
    %2418 = vmatprep.subr.bf16.mxu0 0
    %2419 = vmatpush2.bf16.msra.mxu0 0
    %2420 = vmatprep.subr.bf16.mxu0 0
    %2421 = vmatpush2.bf16.msra.mxu0 0
    %2422 = vmatprep.subr.bf16.mxu0 0
    %2423 = vmatpush2.bf16.msra.mxu0 0
    %2424 = vmatprep.subr.bf16.mxu0 0
    %2425 = vmatpush2.bf16.msra.mxu0 0
    %2426 = vmatprep.subr.bf16.mxu0 0
    %2427 = vmatpush2.bf16.msra.mxu0 0
    %2428 = vmatprep.subr.bf16.mxu0 0
    %2429 = vmatpush2.bf16.msra.mxu0 0
    %2430 = vmatprep.subr.bf16.mxu0 0
    %2431 = vmatpush2.bf16.msra.mxu0 0
    %2432 = vmatprep.subr.bf16.mxu0 0
    %2433 = vmatpush2.bf16.msra.mxu0 0
    %2434 = vmatprep.mubr.bf16.mxu0 0
    %2435 = vmatmul.mubr.bf16.gmra.mxu0 %v2400
    %v2436 = vpop.f32.mrf.mxu0
    %v2437 = vadd.f32 0.0, %v2436
    %v2438 = vpop.f32.mrf.mxu0
    %v2439 = vpop.f32.mrf.mxu0
    %v2440 = vadd.f32 0.0, %v2439
    %v2441 = vpop.f32.mrf.mxu0
    %2442 = vdwg.mxu0
    %2444 = vrot.lane.b32.xlu0 %v543, 120
    %v2445 = vpop.permute.xlu0 %2444
    %v2448 = vsel %vm937, %v2106, 0
    %2450 = vmatprep.subr.bf16.mxu0 0
    %2451 = vmatpush1.bf16.msra.mxu0 0
    %2452 = vmatprep.subr.bf16.mxu0 0
    %2453 = vmatpush1.bf16.msra.mxu0 0
    %2454 = vmatprep.subr.bf16.mxu0 0
    %2455 = vmatpush1.bf16.msra.mxu0 0
    %2456 = vmatprep.subr.bf16.mxu0 0
    %2457 = vmatpush1.bf16.msra.mxu0 0
    %2458 = vmatprep.subr.bf16.mxu0 0
    %2459 = vmatpush1.bf16.msra.mxu0 0
    %2460 = vmatprep.subr.bf16.mxu0 0
    %2461 = vmatpush1.bf16.msra.mxu0 0
    %2462 = vmatprep.subr.bf16.mxu0 0
    %2463 = vmatpush1.bf16.msra.mxu0 0
    %2464 = vmatprep.subr.bf16.mxu0 0
    %2465 = vmatpush1.bf16.msra.mxu0 %v2445
    %2466 = vmatprep.subr.bf16.mxu0 0
    %2467 = vmatpush2.bf16.msra.mxu0 0
    %2468 = vmatprep.subr.bf16.mxu0 0
    %2469 = vmatpush2.bf16.msra.mxu0 0
    %2470 = vmatprep.subr.bf16.mxu0 0
    %2471 = vmatpush2.bf16.msra.mxu0 0
    %2472 = vmatprep.subr.bf16.mxu0 0
    %2473 = vmatpush2.bf16.msra.mxu0 0
    %2474 = vmatprep.subr.bf16.mxu0 0
    %2475 = vmatpush2.bf16.msra.mxu0 0
    %2476 = vmatprep.subr.bf16.mxu0 0
    %2477 = vmatpush2.bf16.msra.mxu0 0
    %2478 = vmatprep.subr.bf16.mxu0 0
    %2479 = vmatpush2.bf16.msra.mxu0 0
    %2480 = vmatprep.subr.bf16.mxu0 0
    %2481 = vmatpush2.bf16.msra.mxu0 0
    %2482 = vmatprep.mubr.bf16.mxu0 0
    %2483 = vmatmul.mubr.bf16.gmra.mxu0 %v2448
    %v2484 = vpop.f32.mrf.mxu0
    %v2485 = vadd.f32 0.0, %v2484
    %v2486 = vpop.f32.mrf.mxu0
    %v2487 = vpop.f32.mrf.mxu0
    %v2488 = vadd.f32 0.0, %v2487
    %v2489 = vpop.f32.mrf.mxu0
    %2490 = vdwg.mxu0
    %v2491 = vpack.c.bf16 %v2152, %v2149
    %v2492 = vpack.c.bf16 %v2200, %v2197
    %v2493 = vpack.c.bf16 %v2248, %v2245
    %v2494 = vpack.c.bf16 %v2296, %v2293
    %v2495 = vpack.c.bf16 %v2344, %v2341
    %v2496 = vpack.c.bf16 %v2392, %v2389
    %v2497 = vpack.c.bf16 %v2440, %v2437
    %v2498 = vpack.c.bf16 %v2488, %v2485
    %s2499 = scalar_lea.vmem [#allocation5], 4
    %v2500 = vld [vmem:[%s2499] sm:$0xf]
    %v2502 = vsel %vm544, %v2491, 0
    %v2505 = vsel %vm544, %v2492, 0
    %v2508 = vsel %vm544, %v2493, 0
    %v2511 = vsel %vm544, %v2494, 0
    %v2514 = vsel %vm544, %v2495, 0
    %v2517 = vsel %vm544, %v2496, 0
    %v2520 = vsel %vm544, %v2497, 0
    %v2523 = vsel %vm544, %v2498, 0
    %vm2525 = vcmask 1043456
    %v2527 = vsel %vm2525, %v2500, 0
    %2529 = vmatprep.subr.bf16.mxu0 0
    %2530 = vmatpush1.bf16.msra.mxu0 0
    %2531 = vmatprep.subr.bf16.mxu0 0
    %2532 = vmatpush1.bf16.msra.mxu0 0
    %2533 = vmatprep.subr.bf16.mxu0 0
    %2534 = vmatpush1.bf16.msra.mxu0 0
    %2535 = vmatprep.subr.bf16.mxu0 0
    %2536 = vmatpush1.bf16.msra.mxu0 0
    %2537 = vmatprep.subr.bf16.mxu0 0
    %2538 = vmatpush1.bf16.msra.mxu0 0
    %2539 = vmatprep.subr.bf16.mxu0 0
    %2540 = vmatpush1.bf16.msra.mxu0 0
    %2541 = vmatprep.subr.bf16.mxu0 0
    %2542 = vmatpush1.bf16.msra.mxu0 0
    %2543 = vmatprep.subr.bf16.mxu0 0
    %2544 = vmatpush1.bf16.msra.mxu0 %v2527
    %2545 = vmatprep.subr.bf16.mxu0 0
    %2546 = vmatpush2.bf16.msra.mxu0 0
    %2547 = vmatprep.subr.bf16.mxu0 0
    %2548 = vmatpush2.bf16.msra.mxu0 0
    %2549 = vmatprep.subr.bf16.mxu0 0
    %2550 = vmatpush2.bf16.msra.mxu0 0
    %2551 = vmatprep.subr.bf16.mxu0 0
    %2552 = vmatpush2.bf16.msra.mxu0 0
    %2553 = vmatprep.subr.bf16.mxu0 0
    %2554 = vmatpush2.bf16.msra.mxu0 0
    %2555 = vmatprep.subr.bf16.mxu0 0
    %2556 = vmatpush2.bf16.msra.mxu0 0
    %2557 = vmatprep.subr.bf16.mxu0 0
    %2558 = vmatpush2.bf16.msra.mxu0 0
    %2559 = vmatprep.subr.bf16.mxu0 0
    %2560 = vmatpush2.bf16.msra.mxu0 0
    %2561 = vmatprep.mubr.bf16.mxu0 0
    %2562 = vmatmul.mubr.bf16.gmra.mxu0 %v2502
    %v2563 = vpop.f32.mrf.mxu0
    %v2564 = vadd.f32 0.0, %v2563
    %v2565 = vpop.f32.mrf.mxu0
    %v2566 = vpop.f32.mrf.mxu0
    %v2567 = vadd.f32 0.0, %v2566
    %v2568 = vpop.f32.mrf.mxu0
    %2569 = vmatprep.mubr.bf16.mxu0 0
    %2570 = vmatmul.mubr.bf16.gmra.mxu0 %v2505
    %v2571 = vpop.f32.mrf.mxu0
    %v2572 = vadd.f32 0.0, %v2571
    %v2573 = vpop.f32.mrf.mxu0
    %v2574 = vpop.f32.mrf.mxu0
    %v2575 = vadd.f32 0.0, %v2574
    %v2576 = vpop.f32.mrf.mxu0
    %2577 = vmatprep.mubr.bf16.mxu0 0
    %2578 = vmatmul.mubr.bf16.gmra.mxu0 %v2508
    %v2579 = vpop.f32.mrf.mxu0
    %v2580 = vadd.f32 0.0, %v2579
    %v2581 = vpop.f32.mrf.mxu0
    %v2582 = vpop.f32.mrf.mxu0
    %v2583 = vadd.f32 0.0, %v2582
    %v2584 = vpop.f32.mrf.mxu0
    %2585 = vmatprep.mubr.bf16.mxu0 0
    %2586 = vmatmul.mubr.bf16.gmra.mxu0 %v2511
    %v2587 = vpop.f32.mrf.mxu0
    %v2588 = vadd.f32 0.0, %v2587
    %v2589 = vpop.f32.mrf.mxu0
    %v2590 = vpop.f32.mrf.mxu0
    %v2591 = vadd.f32 0.0, %v2590
    %v2592 = vpop.f32.mrf.mxu0
    %2593 = vmatprep.mubr.bf16.mxu0 0
    %2594 = vmatmul.mubr.bf16.gmra.mxu0 %v2514
    %v2595 = vpop.f32.mrf.mxu0
    %v2596 = vadd.f32 0.0, %v2595
    %v2597 = vpop.f32.mrf.mxu0
    %v2598 = vpop.f32.mrf.mxu0
    %v2599 = vadd.f32 0.0, %v2598
    %v2600 = vpop.f32.mrf.mxu0
    %2601 = vmatprep.mubr.bf16.mxu0 0
    %2602 = vmatmul.mubr.bf16.gmra.mxu0 %v2517
    %v2603 = vpop.f32.mrf.mxu0
    %v2604 = vadd.f32 0.0, %v2603
    %v2605 = vpop.f32.mrf.mxu0
    %v2606 = vpop.f32.mrf.mxu0
    %v2607 = vadd.f32 0.0, %v2606
    %v2608 = vpop.f32.mrf.mxu0
    %2609 = vmatprep.mubr.bf16.mxu0 0
    %2610 = vmatmul.mubr.bf16.gmra.mxu0 %v2520
    %v2611 = vpop.f32.mrf.mxu0
    %v2612 = vadd.f32 0.0, %v2611
    %v2613 = vpop.f32.mrf.mxu0
    %v2614 = vpop.f32.mrf.mxu0
    %v2615 = vadd.f32 0.0, %v2614
    %v2616 = vpop.f32.mrf.mxu0
    %2617 = vmatprep.mubr.bf16.mxu0 0
    %2618 = vmatmul.mubr.bf16.gmra.mxu0 %v2523
    %v2619 = vpop.f32.mrf.mxu0
    %v2620 = vadd.f32 0.0, %v2619
    %v2621 = vpop.f32.mrf.mxu0
    %v2622 = vpop.f32.mrf.mxu0
    %v2623 = vadd.f32 0.0, %v2622
    %v2624 = vpop.f32.mrf.mxu0
    %2625 = vdwg.mxu0
    %v2627 = vsel %vm544, %v1474, 0
    %v2630 = vsel %vm544, %v1475, 0
    %v2633 = vsel %vm544, %v1476, 0
    %v2636 = vsel %vm544, %v1477, 0
    %v2639 = vsel %vm544, %v1478, 0
    %v2642 = vsel %vm544, %v1479, 0
    %v2645 = vsel %vm544, %v1480, 0
    %v2648 = vsel %vm544, %v1481, 0
    %v2651 = vsel %vm2525, %v1482, 0
    %2653 = vmatprep.subr.bf16.mxu0 0
    %2654 = vmatpush1.bf16.msra.mxu0 0
    %2655 = vmatprep.subr.bf16.mxu0 0
    %2656 = vmatpush1.bf16.msra.mxu0 0
    %2657 = vmatprep.subr.bf16.mxu0 0
    %2658 = vmatpush1.bf16.msra.mxu0 0
    %2659 = vmatprep.subr.bf16.mxu0 0
    %2660 = vmatpush1.bf16.msra.mxu0 0
    %2661 = vmatprep.subr.bf16.mxu0 0
    %2662 = vmatpush1.bf16.msra.mxu0 0
    %2663 = vmatprep.subr.bf16.mxu0 0
    %2664 = vmatpush1.bf16.msra.mxu0 0
    %2665 = vmatprep.subr.bf16.mxu0 0
    %2666 = vmatpush1.bf16.msra.mxu0 0
    %2667 = vmatprep.subr.bf16.mxu0 0
    %2668 = vmatpush1.bf16.msra.mxu0 %v2651
    %2669 = vmatprep.subr.bf16.mxu0 0
    %2670 = vmatpush2.bf16.msra.mxu0 0
    %2671 = vmatprep.subr.bf16.mxu0 0
    %2672 = vmatpush2.bf16.msra.mxu0 0
    %2673 = vmatprep.subr.bf16.mxu0 0
    %2674 = vmatpush2.bf16.msra.mxu0 0
    %2675 = vmatprep.subr.bf16.mxu0 0
    %2676 = vmatpush2.bf16.msra.mxu0 0
    %2677 = vmatprep.subr.bf16.mxu0 0
    %2678 = vmatpush2.bf16.msra.mxu0 0
    %2679 = vmatprep.subr.bf16.mxu0 0
    %2680 = vmatpush2.bf16.msra.mxu0 0
    %2681 = vmatprep.subr.bf16.mxu0 0
    %2682 = vmatpush2.bf16.msra.mxu0 0
    %2683 = vmatprep.subr.bf16.mxu0 0
    %2684 = vmatpush2.bf16.msra.mxu0 0
    %2685 = vmatprep.mubr.bf16.mxu0 0
    %2686 = vmatmul.mubr.bf16.gmra.mxu0 %v2627
    %v2687 = vpop.f32.mrf.mxu0
    %v2688 = vadd.f32 %v2564, %v2687
    %v2689 = vpop.f32.mrf.mxu0
    %v2690 = vpop.f32.mrf.mxu0
    %v2691 = vadd.f32 %v2567, %v2690
    %v2692 = vpop.f32.mrf.mxu0
    %2693 = vmatprep.mubr.bf16.mxu0 0
    %2694 = vmatmul.mubr.bf16.gmra.mxu0 %v2630
    %v2695 = vpop.f32.mrf.mxu0
    %v2696 = vadd.f32 %v2572, %v2695
    %v2697 = vpop.f32.mrf.mxu0
    %v2698 = vpop.f32.mrf.mxu0
    %v2699 = vadd.f32 %v2575, %v2698
    %v2700 = vpop.f32.mrf.mxu0
    %2701 = vmatprep.mubr.bf16.mxu0 0
    %2702 = vmatmul.mubr.bf16.gmra.mxu0 %v2633
    %v2703 = vpop.f32.mrf.mxu0
    %v2704 = vadd.f32 %v2580, %v2703
    %v2705 = vpop.f32.mrf.mxu0
    %v2706 = vpop.f32.mrf.mxu0
    %v2707 = vadd.f32 %v2583, %v2706
    %v2708 = vpop.f32.mrf.mxu0
    %2709 = vmatprep.mubr.bf16.mxu0 0
    %2710 = vmatmul.mubr.bf16.gmra.mxu0 %v2636
    %v2711 = vpop.f32.mrf.mxu0
    %v2712 = vadd.f32 %v2588, %v2711
    %v2713 = vpop.f32.mrf.mxu0
    %v2714 = vpop.f32.mrf.mxu0
    %v2715 = vadd.f32 %v2591, %v2714
    %v2716 = vpop.f32.mrf.mxu0
    %2717 = vmatprep.mubr.bf16.mxu0 0
    %2718 = vmatmul.mubr.bf16.gmra.mxu0 %v2639
    %v2719 = vpop.f32.mrf.mxu0
    %v2720 = vadd.f32 %v2596, %v2719
    %v2721 = vpop.f32.mrf.mxu0
    %v2722 = vpop.f32.mrf.mxu0
    %v2723 = vadd.f32 %v2599, %v2722
    %v2724 = vpop.f32.mrf.mxu0
    %2725 = vmatprep.mubr.bf16.mxu0 0
    %2726 = vmatmul.mubr.bf16.gmra.mxu0 %v2642
    %v2727 = vpop.f32.mrf.mxu0
    %v2728 = vadd.f32 %v2604, %v2727
    %v2729 = vpop.f32.mrf.mxu0
    %v2730 = vpop.f32.mrf.mxu0
    %v2731 = vadd.f32 %v2607, %v2730
    %v2732 = vpop.f32.mrf.mxu0
    %2733 = vmatprep.mubr.bf16.mxu0 0
    %2734 = vmatmul.mubr.bf16.gmra.mxu0 %v2645
    %v2735 = vpop.f32.mrf.mxu0
    %v2736 = vadd.f32 %v2612, %v2735
    %v2737 = vpop.f32.mrf.mxu0
    %v2738 = vpop.f32.mrf.mxu0
    %v2739 = vadd.f32 %v2615, %v2738
    %v2740 = vpop.f32.mrf.mxu0
    %2741 = vmatprep.mubr.bf16.mxu0 0
    %2742 = vmatmul.mubr.bf16.gmra.mxu0 %v2648
    %v2743 = vpop.f32.mrf.mxu0
    %v2744 = vadd.f32 %v2620, %v2743
    %v2745 = vpop.f32.mrf.mxu0
    %v2746 = vpop.f32.mrf.mxu0
    %v2747 = vadd.f32 %v2623, %v2746
    %v2748 = vpop.f32.mrf.mxu0
    %2749 = vdwg.mxu0
    %2750 = vrot.lane.b32.xlu0 %v520, 112
    %v2751 = vpop.permute.xlu0 %2750
    %2752 = vrot.lane.b32.xlu0 %v528, 112
    %v2753 = vpop.permute.xlu0 %2752
    %v2755 = vsel %vm544, %v2751, 0
    %v2758 = vsel %vm544, %v2753, 0
    %2760 = vmatprep.subr.bf16.mxu0 0
    %2761 = vmatpush1.bf16.xpose.msra.mxu0 0
    %2762 = vmatprep.subr.bf16.mxu0 0
    %2763 = vmatpush1.bf16.xpose.msra.mxu0 0
    %2764 = vmatprep.subr.bf16.mxu0 0
    %2765 = vmatpush1.bf16.xpose.msra.mxu0 0
    %2766 = vmatprep.subr.bf16.mxu0 0
    %2767 = vmatpush1.bf16.xpose.msra.mxu0 0
    %2768 = vmatprep.subr.bf16.mxu0 0
    %2769 = vmatpush1.bf16.xpose.msra.mxu0 0
    %2770 = vmatprep.subr.bf16.mxu0 0
    %2771 = vmatpush1.bf16.xpose.msra.mxu0 0
    %2772 = vmatprep.subr.bf16.mxu0 0
    %2773 = vmatpush1.bf16.xpose.msra.mxu0 0
    %2774 = vmatprep.subr.bf16.mxu0 0
    %2775 = vmatpush1.bf16.xpose.msra.mxu0 %v2758
    %2776 = vmatprep.subr.bf16.mxu0 0
    %2777 = vmatpush2.bf16.xpose.msra.mxu0 0
    %2778 = vmatprep.subr.bf16.mxu0 0
    %2779 = vmatpush2.bf16.xpose.msra.mxu0 0
    %2780 = vmatprep.subr.bf16.mxu0 0
    %2781 = vmatpush2.bf16.xpose.msra.mxu0 0
    %2782 = vmatprep.subr.bf16.mxu0 0
    %2783 = vmatpush2.bf16.xpose.msra.mxu0 0
    %2784 = vmatprep.subr.bf16.mxu0 0
    %2785 = vmatpush2.bf16.xpose.msra.mxu0 0
    %2786 = vmatprep.subr.bf16.mxu0 0
    %2787 = vmatpush2.bf16.xpose.msra.mxu0 0
    %2788 = vmatprep.subr.bf16.mxu0 0
    %2789 = vmatpush2.bf16.xpose.msra.mxu0 0
    %2790 = vmatprep.subr.bf16.mxu0 0
    %2791 = vmatpush2.bf16.xpose.msra.mxu0 0
    %2792 = vmatprep.mubr.bf16.mxu0 0
    %2793 = vmatmul.mubr.bf16.gmra.mxu0 %v2755
    %v2794 = vpop.f32.mrf.mxu0
    %v2795 = vadd.f32 0.0, %v2794
    %v2796 = vpop.f32.mrf.mxu0
    %v2797 = vpop.f32.mrf.mxu0
    %v2798 = vadd.f32 0.0, %v2797
    %v2799 = vpop.f32.mrf.mxu0
    %2800 = vdwg.mxu0
    %2801 = vrot.lane.b32.xlu0 %v521, 112
    %v2802 = vpop.permute.xlu0 %2801
    %2803 = vrot.lane.b32.xlu0 %v529, 112
    %v2804 = vpop.permute.xlu0 %2803
    %v2806 = vsel %vm544, %v2802, 0
    %v2809 = vsel %vm544, %v2804, 0
    %2811 = vmatprep.subr.bf16.mxu0 0
    %2812 = vmatpush1.bf16.xpose.msra.mxu0 0
    %2813 = vmatprep.subr.bf16.mxu0 0
    %2814 = vmatpush1.bf16.xpose.msra.mxu0 0
    %2815 = vmatprep.subr.bf16.mxu0 0
    %2816 = vmatpush1.bf16.xpose.msra.mxu0 0
    %2817 = vmatprep.subr.bf16.mxu0 0
    %2818 = vmatpush1.bf16.xpose.msra.mxu0 0
    %2819 = vmatprep.subr.bf16.mxu0 0
    %2820 = vmatpush1.bf16.xpose.msra.mxu0 0
    %2821 = vmatprep.subr.bf16.mxu0 0
    %2822 = vmatpush1.bf16.xpose.msra.mxu0 0
    %2823 = vmatprep.subr.bf16.mxu0 0
    %2824 = vmatpush1.bf16.xpose.msra.mxu0 0
    %2825 = vmatprep.subr.bf16.mxu0 0
    %2826 = vmatpush1.bf16.xpose.msra.mxu0 %v2809
    %2827 = vmatprep.subr.bf16.mxu0 0
    %2828 = vmatpush2.bf16.xpose.msra.mxu0 0
    %2829 = vmatprep.subr.bf16.mxu0 0
    %2830 = vmatpush2.bf16.xpose.msra.mxu0 0
    %2831 = vmatprep.subr.bf16.mxu0 0
    %2832 = vmatpush2.bf16.xpose.msra.mxu0 0
    %2833 = vmatprep.subr.bf16.mxu0 0
    %2834 = vmatpush2.bf16.xpose.msra.mxu0 0
    %2835 = vmatprep.subr.bf16.mxu0 0
    %2836 = vmatpush2.bf16.xpose.msra.mxu0 0
    %2837 = vmatprep.subr.bf16.mxu0 0
    %2838 = vmatpush2.bf16.xpose.msra.mxu0 0
    %2839 = vmatprep.subr.bf16.mxu0 0
    %2840 = vmatpush2.bf16.xpose.msra.mxu0 0
    %2841 = vmatprep.subr.bf16.mxu0 0
    %2842 = vmatpush2.bf16.xpose.msra.mxu0 0
    %2843 = vmatprep.mubr.bf16.mxu0 0
    %2844 = vmatmul.mubr.bf16.gmra.mxu0 %v2806
    %v2845 = vpop.f32.mrf.mxu0
    %v2846 = vadd.f32 0.0, %v2845
    %v2847 = vpop.f32.mrf.mxu0
    %v2848 = vpop.f32.mrf.mxu0
    %v2849 = vadd.f32 0.0, %v2848
    %v2850 = vpop.f32.mrf.mxu0
    %2851 = vdwg.mxu0
    %2852 = vrot.lane.b32.xlu0 %v522, 112
    %v2853 = vpop.permute.xlu0 %2852
    %2854 = vrot.lane.b32.xlu0 %v530, 112
    %v2855 = vpop.permute.xlu0 %2854
    %v2857 = vsel %vm544, %v2853, 0
    %v2860 = vsel %vm544, %v2855, 0
    %2862 = vmatprep.subr.bf16.mxu0 0
    %2863 = vmatpush1.bf16.xpose.msra.mxu0 0
    %2864 = vmatprep.subr.bf16.mxu0 0
    %2865 = vmatpush1.bf16.xpose.msra.mxu0 0
    %2866 = vmatprep.subr.bf16.mxu0 0
    %2867 = vmatpush1.bf16.xpose.msra.mxu0 0
    %2868 = vmatprep.subr.bf16.mxu0 0
    %2869 = vmatpush1.bf16.xpose.msra.mxu0 0
    %2870 = vmatprep.subr.bf16.mxu0 0
    %2871 = vmatpush1.bf16.xpose.msra.mxu0 0
    %2872 = vmatprep.subr.bf16.mxu0 0
    %2873 = vmatpush1.bf16.xpose.msra.mxu0 0
    %2874 = vmatprep.subr.bf16.mxu0 0
    %2875 = vmatpush1.bf16.xpose.msra.mxu0 0
    %2876 = vmatprep.subr.bf16.mxu0 0
    %2877 = vmatpush1.bf16.xpose.msra.mxu0 %v2860
    %2878 = vmatprep.subr.bf16.mxu0 0
    %2879 = vmatpush2.bf16.xpose.msra.mxu0 0
    %2880 = vmatprep.subr.bf16.mxu0 0
    %2881 = vmatpush2.bf16.xpose.msra.mxu0 0
    %2882 = vmatprep.subr.bf16.mxu0 0
    %2883 = vmatpush2.bf16.xpose.msra.mxu0 0
    %2884 = vmatprep.subr.bf16.mxu0 0
    %2885 = vmatpush2.bf16.xpose.msra.mxu0 0
    %2886 = vmatprep.subr.bf16.mxu0 0
    %2887 = vmatpush2.bf16.xpose.msra.mxu0 0
    %2888 = vmatprep.subr.bf16.mxu0 0
    %2889 = vmatpush2.bf16.xpose.msra.mxu0 0
    %2890 = vmatprep.subr.bf16.mxu0 0
    %2891 = vmatpush2.bf16.xpose.msra.mxu0 0
    %2892 = vmatprep.subr.bf16.mxu0 0
    %2893 = vmatpush2.bf16.xpose.msra.mxu0 0
    %2894 = vmatprep.mubr.bf16.mxu0 0
    %2895 = vmatmul.mubr.bf16.gmra.mxu0 %v2857
    %v2896 = vpop.f32.mrf.mxu0
    %v2897 = vadd.f32 0.0, %v2896
    %v2898 = vpop.f32.mrf.mxu0
    %v2899 = vpop.f32.mrf.mxu0
    %v2900 = vadd.f32 0.0, %v2899
    %v2901 = vpop.f32.mrf.mxu0
    %2902 = vdwg.mxu0
    %2903 = vrot.lane.b32.xlu0 %v523, 112
    %v2904 = vpop.permute.xlu0 %2903
    %2905 = vrot.lane.b32.xlu0 %v531, 112
    %v2906 = vpop.permute.xlu0 %2905
    %v2908 = vsel %vm544, %v2904, 0
    %v2911 = vsel %vm544, %v2906, 0
    %2913 = vmatprep.subr.bf16.mxu0 0
    %2914 = vmatpush1.bf16.xpose.msra.mxu0 0
    %2915 = vmatprep.subr.bf16.mxu0 0
    %2916 = vmatpush1.bf16.xpose.msra.mxu0 0
    %2917 = vmatprep.subr.bf16.mxu0 0
    %2918 = vmatpush1.bf16.xpose.msra.mxu0 0
    %2919 = vmatprep.subr.bf16.mxu0 0
    %2920 = vmatpush1.bf16.xpose.msra.mxu0 0
    %2921 = vmatprep.subr.bf16.mxu0 0
    %2922 = vmatpush1.bf16.xpose.msra.mxu0 0
    %2923 = vmatprep.subr.bf16.mxu0 0
    %2924 = vmatpush1.bf16.xpose.msra.mxu0 0
    %2925 = vmatprep.subr.bf16.mxu0 0
    %2926 = vmatpush1.bf16.xpose.msra.mxu0 0
    %2927 = vmatprep.subr.bf16.mxu0 0
    %2928 = vmatpush1.bf16.xpose.msra.mxu0 %v2911
    %2929 = vmatprep.subr.bf16.mxu0 0
    %2930 = vmatpush2.bf16.xpose.msra.mxu0 0
    %2931 = vmatprep.subr.bf16.mxu0 0
    %2932 = vmatpush2.bf16.xpose.msra.mxu0 0
    %2933 = vmatprep.subr.bf16.mxu0 0
    %2934 = vmatpush2.bf16.xpose.msra.mxu0 0
    %2935 = vmatprep.subr.bf16.mxu0 0
    %2936 = vmatpush2.bf16.xpose.msra.mxu0 0
    %2937 = vmatprep.subr.bf16.mxu0 0
    %2938 = vmatpush2.bf16.xpose.msra.mxu0 0
    %2939 = vmatprep.subr.bf16.mxu0 0
    %2940 = vmatpush2.bf16.xpose.msra.mxu0 0
    %2941 = vmatprep.subr.bf16.mxu0 0
    %2942 = vmatpush2.bf16.xpose.msra.mxu0 0
    %2943 = vmatprep.subr.bf16.mxu0 0
    %2944 = vmatpush2.bf16.xpose.msra.mxu0 0
    %2945 = vmatprep.mubr.bf16.mxu0 0
    %2946 = vmatmul.mubr.bf16.gmra.mxu0 %v2908
    %v2947 = vpop.f32.mrf.mxu0
    %v2948 = vadd.f32 0.0, %v2947
    %v2949 = vpop.f32.mrf.mxu0
    %v2950 = vpop.f32.mrf.mxu0
    %v2951 = vadd.f32 0.0, %v2950
    %v2952 = vpop.f32.mrf.mxu0
    %2953 = vdwg.mxu0
    %2954 = vrot.lane.b32.xlu0 %v524, 112
    %v2955 = vpop.permute.xlu0 %2954
    %2956 = vrot.lane.b32.xlu0 %v532, 112
    %v2957 = vpop.permute.xlu0 %2956
    %v2959 = vsel %vm544, %v2955, 0
    %v2962 = vsel %vm544, %v2957, 0
    %2964 = vmatprep.subr.bf16.mxu0 0
    %2965 = vmatpush1.bf16.xpose.msra.mxu0 0
    %2966 = vmatprep.subr.bf16.mxu0 0
    %2967 = vmatpush1.bf16.xpose.msra.mxu0 0
    %2968 = vmatprep.subr.bf16.mxu0 0
    %2969 = vmatpush1.bf16.xpose.msra.mxu0 0
    %2970 = vmatprep.subr.bf16.mxu0 0
    %2971 = vmatpush1.bf16.xpose.msra.mxu0 0
    %2972 = vmatprep.subr.bf16.mxu0 0
    %2973 = vmatpush1.bf16.xpose.msra.mxu0 0
    %2974 = vmatprep.subr.bf16.mxu0 0
    %2975 = vmatpush1.bf16.xpose.msra.mxu0 0
    %2976 = vmatprep.subr.bf16.mxu0 0
    %2977 = vmatpush1.bf16.xpose.msra.mxu0 0
    %2978 = vmatprep.subr.bf16.mxu0 0
    %2979 = vmatpush1.bf16.xpose.msra.mxu0 %v2962
    %2980 = vmatprep.subr.bf16.mxu0 0
    %2981 = vmatpush2.bf16.xpose.msra.mxu0 0
    %2982 = vmatprep.subr.bf16.mxu0 0
    %2983 = vmatpush2.bf16.xpose.msra.mxu0 0
    %2984 = vmatprep.subr.bf16.mxu0 0
    %2985 = vmatpush2.bf16.xpose.msra.mxu0 0
    %2986 = vmatprep.subr.bf16.mxu0 0
    %2987 = vmatpush2.bf16.xpose.msra.mxu0 0
    %2988 = vmatprep.subr.bf16.mxu0 0
    %2989 = vmatpush2.bf16.xpose.msra.mxu0 0
    %2990 = vmatprep.subr.bf16.mxu0 0
    %2991 = vmatpush2.bf16.xpose.msra.mxu0 0
    %2992 = vmatprep.subr.bf16.mxu0 0
    %2993 = vmatpush2.bf16.xpose.msra.mxu0 0
    %2994 = vmatprep.subr.bf16.mxu0 0
    %2995 = vmatpush2.bf16.xpose.msra.mxu0 0
    %2996 = vmatprep.mubr.bf16.mxu0 0
    %2997 = vmatmul.mubr.bf16.gmra.mxu0 %v2959
    %v2998 = vpop.f32.mrf.mxu0
    %v2999 = vadd.f32 0.0, %v2998
    %v3000 = vpop.f32.mrf.mxu0
    %v3001 = vpop.f32.mrf.mxu0
    %v3002 = vadd.f32 0.0, %v3001
    %v3003 = vpop.f32.mrf.mxu0
    %3004 = vdwg.mxu0
    %3005 = vrot.lane.b32.xlu0 %v525, 112
    %v3006 = vpop.permute.xlu0 %3005
    %3007 = vrot.lane.b32.xlu0 %v533, 112
    %v3008 = vpop.permute.xlu0 %3007
    %v3010 = vsel %vm544, %v3006, 0
    %v3013 = vsel %vm544, %v3008, 0
    %3015 = vmatprep.subr.bf16.mxu0 0
    %3016 = vmatpush1.bf16.xpose.msra.mxu0 0
    %3017 = vmatprep.subr.bf16.mxu0 0
    %3018 = vmatpush1.bf16.xpose.msra.mxu0 0
    %3019 = vmatprep.subr.bf16.mxu0 0
    %3020 = vmatpush1.bf16.xpose.msra.mxu0 0
    %3021 = vmatprep.subr.bf16.mxu0 0
    %3022 = vmatpush1.bf16.xpose.msra.mxu0 0
    %3023 = vmatprep.subr.bf16.mxu0 0
    %3024 = vmatpush1.bf16.xpose.msra.mxu0 0
    %3025 = vmatprep.subr.bf16.mxu0 0
    %3026 = vmatpush1.bf16.xpose.msra.mxu0 0
    %3027 = vmatprep.subr.bf16.mxu0 0
    %3028 = vmatpush1.bf16.xpose.msra.mxu0 0
    %3029 = vmatprep.subr.bf16.mxu0 0
    %3030 = vmatpush1.bf16.xpose.msra.mxu0 %v3013
    %3031 = vmatprep.subr.bf16.mxu0 0
    %3032 = vmatpush2.bf16.xpose.msra.mxu0 0
    %3033 = vmatprep.subr.bf16.mxu0 0
    %3034 = vmatpush2.bf16.xpose.msra.mxu0 0
    %3035 = vmatprep.subr.bf16.mxu0 0
    %3036 = vmatpush2.bf16.xpose.msra.mxu0 0
    %3037 = vmatprep.subr.bf16.mxu0 0
    %3038 = vmatpush2.bf16.xpose.msra.mxu0 0
    %3039 = vmatprep.subr.bf16.mxu0 0
    %3040 = vmatpush2.bf16.xpose.msra.mxu0 0
    %3041 = vmatprep.subr.bf16.mxu0 0
    %3042 = vmatpush2.bf16.xpose.msra.mxu0 0
    %3043 = vmatprep.subr.bf16.mxu0 0
    %3044 = vmatpush2.bf16.xpose.msra.mxu0 0
    %3045 = vmatprep.subr.bf16.mxu0 0
    %3046 = vmatpush2.bf16.xpose.msra.mxu0 0
    %3047 = vmatprep.mubr.bf16.mxu0 0
    %3048 = vmatmul.mubr.bf16.gmra.mxu0 %v3010
    %v3049 = vpop.f32.mrf.mxu0
    %v3050 = vadd.f32 0.0, %v3049
    %v3051 = vpop.f32.mrf.mxu0
    %v3052 = vpop.f32.mrf.mxu0
    %v3053 = vadd.f32 0.0, %v3052
    %v3054 = vpop.f32.mrf.mxu0
    %3055 = vdwg.mxu0
    %3056 = vrot.lane.b32.xlu0 %v526, 112
    %v3057 = vpop.permute.xlu0 %3056
    %3058 = vrot.lane.b32.xlu0 %v534, 112
    %v3059 = vpop.permute.xlu0 %3058
    %v3061 = vsel %vm544, %v3057, 0
    %v3064 = vsel %vm544, %v3059, 0
    %3066 = vmatprep.subr.bf16.mxu0 0
    %3067 = vmatpush1.bf16.xpose.msra.mxu0 0
    %3068 = vmatprep.subr.bf16.mxu0 0
    %3069 = vmatpush1.bf16.xpose.msra.mxu0 0
    %3070 = vmatprep.subr.bf16.mxu0 0
    %3071 = vmatpush1.bf16.xpose.msra.mxu0 0
    %3072 = vmatprep.subr.bf16.mxu0 0
    %3073 = vmatpush1.bf16.xpose.msra.mxu0 0
    %3074 = vmatprep.subr.bf16.mxu0 0
    %3075 = vmatpush1.bf16.xpose.msra.mxu0 0
    %3076 = vmatprep.subr.bf16.mxu0 0
    %3077 = vmatpush1.bf16.xpose.msra.mxu0 0
    %3078 = vmatprep.subr.bf16.mxu0 0
    %3079 = vmatpush1.bf16.xpose.msra.mxu0 0
    %3080 = vmatprep.subr.bf16.mxu0 0
    %3081 = vmatpush1.bf16.xpose.msra.mxu0 %v3064
    %3082 = vmatprep.subr.bf16.mxu0 0
    %3083 = vmatpush2.bf16.xpose.msra.mxu0 0
    %3084 = vmatprep.subr.bf16.mxu0 0
    %3085 = vmatpush2.bf16.xpose.msra.mxu0 0
    %3086 = vmatprep.subr.bf16.mxu0 0
    %3087 = vmatpush2.bf16.xpose.msra.mxu0 0
    %3088 = vmatprep.subr.bf16.mxu0 0
    %3089 = vmatpush2.bf16.xpose.msra.mxu0 0
    %3090 = vmatprep.subr.bf16.mxu0 0
    %3091 = vmatpush2.bf16.xpose.msra.mxu0 0
    %3092 = vmatprep.subr.bf16.mxu0 0
    %3093 = vmatpush2.bf16.xpose.msra.mxu0 0
    %3094 = vmatprep.subr.bf16.mxu0 0
    %3095 = vmatpush2.bf16.xpose.msra.mxu0 0
    %3096 = vmatprep.subr.bf16.mxu0 0
    %3097 = vmatpush2.bf16.xpose.msra.mxu0 0
    %3098 = vmatprep.mubr.bf16.mxu0 0
    %3099 = vmatmul.mubr.bf16.gmra.mxu0 %v3061
    %v3100 = vpop.f32.mrf.mxu0
    %v3101 = vadd.f32 0.0, %v3100
    %v3102 = vpop.f32.mrf.mxu0
    %v3103 = vpop.f32.mrf.mxu0
    %v3104 = vadd.f32 0.0, %v3103
    %v3105 = vpop.f32.mrf.mxu0
    %3106 = vdwg.mxu0
    %3107 = vrot.lane.b32.xlu0 %v527, 112
    %v3108 = vpop.permute.xlu0 %3107
    %3109 = vrot.lane.b32.xlu0 %v535, 112
    %v3110 = vpop.permute.xlu0 %3109
    %v3112 = vsel %vm544, %v3108, 0
    %v3115 = vsel %vm544, %v3110, 0
    %3117 = vmatprep.subr.bf16.mxu0 0
    %3118 = vmatpush1.bf16.xpose.msra.mxu0 0
    %3119 = vmatprep.subr.bf16.mxu0 0
    %3120 = vmatpush1.bf16.xpose.msra.mxu0 0
    %3121 = vmatprep.subr.bf16.mxu0 0
    %3122 = vmatpush1.bf16.xpose.msra.mxu0 0
    %3123 = vmatprep.subr.bf16.mxu0 0
    %3124 = vmatpush1.bf16.xpose.msra.mxu0 0
    %3125 = vmatprep.subr.bf16.mxu0 0
    %3126 = vmatpush1.bf16.xpose.msra.mxu0 0
    %3127 = vmatprep.subr.bf16.mxu0 0
    %3128 = vmatpush1.bf16.xpose.msra.mxu0 0
    %3129 = vmatprep.subr.bf16.mxu0 0
    %3130 = vmatpush1.bf16.xpose.msra.mxu0 0
    %3131 = vmatprep.subr.bf16.mxu0 0
    %3132 = vmatpush1.bf16.xpose.msra.mxu0 %v3115
    %3133 = vmatprep.subr.bf16.mxu0 0
    %3134 = vmatpush2.bf16.xpose.msra.mxu0 0
    %3135 = vmatprep.subr.bf16.mxu0 0
    %3136 = vmatpush2.bf16.xpose.msra.mxu0 0
    %3137 = vmatprep.subr.bf16.mxu0 0
    %3138 = vmatpush2.bf16.xpose.msra.mxu0 0
    %3139 = vmatprep.subr.bf16.mxu0 0
    %3140 = vmatpush2.bf16.xpose.msra.mxu0 0
    %3141 = vmatprep.subr.bf16.mxu0 0
    %3142 = vmatpush2.bf16.xpose.msra.mxu0 0
    %3143 = vmatprep.subr.bf16.mxu0 0
    %3144 = vmatpush2.bf16.xpose.msra.mxu0 0
    %3145 = vmatprep.subr.bf16.mxu0 0
    %3146 = vmatpush2.bf16.xpose.msra.mxu0 0
    %3147 = vmatprep.subr.bf16.mxu0 0
    %3148 = vmatpush2.bf16.xpose.msra.mxu0 0
    %3149 = vmatprep.mubr.bf16.mxu0 0
    %3150 = vmatmul.mubr.bf16.gmra.mxu0 %v3112
    %v3151 = vpop.f32.mrf.mxu0
    %v3152 = vadd.f32 0.0, %v3151
    %v3153 = vpop.f32.mrf.mxu0
    %v3154 = vpop.f32.mrf.mxu0
    %v3155 = vadd.f32 0.0, %v3154
    %v3156 = vpop.f32.mrf.mxu0
    %3157 = vdwg.mxu0
    %v3158 = vmul.f32 %v2795, 0.35355338
    %v3159 = vmul.f32 %v2798, 0.35355338
    %v3160 = vmul.f32 %v2846, 0.35355338
    %v3161 = vmul.f32 %v2849, 0.35355338
    %v3162 = vmul.f32 %v2897, 0.35355338
    %v3163 = vmul.f32 %v2900, 0.35355338
    %v3164 = vmul.f32 %v2948, 0.35355338
    %v3165 = vmul.f32 %v2951, 0.35355338
    %v3166 = vmul.f32 %v2999, 0.35355338
    %v3167 = vmul.f32 %v3002, 0.35355338
    %v3168 = vmul.f32 %v3050, 0.35355338
    %v3169 = vmul.f32 %v3053, 0.35355338
    %v3170 = vmul.f32 %v3101, 0.35355338
    %v3171 = vmul.f32 %v3104, 0.35355338
    %v3172 = vmul.f32 %v3152, 0.35355338
    %v3173 = vmul.f32 %v3155, 0.35355338
    %v3174 = vsel %vm937, %v3158, -inf
    %3175 = vmax.xlane.f32.xlu0 %v3174
    %v3176 = vpop.xlane.xlu0 %3175
    %v3177 = vsel %vm937, %v3159, -inf
    %3178 = vmax.xlane.f32.xlu0 %v3177
    %v3179 = vpop.xlane.xlu0 %3178
    %v3180 = vsel %vm937, %v3160, -inf
    %3181 = vmax.xlane.f32.xlu0 %v3180
    %v3182 = vpop.xlane.xlu0 %3181
    %v3183 = vsel %vm937, %v3161, -inf
    %3184 = vmax.xlane.f32.xlu0 %v3183
    %v3185 = vpop.xlane.xlu0 %3184
    %v3186 = vsel %vm937, %v3162, -inf
    %3187 = vmax.xlane.f32.xlu0 %v3186
    %v3188 = vpop.xlane.xlu0 %3187
    %v3189 = vsel %vm937, %v3163, -inf
    %3190 = vmax.xlane.f32.xlu0 %v3189
    %v3191 = vpop.xlane.xlu0 %3190
    %v3192 = vsel %vm937, %v3164, -inf
    %3193 = vmax.xlane.f32.xlu0 %v3192
    %v3194 = vpop.xlane.xlu0 %3193
    %v3195 = vsel %vm937, %v3165, -inf
    %3196 = vmax.xlane.f32.xlu0 %v3195
    %v3197 = vpop.xlane.xlu0 %3196
    %v3198 = vsel %vm937, %v3166, -inf
    %3199 = vmax.xlane.f32.xlu0 %v3198
    %v3200 = vpop.xlane.xlu0 %3199
    %v3201 = vsel %vm937, %v3167, -inf
    %3202 = vmax.xlane.f32.xlu0 %v3201
    %v3203 = vpop.xlane.xlu0 %3202
    %v3204 = vsel %vm937, %v3168, -inf
    %3205 = vmax.xlane.f32.xlu0 %v3204
    %v3206 = vpop.xlane.xlu0 %3205
    %v3207 = vsel %vm937, %v3169, -inf
    %3208 = vmax.xlane.f32.xlu0 %v3207
    %v3209 = vpop.xlane.xlu0 %3208
    %v3210 = vsel %vm937, %v3170, -inf
    %3211 = vmax.xlane.f32.xlu0 %v3210
    %v3212 = vpop.xlane.xlu0 %3211
    %v3213 = vsel %vm937, %v3171, -inf
    %3214 = vmax.xlane.f32.xlu0 %v3213
    %v3215 = vpop.xlane.xlu0 %3214
    %v3216 = vsel %vm937, %v3172, -inf
    %3217 = vmax.xlane.f32.xlu0 %v3216
    %v3218 = vpop.xlane.xlu0 %3217
    %v3219 = vsel %vm937, %v3173, -inf
    %3220 = vmax.xlane.f32.xlu0 %v3219
    %v3221 = vpop.xlane.xlu0 %3220
    %v3222 = vsub.f32 %v3158, %v3176
    %v3223 = vsub.f32 %v3159, %v3179
    %v3224 = vsub.f32 %v3160, %v3182
    %v3225 = vsub.f32 %v3161, %v3185
    %v3226 = vsub.f32 %v3162, %v3188
    %v3227 = vsub.f32 %v3163, %v3191
    %v3228 = vsub.f32 %v3164, %v3194
    %v3229 = vsub.f32 %v3165, %v3197
    %v3230 = vsub.f32 %v3166, %v3200
    %v3231 = vsub.f32 %v3167, %v3203
    %v3232 = vsub.f32 %v3168, %v3206
    %v3233 = vsub.f32 %v3169, %v3209
    %v3234 = vsub.f32 %v3170, %v3212
    %v3235 = vsub.f32 %v3171, %v3215
    %v3236 = vsub.f32 %v3172, %v3218
    %v3237 = vsub.f32 %v3173, %v3221
    %v3238 = vmul.f32 %v3222, 1.442695
    %v3239 = vpow.pop %v3238
    %v3240 = vmul.f32 %v3223, 1.442695
    %v3241 = vpow.pop %v3240
    %v3242 = vmul.f32 %v3224, 1.442695
    %v3243 = vpow.pop %v3242
    %v3244 = vmul.f32 %v3225, 1.442695
    %v3245 = vpow.pop %v3244
    %v3246 = vmul.f32 %v3226, 1.442695
    %v3247 = vpow.pop %v3246
    %v3248 = vmul.f32 %v3227, 1.442695
    %v3249 = vpow.pop %v3248
    %v3250 = vmul.f32 %v3228, 1.442695
    %v3251 = vpow.pop %v3250
    %v3252 = vmul.f32 %v3229, 1.442695
    %v3253 = vpow.pop %v3252
    %v3254 = vmul.f32 %v3230, 1.442695
    %v3255 = vpow.pop %v3254
    %v3256 = vmul.f32 %v3231, 1.442695
    %v3257 = vpow.pop %v3256
    %v3258 = vmul.f32 %v3232, 1.442695
    %v3259 = vpow.pop %v3258
    %v3260 = vmul.f32 %v3233, 1.442695
    %v3261 = vpow.pop %v3260
    %v3262 = vmul.f32 %v3234, 1.442695
    %v3263 = vpow.pop %v3262
    %v3264 = vmul.f32 %v3235, 1.442695
    %v3265 = vpow.pop %v3264
    %v3266 = vmul.f32 %v3236, 1.442695
    %v3267 = vpow.pop %v3266
    %v3268 = vmul.f32 %v3237, 1.442695
    %v3269 = vpow.pop %v3268
    %v3270 = vsel %vm937, %v3239, 0.0
    %3271 = vadd.xlane.f32.xlu0 %v3270
    %v3272 = vpop.xlane.xlu0 %3271
    %v3273 = vsel %vm937, %v3241, 0.0
    %3274 = vadd.xlane.f32.xlu0 %v3273
    %v3275 = vpop.xlane.xlu0 %3274
    %v3276 = vsel %vm937, %v3243, 0.0
    %3277 = vadd.xlane.f32.xlu0 %v3276
    %v3278 = vpop.xlane.xlu0 %3277
    %v3279 = vsel %vm937, %v3245, 0.0
    %3280 = vadd.xlane.f32.xlu0 %v3279
    %v3281 = vpop.xlane.xlu0 %3280
    %v3282 = vsel %vm937, %v3247, 0.0
    %3283 = vadd.xlane.f32.xlu0 %v3282
    %v3284 = vpop.xlane.xlu0 %3283
    %v3285 = vsel %vm937, %v3249, 0.0
    %3286 = vadd.xlane.f32.xlu0 %v3285
    %v3287 = vpop.xlane.xlu0 %3286
    %v3288 = vsel %vm937, %v3251, 0.0
    %3289 = vadd.xlane.f32.xlu0 %v3288
    %v3290 = vpop.xlane.xlu0 %3289
    %v3291 = vsel %vm937, %v3253, 0.0
    %3292 = vadd.xlane.f32.xlu0 %v3291
    %v3293 = vpop.xlane.xlu0 %3292
    %v3294 = vsel %vm937, %v3255, 0.0
    %3295 = vadd.xlane.f32.xlu0 %v3294
    %v3296 = vpop.xlane.xlu0 %3295
    %v3297 = vsel %vm937, %v3257, 0.0
    %3298 = vadd.xlane.f32.xlu0 %v3297
    %v3299 = vpop.xlane.xlu0 %3298
    %v3300 = vsel %vm937, %v3259, 0.0
    %3301 = vadd.xlane.f32.xlu0 %v3300
    %v3302 = vpop.xlane.xlu0 %3301
    %v3303 = vsel %vm937, %v3261, 0.0
    %3304 = vadd.xlane.f32.xlu0 %v3303
    %v3305 = vpop.xlane.xlu0 %3304
    %v3306 = vsel %vm937, %v3263, 0.0
    %3307 = vadd.xlane.f32.xlu0 %v3306
    %v3308 = vpop.xlane.xlu0 %3307
    %v3309 = vsel %vm937, %v3265, 0.0
    %3310 = vadd.xlane.f32.xlu0 %v3309
    %v3311 = vpop.xlane.xlu0 %3310
    %v3312 = vsel %vm937, %v3267, 0.0
    %3313 = vadd.xlane.f32.xlu0 %v3312
    %v3314 = vpop.xlane.xlu0 %3313
    %v3315 = vsel %vm937, %v3269, 0.0
    %3316 = vadd.xlane.f32.xlu0 %v3315
    %v3317 = vpop.xlane.xlu0 %3316
    %v3318 = vrcp.pop %v3272
    %v3319 = vrcp.pop %v3275
    %v3320 = vrcp.pop %v3278
    %v3321 = vrcp.pop %v3281
    %v3322 = vrcp.pop %v3284
    %v3323 = vrcp.pop %v3287
    %v3324 = vrcp.pop %v3290
    %v3325 = vrcp.pop %v3293
    %v3326 = vrcp.pop %v3296
    %v3327 = vrcp.pop %v3299
    %v3328 = vrcp.pop %v3302
    %v3329 = vrcp.pop %v3305
    %v3330 = vrcp.pop %v3308
    %v3331 = vrcp.pop %v3311
    %v3332 = vrcp.pop %v3314
    %v3333 = vrcp.pop %v3317
    %v3334 = vmul.f32 %v3239, %v3318
    %v3335 = vmul.f32 %v3241, %v3319
    %v3336 = vmul.f32 %v3243, %v3320
    %v3337 = vmul.f32 %v3245, %v3321
    %v3338 = vmul.f32 %v3247, %v3322
    %v3339 = vmul.f32 %v3249, %v3323
    %v3340 = vmul.f32 %v3251, %v3324
    %v3341 = vmul.f32 %v3253, %v3325
    %v3342 = vmul.f32 %v3255, %v3326
    %v3343 = vmul.f32 %v3257, %v3327
    %v3344 = vmul.f32 %v3259, %v3328
    %v3345 = vmul.f32 %v3261, %v3329
    %v3346 = vmul.f32 %v3263, %v3330
    %v3347 = vmul.f32 %v3265, %v3331
    %v3348 = vmul.f32 %v3267, %v3332
    %v3349 = vmul.f32 %v3269, %v3333
    %v3350 = vpack.c.bf16 %v3335, %v3334
    %v3351 = vpack.c.bf16 %v3337, %v3336
    %v3352 = vpack.c.bf16 %v3339, %v3338
    %v3353 = vpack.c.bf16 %v3341, %v3340
    %v3354 = vpack.c.bf16 %v3343, %v3342
    %v3355 = vpack.c.bf16 %v3345, %v3344
    %v3356 = vpack.c.bf16 %v3347, %v3346
    %v3357 = vpack.c.bf16 %v3349, %v3348
    %3358 = vrot.lane.b32.xlu0 %v536, 112
    %v3359 = vpop.permute.xlu0 %3358
    %v3362 = vsel %vm937, %v3350, 0
    %3364 = vmatprep.subr.bf16.mxu0 0
    %3365 = vmatpush1.bf16.msra.mxu0 0
    %3366 = vmatprep.subr.bf16.mxu0 0
    %3367 = vmatpush1.bf16.msra.mxu0 0
    %3368 = vmatprep.subr.bf16.mxu0 0
    %3369 = vmatpush1.bf16.msra.mxu0 0
    %3370 = vmatprep.subr.bf16.mxu0 0
    %3371 = vmatpush1.bf16.msra.mxu0 0
    %3372 = vmatprep.subr.bf16.mxu0 0
    %3373 = vmatpush1.bf16.msra.mxu0 0
    %3374 = vmatprep.subr.bf16.mxu0 0
    %3375 = vmatpush1.bf16.msra.mxu0 0
    %3376 = vmatprep.subr.bf16.mxu0 0
    %3377 = vmatpush1.bf16.msra.mxu0 0
    %3378 = vmatprep.subr.bf16.mxu0 0
    %3379 = vmatpush1.bf16.msra.mxu0 %v3359
    %3380 = vmatprep.subr.bf16.mxu0 0
    %3381 = vmatpush2.bf16.msra.mxu0 0
    %3382 = vmatprep.subr.bf16.mxu0 0
    %3383 = vmatpush2.bf16.msra.mxu0 0
    %3384 = vmatprep.subr.bf16.mxu0 0
    %3385 = vmatpush2.bf16.msra.mxu0 0
    %3386 = vmatprep.subr.bf16.mxu0 0
    %3387 = vmatpush2.bf16.msra.mxu0 0
    %3388 = vmatprep.subr.bf16.mxu0 0
    %3389 = vmatpush2.bf16.msra.mxu0 0
    %3390 = vmatprep.subr.bf16.mxu0 0
    %3391 = vmatpush2.bf16.msra.mxu0 0
    %3392 = vmatprep.subr.bf16.mxu0 0
    %3393 = vmatpush2.bf16.msra.mxu0 0
    %3394 = vmatprep.subr.bf16.mxu0 0
    %3395 = vmatpush2.bf16.msra.mxu0 0
    %3396 = vmatprep.mubr.bf16.mxu0 0
    %3397 = vmatmul.mubr.bf16.gmra.mxu0 %v3362
    %v3398 = vpop.f32.mrf.mxu0
    %v3399 = vadd.f32 0.0, %v3398
    %v3400 = vpop.f32.mrf.mxu0
    %v3401 = vpop.f32.mrf.mxu0
    %v3402 = vadd.f32 0.0, %v3401
    %v3403 = vpop.f32.mrf.mxu0
    %3404 = vdwg.mxu0
    %3405 = vrot.lane.b32.xlu0 %v537, 112
    %v3406 = vpop.permute.xlu0 %3405
    %v3409 = vsel %vm937, %v3351, 0
    %3411 = vmatprep.subr.bf16.mxu0 0
    %3412 = vmatpush1.bf16.msra.mxu0 0
    %3413 = vmatprep.subr.bf16.mxu0 0
    %3414 = vmatpush1.bf16.msra.mxu0 0
    %3415 = vmatprep.subr.bf16.mxu0 0
    %3416 = vmatpush1.bf16.msra.mxu0 0
    %3417 = vmatprep.subr.bf16.mxu0 0
    %3418 = vmatpush1.bf16.msra.mxu0 0
    %3419 = vmatprep.subr.bf16.mxu0 0
    %3420 = vmatpush1.bf16.msra.mxu0 0
    %3421 = vmatprep.subr.bf16.mxu0 0
    %3422 = vmatpush1.bf16.msra.mxu0 0
    %3423 = vmatprep.subr.bf16.mxu0 0
    %3424 = vmatpush1.bf16.msra.mxu0 0
    %3425 = vmatprep.subr.bf16.mxu0 0
    %3426 = vmatpush1.bf16.msra.mxu0 %v3406
    %3427 = vmatprep.subr.bf16.mxu0 0
    %3428 = vmatpush2.bf16.msra.mxu0 0
    %3429 = vmatprep.subr.bf16.mxu0 0
    %3430 = vmatpush2.bf16.msra.mxu0 0
    %3431 = vmatprep.subr.bf16.mxu0 0
    %3432 = vmatpush2.bf16.msra.mxu0 0
    %3433 = vmatprep.subr.bf16.mxu0 0
    %3434 = vmatpush2.bf16.msra.mxu0 0
    %3435 = vmatprep.subr.bf16.mxu0 0
    %3436 = vmatpush2.bf16.msra.mxu0 0
    %3437 = vmatprep.subr.bf16.mxu0 0
    %3438 = vmatpush2.bf16.msra.mxu0 0
    %3439 = vmatprep.subr.bf16.mxu0 0
    %3440 = vmatpush2.bf16.msra.mxu0 0
    %3441 = vmatprep.subr.bf16.mxu0 0
    %3442 = vmatpush2.bf16.msra.mxu0 0
    %3443 = vmatprep.mubr.bf16.mxu0 0
    %3444 = vmatmul.mubr.bf16.gmra.mxu0 %v3409
    %v3445 = vpop.f32.mrf.mxu0
    %v3446 = vadd.f32 0.0, %v3445
    %v3447 = vpop.f32.mrf.mxu0
    %v3448 = vpop.f32.mrf.mxu0
    %v3449 = vadd.f32 0.0, %v3448
    %v3450 = vpop.f32.mrf.mxu0
    %3451 = vdwg.mxu0
    %3452 = vrot.lane.b32.xlu0 %v538, 112
    %v3453 = vpop.permute.xlu0 %3452
    %v3456 = vsel %vm937, %v3352, 0
    %3458 = vmatprep.subr.bf16.mxu0 0
    %3459 = vmatpush1.bf16.msra.mxu0 0
    %3460 = vmatprep.subr.bf16.mxu0 0
    %3461 = vmatpush1.bf16.msra.mxu0 0
    %3462 = vmatprep.subr.bf16.mxu0 0
    %3463 = vmatpush1.bf16.msra.mxu0 0
    %3464 = vmatprep.subr.bf16.mxu0 0
    %3465 = vmatpush1.bf16.msra.mxu0 0
    %3466 = vmatprep.subr.bf16.mxu0 0
    %3467 = vmatpush1.bf16.msra.mxu0 0
    %3468 = vmatprep.subr.bf16.mxu0 0
    %3469 = vmatpush1.bf16.msra.mxu0 0
    %3470 = vmatprep.subr.bf16.mxu0 0
    %3471 = vmatpush1.bf16.msra.mxu0 0
    %3472 = vmatprep.subr.bf16.mxu0 0
    %3473 = vmatpush1.bf16.msra.mxu0 %v3453
    %3474 = vmatprep.subr.bf16.mxu0 0
    %3475 = vmatpush2.bf16.msra.mxu0 0
    %3476 = vmatprep.subr.bf16.mxu0 0
    %3477 = vmatpush2.bf16.msra.mxu0 0
    %3478 = vmatprep.subr.bf16.mxu0 0
    %3479 = vmatpush2.bf16.msra.mxu0 0
    %3480 = vmatprep.subr.bf16.mxu0 0
    %3481 = vmatpush2.bf16.msra.mxu0 0
    %3482 = vmatprep.subr.bf16.mxu0 0
    %3483 = vmatpush2.bf16.msra.mxu0 0
    %3484 = vmatprep.subr.bf16.mxu0 0
    %3485 = vmatpush2.bf16.msra.mxu0 0
    %3486 = vmatprep.subr.bf16.mxu0 0
    %3487 = vmatpush2.bf16.msra.mxu0 0
    %3488 = vmatprep.subr.bf16.mxu0 0
    %3489 = vmatpush2.bf16.msra.mxu0 0
    %3490 = vmatprep.mubr.bf16.mxu0 0
    %3491 = vmatmul.mubr.bf16.gmra.mxu0 %v3456
    %v3492 = vpop.f32.mrf.mxu0
    %v3493 = vadd.f32 0.0, %v3492
    %v3494 = vpop.f32.mrf.mxu0
    %v3495 = vpop.f32.mrf.mxu0
    %v3496 = vadd.f32 0.0, %v3495
    %v3497 = vpop.f32.mrf.mxu0
    %3498 = vdwg.mxu0
    %3499 = vrot.lane.b32.xlu0 %v539, 112
    %v3500 = vpop.permute.xlu0 %3499
    %v3503 = vsel %vm937, %v3353, 0
    %3505 = vmatprep.subr.bf16.mxu0 0
    %3506 = vmatpush1.bf16.msra.mxu0 0
    %3507 = vmatprep.subr.bf16.mxu0 0
    %3508 = vmatpush1.bf16.msra.mxu0 0
    %3509 = vmatprep.subr.bf16.mxu0 0
    %3510 = vmatpush1.bf16.msra.mxu0 0
    %3511 = vmatprep.subr.bf16.mxu0 0
    %3512 = vmatpush1.bf16.msra.mxu0 0
    %3513 = vmatprep.subr.bf16.mxu0 0
    %3514 = vmatpush1.bf16.msra.mxu0 0
    %3515 = vmatprep.subr.bf16.mxu0 0
    %3516 = vmatpush1.bf16.msra.mxu0 0
    %3517 = vmatprep.subr.bf16.mxu0 0
    %3518 = vmatpush1.bf16.msra.mxu0 0
    %3519 = vmatprep.subr.bf16.mxu0 0
    %3520 = vmatpush1.bf16.msra.mxu0 %v3500
    %3521 = vmatprep.subr.bf16.mxu0 0
    %3522 = vmatpush2.bf16.msra.mxu0 0
    %3523 = vmatprep.subr.bf16.mxu0 0
    %3524 = vmatpush2.bf16.msra.mxu0 0
    %3525 = vmatprep.subr.bf16.mxu0 0
    %3526 = vmatpush2.bf16.msra.mxu0 0
    %3527 = vmatprep.subr.bf16.mxu0 0
    %3528 = vmatpush2.bf16.msra.mxu0 0
    %3529 = vmatprep.subr.bf16.mxu0 0
    %3530 = vmatpush2.bf16.msra.mxu0 0
    %3531 = vmatprep.subr.bf16.mxu0 0
    %3532 = vmatpush2.bf16.msra.mxu0 0
    %3533 = vmatprep.subr.bf16.mxu0 0
    %3534 = vmatpush2.bf16.msra.mxu0 0
    %3535 = vmatprep.subr.bf16.mxu0 0
    %3536 = vmatpush2.bf16.msra.mxu0 0
    %3537 = vmatprep.mubr.bf16.mxu0 0
    %3538 = vmatmul.mubr.bf16.gmra.mxu0 %v3503
    %v3539 = vpop.f32.mrf.mxu0
    %v3540 = vadd.f32 0.0, %v3539
    %v3541 = vpop.f32.mrf.mxu0
    %v3542 = vpop.f32.mrf.mxu0
    %v3543 = vadd.f32 0.0, %v3542
    %v3544 = vpop.f32.mrf.mxu0
    %3545 = vdwg.mxu0
    %3546 = vrot.lane.b32.xlu0 %v540, 112
    %v3547 = vpop.permute.xlu0 %3546
    %v3550 = vsel %vm937, %v3354, 0
    %3552 = vmatprep.subr.bf16.mxu0 0
    %3553 = vmatpush1.bf16.msra.mxu0 0
    %3554 = vmatprep.subr.bf16.mxu0 0
    %3555 = vmatpush1.bf16.msra.mxu0 0
    %3556 = vmatprep.subr.bf16.mxu0 0
    %3557 = vmatpush1.bf16.msra.mxu0 0
    %3558 = vmatprep.subr.bf16.mxu0 0
    %3559 = vmatpush1.bf16.msra.mxu0 0
    %3560 = vmatprep.subr.bf16.mxu0 0
    %3561 = vmatpush1.bf16.msra.mxu0 0
    %3562 = vmatprep.subr.bf16.mxu0 0
    %3563 = vmatpush1.bf16.msra.mxu0 0
    %3564 = vmatprep.subr.bf16.mxu0 0
    %3565 = vmatpush1.bf16.msra.mxu0 0
    %3566 = vmatprep.subr.bf16.mxu0 0
    %3567 = vmatpush1.bf16.msra.mxu0 %v3547
    %3568 = vmatprep.subr.bf16.mxu0 0
    %3569 = vmatpush2.bf16.msra.mxu0 0
    %3570 = vmatprep.subr.bf16.mxu0 0
    %3571 = vmatpush2.bf16.msra.mxu0 0
    %3572 = vmatprep.subr.bf16.mxu0 0
    %3573 = vmatpush2.bf16.msra.mxu0 0
    %3574 = vmatprep.subr.bf16.mxu0 0
    %3575 = vmatpush2.bf16.msra.mxu0 0
    %3576 = vmatprep.subr.bf16.mxu0 0
    %3577 = vmatpush2.bf16.msra.mxu0 0
    %3578 = vmatprep.subr.bf16.mxu0 0
    %3579 = vmatpush2.bf16.msra.mxu0 0
    %3580 = vmatprep.subr.bf16.mxu0 0
    %3581 = vmatpush2.bf16.msra.mxu0 0
    %3582 = vmatprep.subr.bf16.mxu0 0
    %3583 = vmatpush2.bf16.msra.mxu0 0
    %3584 = vmatprep.mubr.bf16.mxu0 0
    %3585 = vmatmul.mubr.bf16.gmra.mxu0 %v3550
    %v3586 = vpop.f32.mrf.mxu0
    %v3587 = vadd.f32 0.0, %v3586
    %v3588 = vpop.f32.mrf.mxu0
    %v3589 = vpop.f32.mrf.mxu0
    %v3590 = vadd.f32 0.0, %v3589
    %v3591 = vpop.f32.mrf.mxu0
    %3592 = vdwg.mxu0
    %3593 = vrot.lane.b32.xlu0 %v541, 112
    %v3594 = vpop.permute.xlu0 %3593
    %v3597 = vsel %vm937, %v3355, 0
    %3599 = vmatprep.subr.bf16.mxu0 0
    %3600 = vmatpush1.bf16.msra.mxu0 0
    %3601 = vmatprep.subr.bf16.mxu0 0
    %3602 = vmatpush1.bf16.msra.mxu0 0
    %3603 = vmatprep.subr.bf16.mxu0 0
    %3604 = vmatpush1.bf16.msra.mxu0 0
    %3605 = vmatprep.subr.bf16.mxu0 0
    %3606 = vmatpush1.bf16.msra.mxu0 0
    %3607 = vmatprep.subr.bf16.mxu0 0
    %3608 = vmatpush1.bf16.msra.mxu0 0
    %3609 = vmatprep.subr.bf16.mxu0 0
    %3610 = vmatpush1.bf16.msra.mxu0 0
    %3611 = vmatprep.subr.bf16.mxu0 0
    %3612 = vmatpush1.bf16.msra.mxu0 0
    %3613 = vmatprep.subr.bf16.mxu0 0
    %3614 = vmatpush1.bf16.msra.mxu0 %v3594
    %3615 = vmatprep.subr.bf16.mxu0 0
    %3616 = vmatpush2.bf16.msra.mxu0 0
    %3617 = vmatprep.subr.bf16.mxu0 0
    %3618 = vmatpush2.bf16.msra.mxu0 0
    %3619 = vmatprep.subr.bf16.mxu0 0
    %3620 = vmatpush2.bf16.msra.mxu0 0
    %3621 = vmatprep.subr.bf16.mxu0 0
    %3622 = vmatpush2.bf16.msra.mxu0 0
    %3623 = vmatprep.subr.bf16.mxu0 0
    %3624 = vmatpush2.bf16.msra.mxu0 0
    %3625 = vmatprep.subr.bf16.mxu0 0
    %3626 = vmatpush2.bf16.msra.mxu0 0
    %3627 = vmatprep.subr.bf16.mxu0 0
    %3628 = vmatpush2.bf16.msra.mxu0 0
    %3629 = vmatprep.subr.bf16.mxu0 0
    %3630 = vmatpush2.bf16.msra.mxu0 0
    %3631 = vmatprep.mubr.bf16.mxu0 0
    %3632 = vmatmul.mubr.bf16.gmra.mxu0 %v3597
    %v3633 = vpop.f32.mrf.mxu0
    %v3634 = vadd.f32 0.0, %v3633
    %v3635 = vpop.f32.mrf.mxu0
    %v3636 = vpop.f32.mrf.mxu0
    %v3637 = vadd.f32 0.0, %v3636
    %v3638 = vpop.f32.mrf.mxu0
    %3639 = vdwg.mxu0
    %3640 = vrot.lane.b32.xlu0 %v542, 112
    %v3641 = vpop.permute.xlu0 %3640
    %v3644 = vsel %vm937, %v3356, 0
    %3646 = vmatprep.subr.bf16.mxu0 0
    %3647 = vmatpush1.bf16.msra.mxu0 0
    %3648 = vmatprep.subr.bf16.mxu0 0
    %3649 = vmatpush1.bf16.msra.mxu0 0
    %3650 = vmatprep.subr.bf16.mxu0 0
    %3651 = vmatpush1.bf16.msra.mxu0 0
    %3652 = vmatprep.subr.bf16.mxu0 0
    %3653 = vmatpush1.bf16.msra.mxu0 0
    %3654 = vmatprep.subr.bf16.mxu0 0
    %3655 = vmatpush1.bf16.msra.mxu0 0
    %3656 = vmatprep.subr.bf16.mxu0 0
    %3657 = vmatpush1.bf16.msra.mxu0 0
    %3658 = vmatprep.subr.bf16.mxu0 0
    %3659 = vmatpush1.bf16.msra.mxu0 0
    %3660 = vmatprep.subr.bf16.mxu0 0
    %3661 = vmatpush1.bf16.msra.mxu0 %v3641
    %3662 = vmatprep.subr.bf16.mxu0 0
    %3663 = vmatpush2.bf16.msra.mxu0 0
    %3664 = vmatprep.subr.bf16.mxu0 0
    %3665 = vmatpush2.bf16.msra.mxu0 0
    %3666 = vmatprep.subr.bf16.mxu0 0
    %3667 = vmatpush2.bf16.msra.mxu0 0
    %3668 = vmatprep.subr.bf16.mxu0 0
    %3669 = vmatpush2.bf16.msra.mxu0 0
    %3670 = vmatprep.subr.bf16.mxu0 0
    %3671 = vmatpush2.bf16.msra.mxu0 0
    %3672 = vmatprep.subr.bf16.mxu0 0
    %3673 = vmatpush2.bf16.msra.mxu0 0
    %3674 = vmatprep.subr.bf16.mxu0 0
    %3675 = vmatpush2.bf16.msra.mxu0 0
    %3676 = vmatprep.subr.bf16.mxu0 0
    %3677 = vmatpush2.bf16.msra.mxu0 0
    %3678 = vmatprep.mubr.bf16.mxu0 0
    %3679 = vmatmul.mubr.bf16.gmra.mxu0 %v3644
    %v3680 = vpop.f32.mrf.mxu0
    %v3681 = vadd.f32 0.0, %v3680
    %v3682 = vpop.f32.mrf.mxu0
    %v3683 = vpop.f32.mrf.mxu0
    %v3684 = vadd.f32 0.0, %v3683
    %v3685 = vpop.f32.mrf.mxu0
    %3686 = vdwg.mxu0
    %3687 = vrot.lane.b32.xlu0 %v543, 112
    %v3688 = vpop.permute.xlu0 %3687
    %v3691 = vsel %vm937, %v3357, 0
    %3693 = vmatprep.subr.bf16.mxu0 0
    %3694 = vmatpush1.bf16.msra.mxu0 0
    %3695 = vmatprep.subr.bf16.mxu0 0
    %3696 = vmatpush1.bf16.msra.mxu0 0
    %3697 = vmatprep.subr.bf16.mxu0 0
    %3698 = vmatpush1.bf16.msra.mxu0 0
    %3699 = vmatprep.subr.bf16.mxu0 0
    %3700 = vmatpush1.bf16.msra.mxu0 0
    %3701 = vmatprep.subr.bf16.mxu0 0
    %3702 = vmatpush1.bf16.msra.mxu0 0
    %3703 = vmatprep.subr.bf16.mxu0 0
    %3704 = vmatpush1.bf16.msra.mxu0 0
    %3705 = vmatprep.subr.bf16.mxu0 0
    %3706 = vmatpush1.bf16.msra.mxu0 0
    %3707 = vmatprep.subr.bf16.mxu0 0
    %3708 = vmatpush1.bf16.msra.mxu0 %v3688
    %3709 = vmatprep.subr.bf16.mxu0 0
    %3710 = vmatpush2.bf16.msra.mxu0 0
    %3711 = vmatprep.subr.bf16.mxu0 0
    %3712 = vmatpush2.bf16.msra.mxu0 0
    %3713 = vmatprep.subr.bf16.mxu0 0
    %3714 = vmatpush2.bf16.msra.mxu0 0
    %3715 = vmatprep.subr.bf16.mxu0 0
    %3716 = vmatpush2.bf16.msra.mxu0 0
    %3717 = vmatprep.subr.bf16.mxu0 0
    %3718 = vmatpush2.bf16.msra.mxu0 0
    %3719 = vmatprep.subr.bf16.mxu0 0
    %3720 = vmatpush2.bf16.msra.mxu0 0
    %3721 = vmatprep.subr.bf16.mxu0 0
    %3722 = vmatpush2.bf16.msra.mxu0 0
    %3723 = vmatprep.subr.bf16.mxu0 0
    %3724 = vmatpush2.bf16.msra.mxu0 0
    %3725 = vmatprep.mubr.bf16.mxu0 0
    %3726 = vmatmul.mubr.bf16.gmra.mxu0 %v3691
    %v3727 = vpop.f32.mrf.mxu0
    %v3728 = vadd.f32 0.0, %v3727
    %v3729 = vpop.f32.mrf.mxu0
    %v3730 = vpop.f32.mrf.mxu0
    %v3731 = vadd.f32 0.0, %v3730
    %v3732 = vpop.f32.mrf.mxu0
    %3733 = vdwg.mxu0
    %v3734 = vpack.c.bf16 %v3402, %v3399
    %v3735 = vpack.c.bf16 %v3449, %v3446
    %v3736 = vpack.c.bf16 %v3496, %v3493
    %v3737 = vpack.c.bf16 %v3543, %v3540
    %v3738 = vpack.c.bf16 %v3590, %v3587
    %v3739 = vpack.c.bf16 %v3637, %v3634
    %v3740 = vpack.c.bf16 %v3684, %v3681
    %v3741 = vpack.c.bf16 %v3731, %v3728
    %s3742 = scalar_lea.vmem [#allocation5], 8
    %v3743 = vld [vmem:[%s3742] sm:$0xf]
    %v3745 = vsel %vm544, %v3734, 0
    %v3748 = vsel %vm544, %v3735, 0
    %v3751 = vsel %vm544, %v3736, 0
    %v3754 = vsel %vm544, %v3737, 0
    %v3757 = vsel %vm544, %v3738, 0
    %v3760 = vsel %vm544, %v3739, 0
    %v3763 = vsel %vm544, %v3740, 0
    %v3766 = vsel %vm544, %v3741, 0
    %v3769 = vsel %vm2525, %v3743, 0
    %3771 = vmatprep.subr.bf16.mxu0 0
    %3772 = vmatpush1.bf16.msra.mxu0 0
    %3773 = vmatprep.subr.bf16.mxu0 0
    %3774 = vmatpush1.bf16.msra.mxu0 0
    %3775 = vmatprep.subr.bf16.mxu0 0
    %3776 = vmatpush1.bf16.msra.mxu0 0
    %3777 = vmatprep.subr.bf16.mxu0 0
    %3778 = vmatpush1.bf16.msra.mxu0 0
    %3779 = vmatprep.subr.bf16.mxu0 0
    %3780 = vmatpush1.bf16.msra.mxu0 0
    %3781 = vmatprep.subr.bf16.mxu0 0
    %3782 = vmatpush1.bf16.msra.mxu0 0
    %3783 = vmatprep.subr.bf16.mxu0 0
    %3784 = vmatpush1.bf16.msra.mxu0 0
    %3785 = vmatprep.subr.bf16.mxu0 0
    %3786 = vmatpush1.bf16.msra.mxu0 %v3769
    %3787 = vmatprep.subr.bf16.mxu0 0
    %3788 = vmatpush2.bf16.msra.mxu0 0
    %3789 = vmatprep.subr.bf16.mxu0 0
    %3790 = vmatpush2.bf16.msra.mxu0 0
    %3791 = vmatprep.subr.bf16.mxu0 0
    %3792 = vmatpush2.bf16.msra.mxu0 0
    %3793 = vmatprep.subr.bf16.mxu0 0
    %3794 = vmatpush2.bf16.msra.mxu0 0
    %3795 = vmatprep.subr.bf16.mxu0 0
    %3796 = vmatpush2.bf16.msra.mxu0 0
    %3797 = vmatprep.subr.bf16.mxu0 0
    %3798 = vmatpush2.bf16.msra.mxu0 0
    %3799 = vmatprep.subr.bf16.mxu0 0
    %3800 = vmatpush2.bf16.msra.mxu0 0
    %3801 = vmatprep.subr.bf16.mxu0 0
    %3802 = vmatpush2.bf16.msra.mxu0 0
    %3803 = vmatprep.mubr.bf16.mxu0 0
    %3804 = vmatmul.mubr.bf16.gmra.mxu0 %v3745
    %v3805 = vpop.f32.mrf.mxu0
    %v3806 = vadd.f32 0.0, %v3805
    %v3807 = vpop.f32.mrf.mxu0
    %v3808 = vpop.f32.mrf.mxu0
    %v3809 = vadd.f32 0.0, %v3808
    %v3810 = vpop.f32.mrf.mxu0
    %3811 = vmatprep.mubr.bf16.mxu0 0
    %3812 = vmatmul.mubr.bf16.gmra.mxu0 %v3748
    %v3813 = vpop.f32.mrf.mxu0
    %v3814 = vadd.f32 0.0, %v3813
    %v3815 = vpop.f32.mrf.mxu0
    %v3816 = vpop.f32.mrf.mxu0
    %v3817 = vadd.f32 0.0, %v3816
    %v3818 = vpop.f32.mrf.mxu0
    %3819 = vmatprep.mubr.bf16.mxu0 0
    %3820 = vmatmul.mubr.bf16.gmra.mxu0 %v3751
    %v3821 = vpop.f32.mrf.mxu0
    %v3822 = vadd.f32 0.0, %v3821
    %v3823 = vpop.f32.mrf.mxu0
    %v3824 = vpop.f32.mrf.mxu0
    %v3825 = vadd.f32 0.0, %v3824
    %v3826 = vpop.f32.mrf.mxu0
    %3827 = vmatprep.mubr.bf16.mxu0 0
    %3828 = vmatmul.mubr.bf16.gmra.mxu0 %v3754
    %v3829 = vpop.f32.mrf.mxu0
    %v3830 = vadd.f32 0.0, %v3829
    %v3831 = vpop.f32.mrf.mxu0
    %v3832 = vpop.f32.mrf.mxu0
    %v3833 = vadd.f32 0.0, %v3832
    %v3834 = vpop.f32.mrf.mxu0
    %3835 = vmatprep.mubr.bf16.mxu0 0
    %3836 = vmatmul.mubr.bf16.gmra.mxu0 %v3757
    %v3837 = vpop.f32.mrf.mxu0
    %v3838 = vadd.f32 0.0, %v3837
    %v3839 = vpop.f32.mrf.mxu0
    %v3840 = vpop.f32.mrf.mxu0
    %v3841 = vadd.f32 0.0, %v3840
    %v3842 = vpop.f32.mrf.mxu0
    %3843 = vmatprep.mubr.bf16.mxu0 0
    %3844 = vmatmul.mubr.bf16.gmra.mxu0 %v3760
    %v3845 = vpop.f32.mrf.mxu0
    %v3846 = vadd.f32 0.0, %v3845
    %v3847 = vpop.f32.mrf.mxu0
    %v3848 = vpop.f32.mrf.mxu0
    %v3849 = vadd.f32 0.0, %v3848
    %v3850 = vpop.f32.mrf.mxu0
    %3851 = vmatprep.mubr.bf16.mxu0 0
    %3852 = vmatmul.mubr.bf16.gmra.mxu0 %v3763
    %v3853 = vpop.f32.mrf.mxu0
    %v3854 = vadd.f32 0.0, %v3853
    %v3855 = vpop.f32.mrf.mxu0
    %v3856 = vpop.f32.mrf.mxu0
    %v3857 = vadd.f32 0.0, %v3856
    %v3858 = vpop.f32.mrf.mxu0
    %3859 = vmatprep.mubr.bf16.mxu0 0
    %3860 = vmatmul.mubr.bf16.gmra.mxu0 %v3766
    %v3861 = vpop.f32.mrf.mxu0
    %v3862 = vadd.f32 0.0, %v3861
    %v3863 = vpop.f32.mrf.mxu0
    %v3864 = vpop.f32.mrf.mxu0
    %v3865 = vadd.f32 0.0, %v3864
    %v3866 = vpop.f32.mrf.mxu0
    %3867 = vdwg.mxu0
    %v3868 = vadd.f32 %v2688, %v3806
    %v3869 = vadd.f32 %v2691, %v3809
    %v3870 = vadd.f32 %v2696, %v3814
    %v3871 = vadd.f32 %v2699, %v3817
    %v3872 = vadd.f32 %v2704, %v3822
    %v3873 = vadd.f32 %v2707, %v3825
    %v3874 = vadd.f32 %v2712, %v3830
    %v3875 = vadd.f32 %v2715, %v3833
    %v3876 = vadd.f32 %v2720, %v3838
    %v3877 = vadd.f32 %v2723, %v3841
    %v3878 = vadd.f32 %v2728, %v3846
    %v3879 = vadd.f32 %v2731, %v3849
    %v3880 = vadd.f32 %v2736, %v3854
    %v3881 = vadd.f32 %v2739, %v3857
    %v3882 = vadd.f32 %v2744, %v3862
    %v3883 = vadd.f32 %v2747, %v3865
    %3884 = vrot.lane.b32.xlu0 %v520, 104
    %v3885 = vpop.permute.xlu0 %3884
    %3886 = vrot.lane.b32.xlu0 %v528, 104
    %v3887 = vpop.permute.xlu0 %3886
    %v3889 = vsel %vm544, %v3885, 0
    %v3892 = vsel %vm544, %v3887, 0
    %3894 = vmatprep.subr.bf16.mxu0 0
    %3895 = vmatpush1.bf16.xpose.msra.mxu0 0
    %3896 = vmatprep.subr.bf16.mxu0 0
    %3897 = vmatpush1.bf16.xpose.msra.mxu0 0
    %3898 = vmatprep.subr.bf16.mxu0 0
    %3899 = vmatpush1.bf16.xpose.msra.mxu0 0
    %3900 = vmatprep.subr.bf16.mxu0 0
    %3901 = vmatpush1.bf16.xpose.msra.mxu0 0
    %3902 = vmatprep.subr.bf16.mxu0 0
    %3903 = vmatpush1.bf16.xpose.msra.mxu0 0
    %3904 = vmatprep.subr.bf16.mxu0 0
    %3905 = vmatpush1.bf16.xpose.msra.mxu0 0
    %3906 = vmatprep.subr.bf16.mxu0 0
    %3907 = vmatpush1.bf16.xpose.msra.mxu0 0
    %3908 = vmatprep.subr.bf16.mxu0 0
    %3909 = vmatpush1.bf16.xpose.msra.mxu0 %v3892
    %3910 = vmatprep.subr.bf16.mxu0 0
    %3911 = vmatpush2.bf16.xpose.msra.mxu0 0
    %3912 = vmatprep.subr.bf16.mxu0 0
    %3913 = vmatpush2.bf16.xpose.msra.mxu0 0
    %3914 = vmatprep.subr.bf16.mxu0 0
    %3915 = vmatpush2.bf16.xpose.msra.mxu0 0
    %3916 = vmatprep.subr.bf16.mxu0 0
    %3917 = vmatpush2.bf16.xpose.msra.mxu0 0
    %3918 = vmatprep.subr.bf16.mxu0 0
    %3919 = vmatpush2.bf16.xpose.msra.mxu0 0
    %3920 = vmatprep.subr.bf16.mxu0 0
    %3921 = vmatpush2.bf16.xpose.msra.mxu0 0
    %3922 = vmatprep.subr.bf16.mxu0 0
    %3923 = vmatpush2.bf16.xpose.msra.mxu0 0
    %3924 = vmatprep.subr.bf16.mxu0 0
    %3925 = vmatpush2.bf16.xpose.msra.mxu0 0
    %3926 = vmatprep.mubr.bf16.mxu0 0
    %3927 = vmatmul.mubr.bf16.gmra.mxu0 %v3889
    %v3928 = vpop.f32.mrf.mxu0
    %v3929 = vadd.f32 0.0, %v3928
    %v3930 = vpop.f32.mrf.mxu0
    %v3931 = vpop.f32.mrf.mxu0
    %v3932 = vadd.f32 0.0, %v3931
    %v3933 = vpop.f32.mrf.mxu0
    %3934 = vdwg.mxu0
    %3935 = vrot.lane.b32.xlu0 %v521, 104
    %v3936 = vpop.permute.xlu0 %3935
    %3937 = vrot.lane.b32.xlu0 %v529, 104
    %v3938 = vpop.permute.xlu0 %3937
    %v3940 = vsel %vm544, %v3936, 0
    %v3943 = vsel %vm544, %v3938, 0
    %3945 = vmatprep.subr.bf16.mxu0 0
    %3946 = vmatpush1.bf16.xpose.msra.mxu0 0
    %3947 = vmatprep.subr.bf16.mxu0 0
    %3948 = vmatpush1.bf16.xpose.msra.mxu0 0
    %3949 = vmatprep.subr.bf16.mxu0 0
    %3950 = vmatpush1.bf16.xpose.msra.mxu0 0
    %3951 = vmatprep.subr.bf16.mxu0 0
    %3952 = vmatpush1.bf16.xpose.msra.mxu0 0
    %3953 = vmatprep.subr.bf16.mxu0 0
    %3954 = vmatpush1.bf16.xpose.msra.mxu0 0
    %3955 = vmatprep.subr.bf16.mxu0 0
    %3956 = vmatpush1.bf16.xpose.msra.mxu0 0
    %3957 = vmatprep.subr.bf16.mxu0 0
    %3958 = vmatpush1.bf16.xpose.msra.mxu0 0
    %3959 = vmatprep.subr.bf16.mxu0 0
    %3960 = vmatpush1.bf16.xpose.msra.mxu0 %v3943
    %3961 = vmatprep.subr.bf16.mxu0 0
    %3962 = vmatpush2.bf16.xpose.msra.mxu0 0
    %3963 = vmatprep.subr.bf16.mxu0 0
    %3964 = vmatpush2.bf16.xpose.msra.mxu0 0
    %3965 = vmatprep.subr.bf16.mxu0 0
    %3966 = vmatpush2.bf16.xpose.msra.mxu0 0
    %3967 = vmatprep.subr.bf16.mxu0 0
    %3968 = vmatpush2.bf16.xpose.msra.mxu0 0
    %3969 = vmatprep.subr.bf16.mxu0 0
    %3970 = vmatpush2.bf16.xpose.msra.mxu0 0
    %3971 = vmatprep.subr.bf16.mxu0 0
    %3972 = vmatpush2.bf16.xpose.msra.mxu0 0
    %3973 = vmatprep.subr.bf16.mxu0 0
    %3974 = vmatpush2.bf16.xpose.msra.mxu0 0
    %3975 = vmatprep.subr.bf16.mxu0 0
    %3976 = vmatpush2.bf16.xpose.msra.mxu0 0
    %3977 = vmatprep.mubr.bf16.mxu0 0
    %3978 = vmatmul.mubr.bf16.gmra.mxu0 %v3940
    %v3979 = vpop.f32.mrf.mxu0
    %v3980 = vadd.f32 0.0, %v3979
    %v3981 = vpop.f32.mrf.mxu0
    %v3982 = vpop.f32.mrf.mxu0
    %v3983 = vadd.f32 0.0, %v3982
    %v3984 = vpop.f32.mrf.mxu0
    %3985 = vdwg.mxu0
    %3986 = vrot.lane.b32.xlu0 %v522, 104
    %v3987 = vpop.permute.xlu0 %3986
    %3988 = vrot.lane.b32.xlu0 %v530, 104
    %v3989 = vpop.permute.xlu0 %3988
    %v3991 = vsel %vm544, %v3987, 0
    %v3994 = vsel %vm544, %v3989, 0
    %3996 = vmatprep.subr.bf16.mxu0 0
    %3997 = vmatpush1.bf16.xpose.msra.mxu0 0
    %3998 = vmatprep.subr.bf16.mxu0 0
    %3999 = vmatpush1.bf16.xpose.msra.mxu0 0
    %4000 = vmatprep.subr.bf16.mxu0 0
    %4001 = vmatpush1.bf16.xpose.msra.mxu0 0
    %4002 = vmatprep.subr.bf16.mxu0 0
    %4003 = vmatpush1.bf16.xpose.msra.mxu0 0
    %4004 = vmatprep.subr.bf16.mxu0 0
    %4005 = vmatpush1.bf16.xpose.msra.mxu0 0
    %4006 = vmatprep.subr.bf16.mxu0 0
    %4007 = vmatpush1.bf16.xpose.msra.mxu0 0
    %4008 = vmatprep.subr.bf16.mxu0 0
    %4009 = vmatpush1.bf16.xpose.msra.mxu0 0
    %4010 = vmatprep.subr.bf16.mxu0 0
    %4011 = vmatpush1.bf16.xpose.msra.mxu0 %v3994
    %4012 = vmatprep.subr.bf16.mxu0 0
    %4013 = vmatpush2.bf16.xpose.msra.mxu0 0
    %4014 = vmatprep.subr.bf16.mxu0 0
    %4015 = vmatpush2.bf16.xpose.msra.mxu0 0
    %4016 = vmatprep.subr.bf16.mxu0 0
    %4017 = vmatpush2.bf16.xpose.msra.mxu0 0
    %4018 = vmatprep.subr.bf16.mxu0 0
    %4019 = vmatpush2.bf16.xpose.msra.mxu0 0
    %4020 = vmatprep.subr.bf16.mxu0 0
    %4021 = vmatpush2.bf16.xpose.msra.mxu0 0
    %4022 = vmatprep.subr.bf16.mxu0 0
    %4023 = vmatpush2.bf16.xpose.msra.mxu0 0
    %4024 = vmatprep.subr.bf16.mxu0 0
    %4025 = vmatpush2.bf16.xpose.msra.mxu0 0
    %4026 = vmatprep.subr.bf16.mxu0 0
    %4027 = vmatpush2.bf16.xpose.msra.mxu0 0
    %4028 = vmatprep.mubr.bf16.mxu0 0
    %4029 = vmatmul.mubr.bf16.gmra.mxu0 %v3991
    %v4030 = vpop.f32.mrf.mxu0
    %v4031 = vadd.f32 0.0, %v4030
    %v4032 = vpop.f32.mrf.mxu0
    %v4033 = vpop.f32.mrf.mxu0
    %v4034 = vadd.f32 0.0, %v4033
    %v4035 = vpop.f32.mrf.mxu0
    %4036 = vdwg.mxu0
    %4037 = vrot.lane.b32.xlu0 %v523, 104
    %v4038 = vpop.permute.xlu0 %4037
    %4039 = vrot.lane.b32.xlu0 %v531, 104
    %v4040 = vpop.permute.xlu0 %4039
    %v4042 = vsel %vm544, %v4038, 0
    %v4045 = vsel %vm544, %v4040, 0
    %4047 = vmatprep.subr.bf16.mxu0 0
    %4048 = vmatpush1.bf16.xpose.msra.mxu0 0
    %4049 = vmatprep.subr.bf16.mxu0 0
    %4050 = vmatpush1.bf16.xpose.msra.mxu0 0
    %4051 = vmatprep.subr.bf16.mxu0 0
    %4052 = vmatpush1.bf16.xpose.msra.mxu0 0
    %4053 = vmatprep.subr.bf16.mxu0 0
    %4054 = vmatpush1.bf16.xpose.msra.mxu0 0
    %4055 = vmatprep.subr.bf16.mxu0 0
    %4056 = vmatpush1.bf16.xpose.msra.mxu0 0
    %4057 = vmatprep.subr.bf16.mxu0 0
    %4058 = vmatpush1.bf16.xpose.msra.mxu0 0
    %4059 = vmatprep.subr.bf16.mxu0 0
    %4060 = vmatpush1.bf16.xpose.msra.mxu0 0
    %4061 = vmatprep.subr.bf16.mxu0 0
    %4062 = vmatpush1.bf16.xpose.msra.mxu0 %v4045
    %4063 = vmatprep.subr.bf16.mxu0 0
    %4064 = vmatpush2.bf16.xpose.msra.mxu0 0
    %4065 = vmatprep.subr.bf16.mxu0 0
    %4066 = vmatpush2.bf16.xpose.msra.mxu0 0
    %4067 = vmatprep.subr.bf16.mxu0 0
    %4068 = vmatpush2.bf16.xpose.msra.mxu0 0
    %4069 = vmatprep.subr.bf16.mxu0 0
    %4070 = vmatpush2.bf16.xpose.msra.mxu0 0
    %4071 = vmatprep.subr.bf16.mxu0 0
    %4072 = vmatpush2.bf16.xpose.msra.mxu0 0
    %4073 = vmatprep.subr.bf16.mxu0 0
    %4074 = vmatpush2.bf16.xpose.msra.mxu0 0
    %4075 = vmatprep.subr.bf16.mxu0 0
    %4076 = vmatpush2.bf16.xpose.msra.mxu0 0
    %4077 = vmatprep.subr.bf16.mxu0 0
    %4078 = vmatpush2.bf16.xpose.msra.mxu0 0
    %4079 = vmatprep.mubr.bf16.mxu0 0
    %4080 = vmatmul.mubr.bf16.gmra.mxu0 %v4042
    %v4081 = vpop.f32.mrf.mxu0
    %v4082 = vadd.f32 0.0, %v4081
    %v4083 = vpop.f32.mrf.mxu0
    %v4084 = vpop.f32.mrf.mxu0
    %v4085 = vadd.f32 0.0, %v4084
    %v4086 = vpop.f32.mrf.mxu0
    %4087 = vdwg.mxu0
    %4088 = vrot.lane.b32.xlu0 %v524, 104
    %v4089 = vpop.permute.xlu0 %4088
    %4090 = vrot.lane.b32.xlu0 %v532, 104
    %v4091 = vpop.permute.xlu0 %4090
    %v4093 = vsel %vm544, %v4089, 0
    %v4096 = vsel %vm544, %v4091, 0
    %4098 = vmatprep.subr.bf16.mxu0 0
    %4099 = vmatpush1.bf16.xpose.msra.mxu0 0
    %4100 = vmatprep.subr.bf16.mxu0 0
    %4101 = vmatpush1.bf16.xpose.msra.mxu0 0
    %4102 = vmatprep.subr.bf16.mxu0 0
    %4103 = vmatpush1.bf16.xpose.msra.mxu0 0
    %4104 = vmatprep.subr.bf16.mxu0 0
    %4105 = vmatpush1.bf16.xpose.msra.mxu0 0
    %4106 = vmatprep.subr.bf16.mxu0 0
    %4107 = vmatpush1.bf16.xpose.msra.mxu0 0
    %4108 = vmatprep.subr.bf16.mxu0 0
    %4109 = vmatpush1.bf16.xpose.msra.mxu0 0
    %4110 = vmatprep.subr.bf16.mxu0 0
    %4111 = vmatpush1.bf16.xpose.msra.mxu0 0
    %4112 = vmatprep.subr.bf16.mxu0 0
    %4113 = vmatpush1.bf16.xpose.msra.mxu0 %v4096
    %4114 = vmatprep.subr.bf16.mxu0 0
    %4115 = vmatpush2.bf16.xpose.msra.mxu0 0
    %4116 = vmatprep.subr.bf16.mxu0 0
    %4117 = vmatpush2.bf16.xpose.msra.mxu0 0
    %4118 = vmatprep.subr.bf16.mxu0 0
    %4119 = vmatpush2.bf16.xpose.msra.mxu0 0
    %4120 = vmatprep.subr.bf16.mxu0 0
    %4121 = vmatpush2.bf16.xpose.msra.mxu0 0
    %4122 = vmatprep.subr.bf16.mxu0 0
    %4123 = vmatpush2.bf16.xpose.msra.mxu0 0
    %4124 = vmatprep.subr.bf16.mxu0 0
    %4125 = vmatpush2.bf16.xpose.msra.mxu0 0
    %4126 = vmatprep.subr.bf16.mxu0 0
    %4127 = vmatpush2.bf16.xpose.msra.mxu0 0
    %4128 = vmatprep.subr.bf16.mxu0 0
    %4129 = vmatpush2.bf16.xpose.msra.mxu0 0
    %4130 = vmatprep.mubr.bf16.mxu0 0
    %4131 = vmatmul.mubr.bf16.gmra.mxu0 %v4093
    %v4132 = vpop.f32.mrf.mxu0
    %v4133 = vadd.f32 0.0, %v4132
    %v4134 = vpop.f32.mrf.mxu0
    %v4135 = vpop.f32.mrf.mxu0
    %v4136 = vadd.f32 0.0, %v4135
    %v4137 = vpop.f32.mrf.mxu0
    %4138 = vdwg.mxu0
    %4139 = vrot.lane.b32.xlu0 %v525, 104
    %v4140 = vpop.permute.xlu0 %4139
    %4141 = vrot.lane.b32.xlu0 %v533, 104
    %v4142 = vpop.permute.xlu0 %4141
    %v4144 = vsel %vm544, %v4140, 0
    %v4147 = vsel %vm544, %v4142, 0
    %4149 = vmatprep.subr.bf16.mxu0 0
    %4150 = vmatpush1.bf16.xpose.msra.mxu0 0
    %4151 = vmatprep.subr.bf16.mxu0 0
    %4152 = vmatpush1.bf16.xpose.msra.mxu0 0
    %4153 = vmatprep.subr.bf16.mxu0 0
    %4154 = vmatpush1.bf16.xpose.msra.mxu0 0
    %4155 = vmatprep.subr.bf16.mxu0 0
    %4156 = vmatpush1.bf16.xpose.msra.mxu0 0
    %4157 = vmatprep.subr.bf16.mxu0 0
    %4158 = vmatpush1.bf16.xpose.msra.mxu0 0
    %4159 = vmatprep.subr.bf16.mxu0 0
    %4160 = vmatpush1.bf16.xpose.msra.mxu0 0
    %4161 = vmatprep.subr.bf16.mxu0 0
    %4162 = vmatpush1.bf16.xpose.msra.mxu0 0
    %4163 = vmatprep.subr.bf16.mxu0 0
    %4164 = vmatpush1.bf16.xpose.msra.mxu0 %v4147
    %4165 = vmatprep.subr.bf16.mxu0 0
    %4166 = vmatpush2.bf16.xpose.msra.mxu0 0
    %4167 = vmatprep.subr.bf16.mxu0 0
    %4168 = vmatpush2.bf16.xpose.msra.mxu0 0
    %4169 = vmatprep.subr.bf16.mxu0 0
    %4170 = vmatpush2.bf16.xpose.msra.mxu0 0
    %4171 = vmatprep.subr.bf16.mxu0 0
    %4172 = vmatpush2.bf16.xpose.msra.mxu0 0
    %4173 = vmatprep.subr.bf16.mxu0 0
    %4174 = vmatpush2.bf16.xpose.msra.mxu0 0
    %4175 = vmatprep.subr.bf16.mxu0 0
    %4176 = vmatpush2.bf16.xpose.msra.mxu0 0
    %4177 = vmatprep.subr.bf16.mxu0 0
    %4178 = vmatpush2.bf16.xpose.msra.mxu0 0
    %4179 = vmatprep.subr.bf16.mxu0 0
    %4180 = vmatpush2.bf16.xpose.msra.mxu0 0
    %4181 = vmatprep.mubr.bf16.mxu0 0
    %4182 = vmatmul.mubr.bf16.gmra.mxu0 %v4144
    %v4183 = vpop.f32.mrf.mxu0
    %v4184 = vadd.f32 0.0, %v4183
    %v4185 = vpop.f32.mrf.mxu0
    %v4186 = vpop.f32.mrf.mxu0
    %v4187 = vadd.f32 0.0, %v4186
    %v4188 = vpop.f32.mrf.mxu0
    %4189 = vdwg.mxu0
    %4190 = vrot.lane.b32.xlu0 %v526, 104
    %v4191 = vpop.permute.xlu0 %4190
    %4192 = vrot.lane.b32.xlu0 %v534, 104
    %v4193 = vpop.permute.xlu0 %4192
    %v4195 = vsel %vm544, %v4191, 0
    %v4198 = vsel %vm544, %v4193, 0
    %4200 = vmatprep.subr.bf16.mxu0 0
    %4201 = vmatpush1.bf16.xpose.msra.mxu0 0
    %4202 = vmatprep.subr.bf16.mxu0 0
    %4203 = vmatpush1.bf16.xpose.msra.mxu0 0
    %4204 = vmatprep.subr.bf16.mxu0 0
    %4205 = vmatpush1.bf16.xpose.msra.mxu0 0
    %4206 = vmatprep.subr.bf16.mxu0 0
    %4207 = vmatpush1.bf16.xpose.msra.mxu0 0
    %4208 = vmatprep.subr.bf16.mxu0 0
    %4209 = vmatpush1.bf16.xpose.msra.mxu0 0
    %4210 = vmatprep.subr.bf16.mxu0 0
    %4211 = vmatpush1.bf16.xpose.msra.mxu0 0
    %4212 = vmatprep.subr.bf16.mxu0 0
    %4213 = vmatpush1.bf16.xpose.msra.mxu0 0
    %4214 = vmatprep.subr.bf16.mxu0 0
    %4215 = vmatpush1.bf16.xpose.msra.mxu0 %v4198
    %4216 = vmatprep.subr.bf16.mxu0 0
    %4217 = vmatpush2.bf16.xpose.msra.mxu0 0
    %4218 = vmatprep.subr.bf16.mxu0 0
    %4219 = vmatpush2.bf16.xpose.msra.mxu0 0
    %4220 = vmatprep.subr.bf16.mxu0 0
    %4221 = vmatpush2.bf16.xpose.msra.mxu0 0
    %4222 = vmatprep.subr.bf16.mxu0 0
    %4223 = vmatpush2.bf16.xpose.msra.mxu0 0
    %4224 = vmatprep.subr.bf16.mxu0 0
    %4225 = vmatpush2.bf16.xpose.msra.mxu0 0
    %4226 = vmatprep.subr.bf16.mxu0 0
    %4227 = vmatpush2.bf16.xpose.msra.mxu0 0
    %4228 = vmatprep.subr.bf16.mxu0 0
    %4229 = vmatpush2.bf16.xpose.msra.mxu0 0
    %4230 = vmatprep.subr.bf16.mxu0 0
    %4231 = vmatpush2.bf16.xpose.msra.mxu0 0
    %4232 = vmatprep.mubr.bf16.mxu0 0
    %4233 = vmatmul.mubr.bf16.gmra.mxu0 %v4195
    %v4234 = vpop.f32.mrf.mxu0
    %v4235 = vadd.f32 0.0, %v4234
    %v4236 = vpop.f32.mrf.mxu0
    %v4237 = vpop.f32.mrf.mxu0
    %v4238 = vadd.f32 0.0, %v4237
    %v4239 = vpop.f32.mrf.mxu0
    %4240 = vdwg.mxu0
    %4241 = vrot.lane.b32.xlu0 %v527, 104
    %v4242 = vpop.permute.xlu0 %4241
    %4243 = vrot.lane.b32.xlu0 %v535, 104
    %v4244 = vpop.permute.xlu0 %4243
    %v4246 = vsel %vm544, %v4242, 0
    %v4249 = vsel %vm544, %v4244, 0
    %4251 = vmatprep.subr.bf16.mxu0 0
    %4252 = vmatpush1.bf16.xpose.msra.mxu0 0
    %4253 = vmatprep.subr.bf16.mxu0 0
    %4254 = vmatpush1.bf16.xpose.msra.mxu0 0
    %4255 = vmatprep.subr.bf16.mxu0 0
    %4256 = vmatpush1.bf16.xpose.msra.mxu0 0
    %4257 = vmatprep.subr.bf16.mxu0 0
    %4258 = vmatpush1.bf16.xpose.msra.mxu0 0
    %4259 = vmatprep.subr.bf16.mxu0 0
    %4260 = vmatpush1.bf16.xpose.msra.mxu0 0
    %4261 = vmatprep.subr.bf16.mxu0 0
    %4262 = vmatpush1.bf16.xpose.msra.mxu0 0
    %4263 = vmatprep.subr.bf16.mxu0 0
    %4264 = vmatpush1.bf16.xpose.msra.mxu0 0
    %4265 = vmatprep.subr.bf16.mxu0 0
    %4266 = vmatpush1.bf16.xpose.msra.mxu0 %v4249
    %4267 = vmatprep.subr.bf16.mxu0 0
    %4268 = vmatpush2.bf16.xpose.msra.mxu0 0
    %4269 = vmatprep.subr.bf16.mxu0 0
    %4270 = vmatpush2.bf16.xpose.msra.mxu0 0
    %4271 = vmatprep.subr.bf16.mxu0 0
    %4272 = vmatpush2.bf16.xpose.msra.mxu0 0
    %4273 = vmatprep.subr.bf16.mxu0 0
    %4274 = vmatpush2.bf16.xpose.msra.mxu0 0
    %4275 = vmatprep.subr.bf16.mxu0 0
    %4276 = vmatpush2.bf16.xpose.msra.mxu0 0
    %4277 = vmatprep.subr.bf16.mxu0 0
    %4278 = vmatpush2.bf16.xpose.msra.mxu0 0
    %4279 = vmatprep.subr.bf16.mxu0 0
    %4280 = vmatpush2.bf16.xpose.msra.mxu0 0
    %4281 = vmatprep.subr.bf16.mxu0 0
    %4282 = vmatpush2.bf16.xpose.msra.mxu0 0
    %4283 = vmatprep.mubr.bf16.mxu0 0
    %4284 = vmatmul.mubr.bf16.gmra.mxu0 %v4246
    %v4285 = vpop.f32.mrf.mxu0
    %v4286 = vadd.f32 0.0, %v4285
    %v4287 = vpop.f32.mrf.mxu0
    %v4288 = vpop.f32.mrf.mxu0
    %v4289 = vadd.f32 0.0, %v4288
    %v4290 = vpop.f32.mrf.mxu0
    %4291 = vdwg.mxu0
    %v4292 = vmul.f32 %v3929, 0.35355338
    %v4293 = vmul.f32 %v3932, 0.35355338
    %v4294 = vmul.f32 %v3980, 0.35355338
    %v4295 = vmul.f32 %v3983, 0.35355338
    %v4296 = vmul.f32 %v4031, 0.35355338
    %v4297 = vmul.f32 %v4034, 0.35355338
    %v4298 = vmul.f32 %v4082, 0.35355338
    %v4299 = vmul.f32 %v4085, 0.35355338
    %v4300 = vmul.f32 %v4133, 0.35355338
    %v4301 = vmul.f32 %v4136, 0.35355338
    %v4302 = vmul.f32 %v4184, 0.35355338
    %v4303 = vmul.f32 %v4187, 0.35355338
    %v4304 = vmul.f32 %v4235, 0.35355338
    %v4305 = vmul.f32 %v4238, 0.35355338
    %v4306 = vmul.f32 %v4286, 0.35355338
    %v4307 = vmul.f32 %v4289, 0.35355338
    %v4308 = vsel %vm937, %v4292, -inf
    %4309 = vmax.xlane.f32.xlu0 %v4308
    %v4310 = vpop.xlane.xlu0 %4309
    %v4311 = vsel %vm937, %v4293, -inf
    %4312 = vmax.xlane.f32.xlu0 %v4311
    %v4313 = vpop.xlane.xlu0 %4312
    %v4314 = vsel %vm937, %v4294, -inf
    %4315 = vmax.xlane.f32.xlu0 %v4314
    %v4316 = vpop.xlane.xlu0 %4315
    %v4317 = vsel %vm937, %v4295, -inf
    %4318 = vmax.xlane.f32.xlu0 %v4317
    %v4319 = vpop.xlane.xlu0 %4318
    %v4320 = vsel %vm937, %v4296, -inf
    %4321 = vmax.xlane.f32.xlu0 %v4320
    %v4322 = vpop.xlane.xlu0 %4321
    %v4323 = vsel %vm937, %v4297, -inf
    %4324 = vmax.xlane.f32.xlu0 %v4323
    %v4325 = vpop.xlane.xlu0 %4324
    %v4326 = vsel %vm937, %v4298, -inf
    %4327 = vmax.xlane.f32.xlu0 %v4326
    %v4328 = vpop.xlane.xlu0 %4327
    %v4329 = vsel %vm937, %v4299, -inf
    %4330 = vmax.xlane.f32.xlu0 %v4329
    %v4331 = vpop.xlane.xlu0 %4330
    %v4332 = vsel %vm937, %v4300, -inf
    %4333 = vmax.xlane.f32.xlu0 %v4332
    %v4334 = vpop.xlane.xlu0 %4333
    %v4335 = vsel %vm937, %v4301, -inf
    %4336 = vmax.xlane.f32.xlu0 %v4335
    %v4337 = vpop.xlane.xlu0 %4336
    %v4338 = vsel %vm937, %v4302, -inf
    %4339 = vmax.xlane.f32.xlu0 %v4338
    %v4340 = vpop.xlane.xlu0 %4339
    %v4341 = vsel %vm937, %v4303, -inf
    %4342 = vmax.xlane.f32.xlu0 %v4341
    %v4343 = vpop.xlane.xlu0 %4342
    %v4344 = vsel %vm937, %v4304, -inf
    %4345 = vmax.xlane.f32.xlu0 %v4344
    %v4346 = vpop.xlane.xlu0 %4345
    %v4347 = vsel %vm937, %v4305, -inf
    %4348 = vmax.xlane.f32.xlu0 %v4347
    %v4349 = vpop.xlane.xlu0 %4348
    %v4350 = vsel %vm937, %v4306, -inf
    %4351 = vmax.xlane.f32.xlu0 %v4350
    %v4352 = vpop.xlane.xlu0 %4351
    %v4353 = vsel %vm937, %v4307, -inf
    %4354 = vmax.xlane.f32.xlu0 %v4353
    %v4355 = vpop.xlane.xlu0 %4354
    %v4356 = vsub.f32 %v4292, %v4310
    %v4357 = vsub.f32 %v4293, %v4313
    %v4358 = vsub.f32 %v4294, %v4316
    %v4359 = vsub.f32 %v4295, %v4319
    %v4360 = vsub.f32 %v4296, %v4322
    %v4361 = vsub.f32 %v4297, %v4325
    %v4362 = vsub.f32 %v4298, %v4328
    %v4363 = vsub.f32 %v4299, %v4331
    %v4364 = vsub.f32 %v4300, %v4334
    %v4365 = vsub.f32 %v4301, %v4337
    %v4366 = vsub.f32 %v4302, %v4340
    %v4367 = vsub.f32 %v4303, %v4343
    %v4368 = vsub.f32 %v4304, %v4346
    %v4369 = vsub.f32 %v4305, %v4349
    %v4370 = vsub.f32 %v4306, %v4352
    %v4371 = vsub.f32 %v4307, %v4355
    %v4372 = vmul.f32 %v4356, 1.442695
    %v4373 = vpow.pop %v4372
    %v4374 = vmul.f32 %v4357, 1.442695
    %v4375 = vpow.pop %v4374
    %v4376 = vmul.f32 %v4358, 1.442695
    %v4377 = vpow.pop %v4376
    %v4378 = vmul.f32 %v4359, 1.442695
    %v4379 = vpow.pop %v4378
    %v4380 = vmul.f32 %v4360, 1.442695
    %v4381 = vpow.pop %v4380
    %v4382 = vmul.f32 %v4361, 1.442695
    %v4383 = vpow.pop %v4382
    %v4384 = vmul.f32 %v4362, 1.442695
    %v4385 = vpow.pop %v4384
    %v4386 = vmul.f32 %v4363, 1.442695
    %v4387 = vpow.pop %v4386
    %v4388 = vmul.f32 %v4364, 1.442695
    %v4389 = vpow.pop %v4388
    %v4390 = vmul.f32 %v4365, 1.442695
    %v4391 = vpow.pop %v4390
    %v4392 = vmul.f32 %v4366, 1.442695
    %v4393 = vpow.pop %v4392
    %v4394 = vmul.f32 %v4367, 1.442695
    %v4395 = vpow.pop %v4394
    %v4396 = vmul.f32 %v4368, 1.442695
    %v4397 = vpow.pop %v4396
    %v4398 = vmul.f32 %v4369, 1.442695
    %v4399 = vpow.pop %v4398
    %v4400 = vmul.f32 %v4370, 1.442695
    %v4401 = vpow.pop %v4400
    %v4402 = vmul.f32 %v4371, 1.442695
    %v4403 = vpow.pop %v4402
    %v4404 = vsel %vm937, %v4373, 0.0
    %4405 = vadd.xlane.f32.xlu0 %v4404
    %v4406 = vpop.xlane.xlu0 %4405
    %v4407 = vsel %vm937, %v4375, 0.0
    %4408 = vadd.xlane.f32.xlu0 %v4407
    %v4409 = vpop.xlane.xlu0 %4408
    %v4410 = vsel %vm937, %v4377, 0.0
    %4411 = vadd.xlane.f32.xlu0 %v4410
    %v4412 = vpop.xlane.xlu0 %4411
    %v4413 = vsel %vm937, %v4379, 0.0
    %4414 = vadd.xlane.f32.xlu0 %v4413
    %v4415 = vpop.xlane.xlu0 %4414
    %v4416 = vsel %vm937, %v4381, 0.0
    %4417 = vadd.xlane.f32.xlu0 %v4416
    %v4418 = vpop.xlane.xlu0 %4417
    %v4419 = vsel %vm937, %v4383, 0.0
    %4420 = vadd.xlane.f32.xlu0 %v4419
    %v4421 = vpop.xlane.xlu0 %4420
    %v4422 = vsel %vm937, %v4385, 0.0
    %4423 = vadd.xlane.f32.xlu0 %v4422
    %v4424 = vpop.xlane.xlu0 %4423
    %v4425 = vsel %vm937, %v4387, 0.0
    %4426 = vadd.xlane.f32.xlu0 %v4425
    %v4427 = vpop.xlane.xlu0 %4426
    %v4428 = vsel %vm937, %v4389, 0.0
    %4429 = vadd.xlane.f32.xlu0 %v4428
    %v4430 = vpop.xlane.xlu0 %4429
    %v4431 = vsel %vm937, %v4391, 0.0
    %4432 = vadd.xlane.f32.xlu0 %v4431
    %v4433 = vpop.xlane.xlu0 %4432
    %v4434 = vsel %vm937, %v4393, 0.0
    %4435 = vadd.xlane.f32.xlu0 %v4434
    %v4436 = vpop.xlane.xlu0 %4435
    %v4437 = vsel %vm937, %v4395, 0.0
    %4438 = vadd.xlane.f32.xlu0 %v4437
    %v4439 = vpop.xlane.xlu0 %4438
    %v4440 = vsel %vm937, %v4397, 0.0
    %4441 = vadd.xlane.f32.xlu0 %v4440
    %v4442 = vpop.xlane.xlu0 %4441
    %v4443 = vsel %vm937, %v4399, 0.0
    %4444 = vadd.xlane.f32.xlu0 %v4443
    %v4445 = vpop.xlane.xlu0 %4444
    %v4446 = vsel %vm937, %v4401, 0.0
    %4447 = vadd.xlane.f32.xlu0 %v4446
    %v4448 = vpop.xlane.xlu0 %4447
    %v4449 = vsel %vm937, %v4403, 0.0
    %4450 = vadd.xlane.f32.xlu0 %v4449
    %v4451 = vpop.xlane.xlu0 %4450
    %v4452 = vrcp.pop %v4406
    %v4453 = vrcp.pop %v4409
    %v4454 = vrcp.pop %v4412
    %v4455 = vrcp.pop %v4415
    %v4456 = vrcp.pop %v4418
    %v4457 = vrcp.pop %v4421
    %v4458 = vrcp.pop %v4424
    %v4459 = vrcp.pop %v4427
    %v4460 = vrcp.pop %v4430
    %v4461 = vrcp.pop %v4433
    %v4462 = vrcp.pop %v4436
    %v4463 = vrcp.pop %v4439
    %v4464 = vrcp.pop %v4442
    %v4465 = vrcp.pop %v4445
    %v4466 = vrcp.pop %v4448
    %v4467 = vrcp.pop %v4451
    %v4468 = vmul.f32 %v4373, %v4452
    %v4469 = vmul.f32 %v4375, %v4453
    %v4470 = vmul.f32 %v4377, %v4454
    %v4471 = vmul.f32 %v4379, %v4455
    %v4472 = vmul.f32 %v4381, %v4456
    %v4473 = vmul.f32 %v4383, %v4457
    %v4474 = vmul.f32 %v4385, %v4458
    %v4475 = vmul.f32 %v4387, %v4459
    %v4476 = vmul.f32 %v4389, %v4460
    %v4477 = vmul.f32 %v4391, %v4461
    %v4478 = vmul.f32 %v4393, %v4462
    %v4479 = vmul.f32 %v4395, %v4463
    %v4480 = vmul.f32 %v4397, %v4464
    %v4481 = vmul.f32 %v4399, %v4465
    %v4482 = vmul.f32 %v4401, %v4466
    %v4483 = vmul.f32 %v4403, %v4467
    %v4484 = vpack.c.bf16 %v4469, %v4468
    %v4485 = vpack.c.bf16 %v4471, %v4470
    %v4486 = vpack.c.bf16 %v4473, %v4472
    %v4487 = vpack.c.bf16 %v4475, %v4474
    %v4488 = vpack.c.bf16 %v4477, %v4476
    %v4489 = vpack.c.bf16 %v4479, %v4478
    %v4490 = vpack.c.bf16 %v4481, %v4480
    %v4491 = vpack.c.bf16 %v4483, %v4482
    %4492 = vrot.lane.b32.xlu0 %v536, 104
    %v4493 = vpop.permute.xlu0 %4492
    %v4496 = vsel %vm937, %v4484, 0
    %4498 = vmatprep.subr.bf16.mxu0 0
    %4499 = vmatpush1.bf16.msra.mxu0 0
    %4500 = vmatprep.subr.bf16.mxu0 0
    %4501 = vmatpush1.bf16.msra.mxu0 0
    %4502 = vmatprep.subr.bf16.mxu0 0
    %4503 = vmatpush1.bf16.msra.mxu0 0
    %4504 = vmatprep.subr.bf16.mxu0 0
    %4505 = vmatpush1.bf16.msra.mxu0 0
    %4506 = vmatprep.subr.bf16.mxu0 0
    %4507 = vmatpush1.bf16.msra.mxu0 0
    %4508 = vmatprep.subr.bf16.mxu0 0
    %4509 = vmatpush1.bf16.msra.mxu0 0
    %4510 = vmatprep.subr.bf16.mxu0 0
    %4511 = vmatpush1.bf16.msra.mxu0 0
    %4512 = vmatprep.subr.bf16.mxu0 0
    %4513 = vmatpush1.bf16.msra.mxu0 %v4493
    %4514 = vmatprep.subr.bf16.mxu0 0
    %4515 = vmatpush2.bf16.msra.mxu0 0
    %4516 = vmatprep.subr.bf16.mxu0 0
    %4517 = vmatpush2.bf16.msra.mxu0 0
    %4518 = vmatprep.subr.bf16.mxu0 0
    %4519 = vmatpush2.bf16.msra.mxu0 0
    %4520 = vmatprep.subr.bf16.mxu0 0
    %4521 = vmatpush2.bf16.msra.mxu0 0
    %4522 = vmatprep.subr.bf16.mxu0 0
    %4523 = vmatpush2.bf16.msra.mxu0 0
    %4524 = vmatprep.subr.bf16.mxu0 0
    %4525 = vmatpush2.bf16.msra.mxu0 0
    %4526 = vmatprep.subr.bf16.mxu0 0
    %4527 = vmatpush2.bf16.msra.mxu0 0
    %4528 = vmatprep.subr.bf16.mxu0 0
    %4529 = vmatpush2.bf16.msra.mxu0 0
    %4530 = vmatprep.mubr.bf16.mxu0 0
    %4531 = vmatmul.mubr.bf16.gmra.mxu0 %v4496
    %v4532 = vpop.f32.mrf.mxu0
    %v4533 = vadd.f32 0.0, %v4532
    %v4534 = vpop.f32.mrf.mxu0
    %v4535 = vpop.f32.mrf.mxu0
    %v4536 = vadd.f32 0.0, %v4535
    %v4537 = vpop.f32.mrf.mxu0
    %4538 = vdwg.mxu0
    %4539 = vrot.lane.b32.xlu0 %v537, 104
    %v4540 = vpop.permute.xlu0 %4539
    %v4543 = vsel %vm937, %v4485, 0
    %4545 = vmatprep.subr.bf16.mxu0 0
    %4546 = vmatpush1.bf16.msra.mxu0 0
    %4547 = vmatprep.subr.bf16.mxu0 0
    %4548 = vmatpush1.bf16.msra.mxu0 0
    %4549 = vmatprep.subr.bf16.mxu0 0
    %4550 = vmatpush1.bf16.msra.mxu0 0
    %4551 = vmatprep.subr.bf16.mxu0 0
    %4552 = vmatpush1.bf16.msra.mxu0 0
    %4553 = vmatprep.subr.bf16.mxu0 0
    %4554 = vmatpush1.bf16.msra.mxu0 0
    %4555 = vmatprep.subr.bf16.mxu0 0
    %4556 = vmatpush1.bf16.msra.mxu0 0
    %4557 = vmatprep.subr.bf16.mxu0 0
    %4558 = vmatpush1.bf16.msra.mxu0 0
    %4559 = vmatprep.subr.bf16.mxu0 0
    %4560 = vmatpush1.bf16.msra.mxu0 %v4540
    %4561 = vmatprep.subr.bf16.mxu0 0
    %4562 = vmatpush2.bf16.msra.mxu0 0
    %4563 = vmatprep.subr.bf16.mxu0 0
    %4564 = vmatpush2.bf16.msra.mxu0 0
    %4565 = vmatprep.subr.bf16.mxu0 0
    %4566 = vmatpush2.bf16.msra.mxu0 0
    %4567 = vmatprep.subr.bf16.mxu0 0
    %4568 = vmatpush2.bf16.msra.mxu0 0
    %4569 = vmatprep.subr.bf16.mxu0 0
    %4570 = vmatpush2.bf16.msra.mxu0 0
    %4571 = vmatprep.subr.bf16.mxu0 0
    %4572 = vmatpush2.bf16.msra.mxu0 0
    %4573 = vmatprep.subr.bf16.mxu0 0
    %4574 = vmatpush2.bf16.msra.mxu0 0
    %4575 = vmatprep.subr.bf16.mxu0 0
    %4576 = vmatpush2.bf16.msra.mxu0 0
    %4577 = vmatprep.mubr.bf16.mxu0 0
    %4578 = vmatmul.mubr.bf16.gmra.mxu0 %v4543
    %v4579 = vpop.f32.mrf.mxu0
    %v4580 = vadd.f32 0.0, %v4579
    %v4581 = vpop.f32.mrf.mxu0
    %v4582 = vpop.f32.mrf.mxu0
    %v4583 = vadd.f32 0.0, %v4582
    %v4584 = vpop.f32.mrf.mxu0
    %4585 = vdwg.mxu0
    %4586 = vrot.lane.b32.xlu0 %v538, 104
    %v4587 = vpop.permute.xlu0 %4586
    %v4590 = vsel %vm937, %v4486, 0
    %4592 = vmatprep.subr.bf16.mxu0 0
    %4593 = vmatpush1.bf16.msra.mxu0 0
    %4594 = vmatprep.subr.bf16.mxu0 0
    %4595 = vmatpush1.bf16.msra.mxu0 0
    %4596 = vmatprep.subr.bf16.mxu0 0
    %4597 = vmatpush1.bf16.msra.mxu0 0
    %4598 = vmatprep.subr.bf16.mxu0 0
    %4599 = vmatpush1.bf16.msra.mxu0 0
    %4600 = vmatprep.subr.bf16.mxu0 0
    %4601 = vmatpush1.bf16.msra.mxu0 0
    %4602 = vmatprep.subr.bf16.mxu0 0
    %4603 = vmatpush1.bf16.msra.mxu0 0
    %4604 = vmatprep.subr.bf16.mxu0 0
    %4605 = vmatpush1.bf16.msra.mxu0 0
    %4606 = vmatprep.subr.bf16.mxu0 0
    %4607 = vmatpush1.bf16.msra.mxu0 %v4587
    %4608 = vmatprep.subr.bf16.mxu0 0
    %4609 = vmatpush2.bf16.msra.mxu0 0
    %4610 = vmatprep.subr.bf16.mxu0 0
    %4611 = vmatpush2.bf16.msra.mxu0 0
    %4612 = vmatprep.subr.bf16.mxu0 0
    %4613 = vmatpush2.bf16.msra.mxu0 0
    %4614 = vmatprep.subr.bf16.mxu0 0
    %4615 = vmatpush2.bf16.msra.mxu0 0
    %4616 = vmatprep.subr.bf16.mxu0 0
    %4617 = vmatpush2.bf16.msra.mxu0 0
    %4618 = vmatprep.subr.bf16.mxu0 0
    %4619 = vmatpush2.bf16.msra.mxu0 0
    %4620 = vmatprep.subr.bf16.mxu0 0
    %4621 = vmatpush2.bf16.msra.mxu0 0
    %4622 = vmatprep.subr.bf16.mxu0 0
    %4623 = vmatpush2.bf16.msra.mxu0 0
    %4624 = vmatprep.mubr.bf16.mxu0 0
    %4625 = vmatmul.mubr.bf16.gmra.mxu0 %v4590
    %v4626 = vpop.f32.mrf.mxu0
    %v4627 = vadd.f32 0.0, %v4626
    %v4628 = vpop.f32.mrf.mxu0
    %v4629 = vpop.f32.mrf.mxu0
    %v4630 = vadd.f32 0.0, %v4629
    %v4631 = vpop.f32.mrf.mxu0
    %4632 = vdwg.mxu0
    %4633 = vrot.lane.b32.xlu0 %v539, 104
    %v4634 = vpop.permute.xlu0 %4633
    %v4637 = vsel %vm937, %v4487, 0
    %4639 = vmatprep.subr.bf16.mxu0 0
    %4640 = vmatpush1.bf16.msra.mxu0 0
    %4641 = vmatprep.subr.bf16.mxu0 0
    %4642 = vmatpush1.bf16.msra.mxu0 0
    %4643 = vmatprep.subr.bf16.mxu0 0
    %4644 = vmatpush1.bf16.msra.mxu0 0
    %4645 = vmatprep.subr.bf16.mxu0 0
    %4646 = vmatpush1.bf16.msra.mxu0 0
    %4647 = vmatprep.subr.bf16.mxu0 0
    %4648 = vmatpush1.bf16.msra.mxu0 0
    %4649 = vmatprep.subr.bf16.mxu0 0
    %4650 = vmatpush1.bf16.msra.mxu0 0
    %4651 = vmatprep.subr.bf16.mxu0 0
    %4652 = vmatpush1.bf16.msra.mxu0 0
    %4653 = vmatprep.subr.bf16.mxu0 0
    %4654 = vmatpush1.bf16.msra.mxu0 %v4634
    %4655 = vmatprep.subr.bf16.mxu0 0
    %4656 = vmatpush2.bf16.msra.mxu0 0
    %4657 = vmatprep.subr.bf16.mxu0 0
    %4658 = vmatpush2.bf16.msra.mxu0 0
    %4659 = vmatprep.subr.bf16.mxu0 0
    %4660 = vmatpush2.bf16.msra.mxu0 0
    %4661 = vmatprep.subr.bf16.mxu0 0
    %4662 = vmatpush2.bf16.msra.mxu0 0
    %4663 = vmatprep.subr.bf16.mxu0 0
    %4664 = vmatpush2.bf16.msra.mxu0 0
    %4665 = vmatprep.subr.bf16.mxu0 0
    %4666 = vmatpush2.bf16.msra.mxu0 0
    %4667 = vmatprep.subr.bf16.mxu0 0
    %4668 = vmatpush2.bf16.msra.mxu0 0
    %4669 = vmatprep.subr.bf16.mxu0 0
    %4670 = vmatpush2.bf16.msra.mxu0 0
    %4671 = vmatprep.mubr.bf16.mxu0 0
    %4672 = vmatmul.mubr.bf16.gmra.mxu0 %v4637
    %v4673 = vpop.f32.mrf.mxu0
    %v4674 = vadd.f32 0.0, %v4673
    %v4675 = vpop.f32.mrf.mxu0
    %v4676 = vpop.f32.mrf.mxu0
    %v4677 = vadd.f32 0.0, %v4676
    %v4678 = vpop.f32.mrf.mxu0
    %4679 = vdwg.mxu0
    %4680 = vrot.lane.b32.xlu0 %v540, 104
    %v4681 = vpop.permute.xlu0 %4680
    %v4684 = vsel %vm937, %v4488, 0
    %4686 = vmatprep.subr.bf16.mxu0 0
    %4687 = vmatpush1.bf16.msra.mxu0 0
    %4688 = vmatprep.subr.bf16.mxu0 0
    %4689 = vmatpush1.bf16.msra.mxu0 0
    %4690 = vmatprep.subr.bf16.mxu0 0
    %4691 = vmatpush1.bf16.msra.mxu0 0
    %4692 = vmatprep.subr.bf16.mxu0 0
    %4693 = vmatpush1.bf16.msra.mxu0 0
    %4694 = vmatprep.subr.bf16.mxu0 0
    %4695 = vmatpush1.bf16.msra.mxu0 0
    %4696 = vmatprep.subr.bf16.mxu0 0
    %4697 = vmatpush1.bf16.msra.mxu0 0
    %4698 = vmatprep.subr.bf16.mxu0 0
    %4699 = vmatpush1.bf16.msra.mxu0 0
    %4700 = vmatprep.subr.bf16.mxu0 0
    %4701 = vmatpush1.bf16.msra.mxu0 %v4681
    %4702 = vmatprep.subr.bf16.mxu0 0
    %4703 = vmatpush2.bf16.msra.mxu0 0
    %4704 = vmatprep.subr.bf16.mxu0 0
    %4705 = vmatpush2.bf16.msra.mxu0 0
    %4706 = vmatprep.subr.bf16.mxu0 0
    %4707 = vmatpush2.bf16.msra.mxu0 0
    %4708 = vmatprep.subr.bf16.mxu0 0
    %4709 = vmatpush2.bf16.msra.mxu0 0
    %4710 = vmatprep.subr.bf16.mxu0 0
    %4711 = vmatpush2.bf16.msra.mxu0 0
    %4712 = vmatprep.subr.bf16.mxu0 0
    %4713 = vmatpush2.bf16.msra.mxu0 0
    %4714 = vmatprep.subr.bf16.mxu0 0
    %4715 = vmatpush2.bf16.msra.mxu0 0
    %4716 = vmatprep.subr.bf16.mxu0 0
    %4717 = vmatpush2.bf16.msra.mxu0 0
    %4718 = vmatprep.mubr.bf16.mxu0 0
    %4719 = vmatmul.mubr.bf16.gmra.mxu0 %v4684
    %v4720 = vpop.f32.mrf.mxu0
    %v4721 = vadd.f32 0.0, %v4720
    %v4722 = vpop.f32.mrf.mxu0
    %v4723 = vpop.f32.mrf.mxu0
    %v4724 = vadd.f32 0.0, %v4723
    %v4725 = vpop.f32.mrf.mxu0
    %4726 = vdwg.mxu0
    %4727 = vrot.lane.b32.xlu0 %v541, 104
    %v4728 = vpop.permute.xlu0 %4727
    %v4731 = vsel %vm937, %v4489, 0
    %4733 = vmatprep.subr.bf16.mxu0 0
    %4734 = vmatpush1.bf16.msra.mxu0 0
    %4735 = vmatprep.subr.bf16.mxu0 0
    %4736 = vmatpush1.bf16.msra.mxu0 0
    %4737 = vmatprep.subr.bf16.mxu0 0
    %4738 = vmatpush1.bf16.msra.mxu0 0
    %4739 = vmatprep.subr.bf16.mxu0 0
    %4740 = vmatpush1.bf16.msra.mxu0 0
    %4741 = vmatprep.subr.bf16.mxu0 0
    %4742 = vmatpush1.bf16.msra.mxu0 0
    %4743 = vmatprep.subr.bf16.mxu0 0
    %4744 = vmatpush1.bf16.msra.mxu0 0
    %4745 = vmatprep.subr.bf16.mxu0 0
    %4746 = vmatpush1.bf16.msra.mxu0 0
    %4747 = vmatprep.subr.bf16.mxu0 0
    %4748 = vmatpush1.bf16.msra.mxu0 %v4728
    %4749 = vmatprep.subr.bf16.mxu0 0
    %4750 = vmatpush2.bf16.msra.mxu0 0
    %4751 = vmatprep.subr.bf16.mxu0 0
    %4752 = vmatpush2.bf16.msra.mxu0 0
    %4753 = vmatprep.subr.bf16.mxu0 0
    %4754 = vmatpush2.bf16.msra.mxu0 0
    %4755 = vmatprep.subr.bf16.mxu0 0
    %4756 = vmatpush2.bf16.msra.mxu0 0
    %4757 = vmatprep.subr.bf16.mxu0 0
    %4758 = vmatpush2.bf16.msra.mxu0 0
    %4759 = vmatprep.subr.bf16.mxu0 0
    %4760 = vmatpush2.bf16.msra.mxu0 0
    %4761 = vmatprep.subr.bf16.mxu0 0
    %4762 = vmatpush2.bf16.msra.mxu0 0
    %4763 = vmatprep.subr.bf16.mxu0 0
    %4764 = vmatpush2.bf16.msra.mxu0 0
    %4765 = vmatprep.mubr.bf16.mxu0 0
    %4766 = vmatmul.mubr.bf16.gmra.mxu0 %v4731
    %v4767 = vpop.f32.mrf.mxu0
    %v4768 = vadd.f32 0.0, %v4767
    %v4769 = vpop.f32.mrf.mxu0
    %v4770 = vpop.f32.mrf.mxu0
    %v4771 = vadd.f32 0.0, %v4770
    %v4772 = vpop.f32.mrf.mxu0
    %4773 = vdwg.mxu0
    %4774 = vrot.lane.b32.xlu0 %v542, 104
    %v4775 = vpop.permute.xlu0 %4774
    %v4778 = vsel %vm937, %v4490, 0
    %4780 = vmatprep.subr.bf16.mxu0 0
    %4781 = vmatpush1.bf16.msra.mxu0 0
    %4782 = vmatprep.subr.bf16.mxu0 0
    %4783 = vmatpush1.bf16.msra.mxu0 0
    %4784 = vmatprep.subr.bf16.mxu0 0
    %4785 = vmatpush1.bf16.msra.mxu0 0
    %4786 = vmatprep.subr.bf16.mxu0 0
    %4787 = vmatpush1.bf16.msra.mxu0 0
    %4788 = vmatprep.subr.bf16.mxu0 0
    %4789 = vmatpush1.bf16.msra.mxu0 0
    %4790 = vmatprep.subr.bf16.mxu0 0
    %4791 = vmatpush1.bf16.msra.mxu0 0
    %4792 = vmatprep.subr.bf16.mxu0 0
    %4793 = vmatpush1.bf16.msra.mxu0 0
    %4794 = vmatprep.subr.bf16.mxu0 0
    %4795 = vmatpush1.bf16.msra.mxu0 %v4775
    %4796 = vmatprep.subr.bf16.mxu0 0
    %4797 = vmatpush2.bf16.msra.mxu0 0
    %4798 = vmatprep.subr.bf16.mxu0 0
    %4799 = vmatpush2.bf16.msra.mxu0 0
    %4800 = vmatprep.subr.bf16.mxu0 0
    %4801 = vmatpush2.bf16.msra.mxu0 0
    %4802 = vmatprep.subr.bf16.mxu0 0
    %4803 = vmatpush2.bf16.msra.mxu0 0
    %4804 = vmatprep.subr.bf16.mxu0 0
    %4805 = vmatpush2.bf16.msra.mxu0 0
    %4806 = vmatprep.subr.bf16.mxu0 0
    %4807 = vmatpush2.bf16.msra.mxu0 0
    %4808 = vmatprep.subr.bf16.mxu0 0
    %4809 = vmatpush2.bf16.msra.mxu0 0
    %4810 = vmatprep.subr.bf16.mxu0 0
    %4811 = vmatpush2.bf16.msra.mxu0 0
    %4812 = vmatprep.mubr.bf16.mxu0 0
    %4813 = vmatmul.mubr.bf16.gmra.mxu0 %v4778
    %v4814 = vpop.f32.mrf.mxu0
    %v4815 = vadd.f32 0.0, %v4814
    %v4816 = vpop.f32.mrf.mxu0
    %v4817 = vpop.f32.mrf.mxu0
    %v4818 = vadd.f32 0.0, %v4817
    %v4819 = vpop.f32.mrf.mxu0
    %4820 = vdwg.mxu0
    %4821 = vrot.lane.b32.xlu0 %v543, 104
    %v4822 = vpop.permute.xlu0 %4821
    %v4825 = vsel %vm937, %v4491, 0
    %4827 = vmatprep.subr.bf16.mxu0 0
    %4828 = vmatpush1.bf16.msra.mxu0 0
    %4829 = vmatprep.subr.bf16.mxu0 0
    %4830 = vmatpush1.bf16.msra.mxu0 0
    %4831 = vmatprep.subr.bf16.mxu0 0
    %4832 = vmatpush1.bf16.msra.mxu0 0
    %4833 = vmatprep.subr.bf16.mxu0 0
    %4834 = vmatpush1.bf16.msra.mxu0 0
    %4835 = vmatprep.subr.bf16.mxu0 0
    %4836 = vmatpush1.bf16.msra.mxu0 0
    %4837 = vmatprep.subr.bf16.mxu0 0
    %4838 = vmatpush1.bf16.msra.mxu0 0
    %4839 = vmatprep.subr.bf16.mxu0 0
    %4840 = vmatpush1.bf16.msra.mxu0 0
    %4841 = vmatprep.subr.bf16.mxu0 0
    %4842 = vmatpush1.bf16.msra.mxu0 %v4822
    %4843 = vmatprep.subr.bf16.mxu0 0
    %4844 = vmatpush2.bf16.msra.mxu0 0
    %4845 = vmatprep.subr.bf16.mxu0 0
    %4846 = vmatpush2.bf16.msra.mxu0 0
    %4847 = vmatprep.subr.bf16.mxu0 0
    %4848 = vmatpush2.bf16.msra.mxu0 0
    %4849 = vmatprep.subr.bf16.mxu0 0
    %4850 = vmatpush2.bf16.msra.mxu0 0
    %4851 = vmatprep.subr.bf16.mxu0 0
    %4852 = vmatpush2.bf16.msra.mxu0 0
    %4853 = vmatprep.subr.bf16.mxu0 0
    %4854 = vmatpush2.bf16.msra.mxu0 0
    %4855 = vmatprep.subr.bf16.mxu0 0
    %4856 = vmatpush2.bf16.msra.mxu0 0
    %4857 = vmatprep.subr.bf16.mxu0 0
    %4858 = vmatpush2.bf16.msra.mxu0 0
    %4859 = vmatprep.mubr.bf16.mxu0 0
    %4860 = vmatmul.mubr.bf16.gmra.mxu0 %v4825
    %v4861 = vpop.f32.mrf.mxu0
    %v4862 = vadd.f32 0.0, %v4861
    %v4863 = vpop.f32.mrf.mxu0
    %v4864 = vpop.f32.mrf.mxu0
    %v4865 = vadd.f32 0.0, %v4864
    %v4866 = vpop.f32.mrf.mxu0
    %4867 = vdwg.mxu0
    %v4868 = vpack.c.bf16 %v4536, %v4533
    %v4869 = vpack.c.bf16 %v4583, %v4580
    %v4870 = vpack.c.bf16 %v4630, %v4627
    %v4871 = vpack.c.bf16 %v4677, %v4674
    %v4872 = vpack.c.bf16 %v4724, %v4721
    %v4873 = vpack.c.bf16 %v4771, %v4768
    %v4874 = vpack.c.bf16 %v4818, %v4815
    %v4875 = vpack.c.bf16 %v4865, %v4862
    %s4876 = scalar_lea.vmem [#allocation5], 12
    %v4877 = vld [vmem:[%s4876] sm:$0xf]
    %v4879 = vsel %vm544, %v4868, 0
    %v4882 = vsel %vm544, %v4869, 0
    %v4885 = vsel %vm544, %v4870, 0
    %v4888 = vsel %vm544, %v4871, 0
    %v4891 = vsel %vm544, %v4872, 0
    %v4894 = vsel %vm544, %v4873, 0
    %v4897 = vsel %vm544, %v4874, 0
    %v4900 = vsel %vm544, %v4875, 0
    %v4903 = vsel %vm2525, %v4877, 0
    %4905 = vmatprep.subr.bf16.mxu0 0
    %4906 = vmatpush1.bf16.msra.mxu0 0
    %4907 = vmatprep.subr.bf16.mxu0 0
    %4908 = vmatpush1.bf16.msra.mxu0 0
    %4909 = vmatprep.subr.bf16.mxu0 0
    %4910 = vmatpush1.bf16.msra.mxu0 0
    %4911 = vmatprep.subr.bf16.mxu0 0
    %4912 = vmatpush1.bf16.msra.mxu0 0
    %4913 = vmatprep.subr.bf16.mxu0 0
    %4914 = vmatpush1.bf16.msra.mxu0 0
    %4915 = vmatprep.subr.bf16.mxu0 0
    %4916 = vmatpush1.bf16.msra.mxu0 0
    %4917 = vmatprep.subr.bf16.mxu0 0
    %4918 = vmatpush1.bf16.msra.mxu0 0
    %4919 = vmatprep.subr.bf16.mxu0 0
    %4920 = vmatpush1.bf16.msra.mxu0 %v4903
    %4921 = vmatprep.subr.bf16.mxu0 0
    %4922 = vmatpush2.bf16.msra.mxu0 0
    %4923 = vmatprep.subr.bf16.mxu0 0
    %4924 = vmatpush2.bf16.msra.mxu0 0
    %4925 = vmatprep.subr.bf16.mxu0 0
    %4926 = vmatpush2.bf16.msra.mxu0 0
    %4927 = vmatprep.subr.bf16.mxu0 0
    %4928 = vmatpush2.bf16.msra.mxu0 0
    %4929 = vmatprep.subr.bf16.mxu0 0
    %4930 = vmatpush2.bf16.msra.mxu0 0
    %4931 = vmatprep.subr.bf16.mxu0 0
    %4932 = vmatpush2.bf16.msra.mxu0 0
    %4933 = vmatprep.subr.bf16.mxu0 0
    %4934 = vmatpush2.bf16.msra.mxu0 0
    %4935 = vmatprep.subr.bf16.mxu0 0
    %4936 = vmatpush2.bf16.msra.mxu0 0
    %4937 = vmatprep.mubr.bf16.mxu0 0
    %4938 = vmatmul.mubr.bf16.gmra.mxu0 %v4879
    %v4939 = vpop.f32.mrf.mxu0
    %v4940 = vadd.f32 0.0, %v4939
    %v4941 = vpop.f32.mrf.mxu0
    %v4942 = vpop.f32.mrf.mxu0
    %v4943 = vadd.f32 0.0, %v4942
    %v4944 = vpop.f32.mrf.mxu0
    %4945 = vmatprep.mubr.bf16.mxu0 0
    %4946 = vmatmul.mubr.bf16.gmra.mxu0 %v4882
    %v4947 = vpop.f32.mrf.mxu0
    %v4948 = vadd.f32 0.0, %v4947
    %v4949 = vpop.f32.mrf.mxu0
    %v4950 = vpop.f32.mrf.mxu0
    %v4951 = vadd.f32 0.0, %v4950
    %v4952 = vpop.f32.mrf.mxu0
    %4953 = vmatprep.mubr.bf16.mxu0 0
    %4954 = vmatmul.mubr.bf16.gmra.mxu0 %v4885
    %v4955 = vpop.f32.mrf.mxu0
    %v4956 = vadd.f32 0.0, %v4955
    %v4957 = vpop.f32.mrf.mxu0
    %v4958 = vpop.f32.mrf.mxu0
    %v4959 = vadd.f32 0.0, %v4958
    %v4960 = vpop.f32.mrf.mxu0
    %4961 = vmatprep.mubr.bf16.mxu0 0
    %4962 = vmatmul.mubr.bf16.gmra.mxu0 %v4888
    %v4963 = vpop.f32.mrf.mxu0
    %v4964 = vadd.f32 0.0, %v4963
    %v4965 = vpop.f32.mrf.mxu0
    %v4966 = vpop.f32.mrf.mxu0
    %v4967 = vadd.f32 0.0, %v4966
    %v4968 = vpop.f32.mrf.mxu0
    %4969 = vmatprep.mubr.bf16.mxu0 0
    %4970 = vmatmul.mubr.bf16.gmra.mxu0 %v4891
    %v4971 = vpop.f32.mrf.mxu0
    %v4972 = vadd.f32 0.0, %v4971
    %v4973 = vpop.f32.mrf.mxu0
    %v4974 = vpop.f32.mrf.mxu0
    %v4975 = vadd.f32 0.0, %v4974
    %v4976 = vpop.f32.mrf.mxu0
    %4977 = vmatprep.mubr.bf16.mxu0 0
    %4978 = vmatmul.mubr.bf16.gmra.mxu0 %v4894
    %v4979 = vpop.f32.mrf.mxu0
    %v4980 = vadd.f32 0.0, %v4979
    %v4981 = vpop.f32.mrf.mxu0
    %v4982 = vpop.f32.mrf.mxu0
    %v4983 = vadd.f32 0.0, %v4982
    %v4984 = vpop.f32.mrf.mxu0
    %4985 = vmatprep.mubr.bf16.mxu0 0
    %4986 = vmatmul.mubr.bf16.gmra.mxu0 %v4897
    %v4987 = vpop.f32.mrf.mxu0
    %v4988 = vadd.f32 0.0, %v4987
    %v4989 = vpop.f32.mrf.mxu0
    %v4990 = vpop.f32.mrf.mxu0
    %v4991 = vadd.f32 0.0, %v4990
    %v4992 = vpop.f32.mrf.mxu0
    %4993 = vmatprep.mubr.bf16.mxu0 0
    %4994 = vmatmul.mubr.bf16.gmra.mxu0 %v4900
    %v4995 = vpop.f32.mrf.mxu0
    %v4996 = vadd.f32 0.0, %v4995
    %v4997 = vpop.f32.mrf.mxu0
    %v4998 = vpop.f32.mrf.mxu0
    %v4999 = vadd.f32 0.0, %v4998
    %v5000 = vpop.f32.mrf.mxu0
    %5001 = vdwg.mxu0
    %v5002 = vadd.f32 %v3868, %v4940
    %v5003 = vadd.f32 %v3869, %v4943
    %v5004 = vadd.f32 %v3870, %v4948
    %v5005 = vadd.f32 %v3871, %v4951
    %v5006 = vadd.f32 %v3872, %v4956
    %v5007 = vadd.f32 %v3873, %v4959
    %v5008 = vadd.f32 %v3874, %v4964
    %v5009 = vadd.f32 %v3875, %v4967
    %v5010 = vadd.f32 %v3876, %v4972
    %v5011 = vadd.f32 %v3877, %v4975
    %v5012 = vadd.f32 %v3878, %v4980
    %v5013 = vadd.f32 %v3879, %v4983
    %v5014 = vadd.f32 %v3880, %v4988
    %v5015 = vadd.f32 %v3881, %v4991
    %v5016 = vadd.f32 %v3882, %v4996
    %v5017 = vadd.f32 %v3883, %v4999
    %v5018 = vld [vmem:[%s8] sm:$0x1]
    %v5020 = vlaneseq
    %v5021 = vshrl.u32 %v5020, 7
    %v5022 = vsub.s32 0, %v5021
    %v5023 = vrot.slane %v5018, %v5022
    %v5025 = vadd.f32 %v5002, %v5023
    %v5026 = vadd.f32 %v5003, %v5023
    %v5027 = vadd.f32 %v5004, %v5023
    %v5028 = vadd.f32 %v5005, %v5023
    %v5029 = vadd.f32 %v5006, %v5023
    %v5030 = vadd.f32 %v5007, %v5023
    %v5031 = vadd.f32 %v5008, %v5023
    %v5032 = vadd.f32 %v5009, %v5023
    %v5033 = vadd.f32 %v5010, %v5023
    %v5034 = vadd.f32 %v5011, %v5023
    %v5035 = vadd.f32 %v5012, %v5023
    %v5036 = vadd.f32 %v5013, %v5023
    %v5037 = vadd.f32 %v5014, %v5023
    %v5038 = vadd.f32 %v5015, %v5023
    %v5039 = vadd.f32 %v5016, %v5023
    %v5040 = vadd.f32 %v5017, %v5023
    %v5041 = vadd.f32 %v111, %v5025
    %v5042 = vadd.f32 %v112, %v5026
    %v5043 = vadd.f32 %v113, %v5027
    %v5044 = vadd.f32 %v114, %v5028
    %v5045 = vadd.f32 %v115, %v5029
    %v5046 = vadd.f32 %v116, %v5030
    %v5047 = vadd.f32 %v117, %v5031
    %v5048 = vadd.f32 %v118, %v5032
    %v5049 = vadd.f32 %v119, %v5033
    %v5050 = vadd.f32 %v120, %v5034
    %v5051 = vadd.f32 %v121, %v5035
    %v5052 = vadd.f32 %v122, %v5036
    %v5053 = vadd.f32 %v123, %v5037
    %v5054 = vadd.f32 %v124, %v5038
    %v5055 = vadd.f32 %v125, %v5039
    %v5056 = vadd.f32 %v126, %v5040
    %v5057 = vld [vmem:[%s11] sm:$0x1]
    %v5059 = vlaneseq
    %v5060 = vshrl.u32 %v5059, 7
    %v5061 = vsub.s32 0, %v5060
    %v5062 = vrot.slane %v5057, %v5061
    %v5064 = vsub.f32 %v5041, %v5062
    %v5065 = vsub.f32 %v5042, %v5062
    %v5066 = vsub.f32 %v5043, %v5062
    %v5067 = vsub.f32 %v5044, %v5062
    %v5068 = vsub.f32 %v5045, %v5062
    %v5069 = vsub.f32 %v5046, %v5062
    %v5070 = vsub.f32 %v5047, %v5062
    %v5071 = vsub.f32 %v5048, %v5062
    %v5072 = vsub.f32 %v5049, %v5062
    %v5073 = vsub.f32 %v5050, %v5062
    %v5074 = vsub.f32 %v5051, %v5062
    %v5075 = vsub.f32 %v5052, %v5062
    %v5076 = vsub.f32 %v5053, %v5062
    %v5077 = vsub.f32 %v5054, %v5062
    %v5078 = vsub.f32 %v5055, %v5062
    %v5079 = vsub.f32 %v5056, %v5062
    %v5080 = vld [vmem:[%s12] sm:$0x1]
    %v5081 = vadd.f32 %v5080, 1e-05
    %v5082 = vrsqrt.pop %v5081
    %v5084 = vlaneseq
    %v5085 = vshrl.u32 %v5084, 7
    %v5086 = vsub.s32 0, %v5085
    %v5087 = vrot.slane %v5082, %v5086
    %v5089 = vmul.f32 %v5064, %v5087
    %v5090 = vmul.f32 %v5065, %v5087
    %v5091 = vmul.f32 %v5066, %v5087
    %v5092 = vmul.f32 %v5067, %v5087
    %v5093 = vmul.f32 %v5068, %v5087
    %v5094 = vmul.f32 %v5069, %v5087
    %v5095 = vmul.f32 %v5070, %v5087
    %v5096 = vmul.f32 %v5071, %v5087
    %v5097 = vmul.f32 %v5072, %v5087
    %v5098 = vmul.f32 %v5073, %v5087
    %v5099 = vmul.f32 %v5074, %v5087
    %v5100 = vmul.f32 %v5075, %v5087
    %v5101 = vmul.f32 %v5076, %v5087
    %v5102 = vmul.f32 %v5077, %v5087
    %v5103 = vmul.f32 %v5078, %v5087
    %v5104 = vmul.f32 %v5079, %v5087
    %v5105 = vld [vmem:[%s9] sm:$0x1]
    %v5107 = vlaneseq
    %v5108 = vshrl.u32 %v5107, 7
    %v5109 = vsub.s32 0, %v5108
    %v5110 = vrot.slane %v5105, %v5109
    %v5112 = vmul.f32 %v5089, %v5110
    %v5113 = vmul.f32 %v5090, %v5110
    %v5114 = vmul.f32 %v5091, %v5110
    %v5115 = vmul.f32 %v5092, %v5110
    %v5116 = vmul.f32 %v5093, %v5110
    %v5117 = vmul.f32 %v5094, %v5110
    %v5118 = vmul.f32 %v5095, %v5110
    %v5119 = vmul.f32 %v5096, %v5110
    %v5120 = vmul.f32 %v5097, %v5110
    %v5121 = vmul.f32 %v5098, %v5110
    %v5122 = vmul.f32 %v5099, %v5110
    %v5123 = vmul.f32 %v5100, %v5110
    %v5124 = vmul.f32 %v5101, %v5110
    %v5125 = vmul.f32 %v5102, %v5110
    %v5126 = vmul.f32 %v5103, %v5110
    %v5127 = vmul.f32 %v5104, %v5110
    %v5128 = vld [vmem:[%s10] sm:$0x1]
    %v5130 = vlaneseq
    %v5131 = vshrl.u32 %v5130, 7
    %v5132 = vsub.s32 0, %v5131
    %v5133 = vrot.slane %v5128, %v5132
    %v5135 = vadd.f32 %v5112, %v5133
    %v5136 = vadd.f32 %v5113, %v5133
    %v5137 = vadd.f32 %v5114, %v5133
    %v5138 = vadd.f32 %v5115, %v5133
    %v5139 = vadd.f32 %v5116, %v5133
    %v5140 = vadd.f32 %v5117, %v5133
    %v5141 = vadd.f32 %v5118, %v5133
    %v5142 = vadd.f32 %v5119, %v5133
    %v5143 = vadd.f32 %v5120, %v5133
    %v5144 = vadd.f32 %v5121, %v5133
    %v5145 = vadd.f32 %v5122, %v5133
    %v5146 = vadd.f32 %v5123, %v5133
    %v5147 = vadd.f32 %v5124, %v5133
    %v5148 = vadd.f32 %v5125, %v5133
    %v5149 = vadd.f32 %v5126, %v5133
    %v5150 = vadd.f32 %v5127, %v5133
    %v5151 = vpack.c.bf16 %v5136, %v5135
    %v5152 = vpack.c.bf16 %v5138, %v5137
    %v5153 = vpack.c.bf16 %v5140, %v5139
    %v5154 = vpack.c.bf16 %v5142, %v5141
    %v5155 = vpack.c.bf16 %v5144, %v5143
    %v5156 = vpack.c.bf16 %v5146, %v5145
    %v5157 = vpack.c.bf16 %v5148, %v5147
    %v5158 = vpack.c.bf16 %v5150, %v5149
    %v5159 = vld [vmem:[#allocation7] sm:$0xf]
    %v5160 = vld [vmem:[#allocation7 + $0x4] sm:$0xf]
    %v5161 = vld [vmem:[#allocation7 + $0x8] sm:$0xf]
    %v5162 = vld [vmem:[#allocation7 + $0xc] sm:$0xf]
    %v5163 = vld [vmem:[%s14] sm:$0x1]
    %v5165 = vlaneseq
    %v5166 = vshrl.u32 %v5165, 7
    %v5167 = vsub.s32 0, %v5166
    %v5168 = vrot.slane %v5163, %v5167
    %v5174 = vunpack.c.l.b16 %v5159
    %v5175 = vunpack.c.l.b16 %v5160
    %v5176 = vunpack.c.l.b16 %v5161
    %v5177 = vunpack.c.l.b16 %v5162
    %v5178 = vpack.c.b16 %v5175, %v5174
    %v5179 = vpack.c.b16 %v5177, %v5176
    %v5183 = vsel %vm158, %v5151, 0
    %v5186 = vsel %vm158, %v5152, 0
    %v5189 = vsel %vm158, %v5153, 0
    %v5192 = vsel %vm158, %v5154, 0
    %v5195 = vsel %vm158, %v5155, 0
    %v5198 = vsel %vm158, %v5156, 0
    %v5201 = vsel %vm158, %v5157, 0
    %v5204 = vsel %vm158, %v5158, 0
    %5206 = vmatprep.subr.bf16.mxu0 0
    %5207 = vmatpush1.bf16.msra.mxu0 0
    %5208 = vmatprep.subr.bf16.mxu0 0
    %5209 = vmatpush1.bf16.msra.mxu0 0
    %5210 = vmatprep.subr.bf16.mxu0 0
    %5211 = vmatpush1.bf16.msra.mxu0 0
    %5212 = vmatprep.subr.bf16.mxu0 0
    %5213 = vmatpush1.bf16.msra.mxu0 0
    %5214 = vmatprep.subr.bf16.mxu0 0
    %5215 = vmatpush1.bf16.msra.mxu0 0
    %5216 = vmatprep.subr.bf16.mxu0 0
    %5217 = vmatpush1.bf16.msra.mxu0 0
    %5218 = vmatprep.subr.bf16.mxu0 0
    %5219 = vmatpush1.bf16.msra.mxu0 %v5179
    %5220 = vmatprep.subr.bf16.mxu0 0
    %5221 = vmatpush1.bf16.msra.mxu0 %v5178
    %5222 = vmatprep.subr.bf16.mxu0 0
    %5223 = vmatpush2.bf16.msra.mxu0 0
    %5224 = vmatprep.subr.bf16.mxu0 0
    %5225 = vmatpush2.bf16.msra.mxu0 0
    %5226 = vmatprep.subr.bf16.mxu0 0
    %5227 = vmatpush2.bf16.msra.mxu0 0
    %5228 = vmatprep.subr.bf16.mxu0 0
    %5229 = vmatpush2.bf16.msra.mxu0 0
    %5230 = vmatprep.subr.bf16.mxu0 0
    %5231 = vmatpush2.bf16.msra.mxu0 0
    %5232 = vmatprep.subr.bf16.mxu0 0
    %5233 = vmatpush2.bf16.msra.mxu0 0
    %5234 = vmatprep.subr.bf16.mxu0 0
    %5235 = vmatpush2.bf16.msra.mxu0 0
    %5236 = vmatprep.subr.bf16.mxu0 0
    %5237 = vmatpush2.bf16.msra.mxu0 0
    %5238 = vmatprep.mubr.bf16.mxu0 0
    %5239 = vmatmul.mubr.bf16.gmra.mxu0 %v5183
    %v5240 = vpop.f32.mrf.mxu0
    %v5241 = vadd.f32 %v5168, %v5240
    %v5242 = vpop.f32.mrf.mxu0
    %v5243 = vpop.f32.mrf.mxu0
    %v5244 = vadd.f32 %v5168, %v5243
    %v5245 = vpop.f32.mrf.mxu0
    %5246 = vmatprep.mubr.bf16.mxu0 0
    %5247 = vmatmul.mubr.bf16.gmra.mxu0 %v5186
    %v5248 = vpop.f32.mrf.mxu0
    %v5249 = vadd.f32 %v5168, %v5248
    %v5250 = vpop.f32.mrf.mxu0
    %v5251 = vpop.f32.mrf.mxu0
    %v5252 = vadd.f32 %v5168, %v5251
    %v5253 = vpop.f32.mrf.mxu0
    %5254 = vmatprep.mubr.bf16.mxu0 0
    %5255 = vmatmul.mubr.bf16.gmra.mxu0 %v5189
    %v5256 = vpop.f32.mrf.mxu0
    %v5257 = vadd.f32 %v5168, %v5256
    %v5258 = vpop.f32.mrf.mxu0
    %v5259 = vpop.f32.mrf.mxu0
    %v5260 = vadd.f32 %v5168, %v5259
    %v5261 = vpop.f32.mrf.mxu0
    %5262 = vmatprep.mubr.bf16.mxu0 0
    %5263 = vmatmul.mubr.bf16.gmra.mxu0 %v5192
    %v5264 = vpop.f32.mrf.mxu0
    %v5265 = vadd.f32 %v5168, %v5264
    %v5266 = vpop.f32.mrf.mxu0
    %v5267 = vpop.f32.mrf.mxu0
    %v5268 = vadd.f32 %v5168, %v5267
    %v5269 = vpop.f32.mrf.mxu0
    %5270 = vmatprep.mubr.bf16.mxu0 0
    %5271 = vmatmul.mubr.bf16.gmra.mxu0 %v5195
    %v5272 = vpop.f32.mrf.mxu0
    %v5273 = vadd.f32 %v5168, %v5272
    %v5274 = vpop.f32.mrf.mxu0
    %v5275 = vpop.f32.mrf.mxu0
    %v5276 = vadd.f32 %v5168, %v5275
    %v5277 = vpop.f32.mrf.mxu0
    %5278 = vmatprep.mubr.bf16.mxu0 0
    %5279 = vmatmul.mubr.bf16.gmra.mxu0 %v5198
    %v5280 = vpop.f32.mrf.mxu0
    %v5281 = vadd.f32 %v5168, %v5280
    %v5282 = vpop.f32.mrf.mxu0
    %v5283 = vpop.f32.mrf.mxu0
    %v5284 = vadd.f32 %v5168, %v5283
    %v5285 = vpop.f32.mrf.mxu0
    %5286 = vmatprep.mubr.bf16.mxu0 0
    %5287 = vmatmul.mubr.bf16.gmra.mxu0 %v5201
    %v5288 = vpop.f32.mrf.mxu0
    %v5289 = vadd.f32 %v5168, %v5288
    %v5290 = vpop.f32.mrf.mxu0
    %v5291 = vpop.f32.mrf.mxu0
    %v5292 = vadd.f32 %v5168, %v5291
    %v5293 = vpop.f32.mrf.mxu0
    %5294 = vmatprep.mubr.bf16.mxu0 0
    %5295 = vmatmul.mubr.bf16.gmra.mxu0 %v5204
    %v5296 = vpop.f32.mrf.mxu0
    %v5297 = vadd.f32 %v5168, %v5296
    %v5298 = vpop.f32.mrf.mxu0
    %v5299 = vpop.f32.mrf.mxu0
    %v5300 = vadd.f32 %v5168, %v5299
    %v5301 = vpop.f32.mrf.mxu0
    %5302 = vdwg.mxu0
    %v5303 = vmul.f32 %v5241, 0.5
    %v5304 = vmul.f32 %v5244, 0.5
    %v5305 = vmul.f32 %v5249, 0.5
    %v5306 = vmul.f32 %v5252, 0.5
    %v5307 = vmul.f32 %v5257, 0.5
    %v5308 = vmul.f32 %v5260, 0.5
    %v5309 = vmul.f32 %v5265, 0.5
    %v5310 = vmul.f32 %v5268, 0.5
    %v5311 = vmul.f32 %v5273, 0.5
    %v5312 = vmul.f32 %v5276, 0.5
    %v5313 = vmul.f32 %v5281, 0.5
    %v5314 = vmul.f32 %v5284, 0.5
    %v5315 = vmul.f32 %v5289, 0.5
    %v5316 = vmul.f32 %v5292, 0.5
    %v5317 = vmul.f32 %v5297, 0.5
    %v5318 = vmul.f32 %v5300, 0.5
    %v5319 = vmul.f32 %v5241, 0.044715
    %v5320 = vmul.f32 %v5244, 0.044715
    %v5321 = vmul.f32 %v5249, 0.044715
    %v5322 = vmul.f32 %v5252, 0.044715
    %v5323 = vmul.f32 %v5257, 0.044715
    %v5324 = vmul.f32 %v5260, 0.044715
    %v5325 = vmul.f32 %v5265, 0.044715
    %v5326 = vmul.f32 %v5268, 0.044715
    %v5327 = vmul.f32 %v5273, 0.044715
    %v5328 = vmul.f32 %v5276, 0.044715
    %v5329 = vmul.f32 %v5281, 0.044715
    %v5330 = vmul.f32 %v5284, 0.044715
    %v5331 = vmul.f32 %v5289, 0.044715
    %v5332 = vmul.f32 %v5292, 0.044715
    %v5333 = vmul.f32 %v5297, 0.044715
    %v5334 = vmul.f32 %v5300, 0.044715
    %v5335 = vmul.f32 %v5319, %v5241
    %v5336 = vmul.f32 %v5320, %v5244
    %v5337 = vmul.f32 %v5321, %v5249
    %v5338 = vmul.f32 %v5322, %v5252
    %v5339 = vmul.f32 %v5323, %v5257
    %v5340 = vmul.f32 %v5324, %v5260
    %v5341 = vmul.f32 %v5325, %v5265
    %v5342 = vmul.f32 %v5326, %v5268
    %v5343 = vmul.f32 %v5327, %v5273
    %v5344 = vmul.f32 %v5328, %v5276
    %v5345 = vmul.f32 %v5329, %v5281
    %v5346 = vmul.f32 %v5330, %v5284
    %v5347 = vmul.f32 %v5331, %v5289
    %v5348 = vmul.f32 %v5332, %v5292
    %v5349 = vmul.f32 %v5333, %v5297
    %v5350 = vmul.f32 %v5334, %v5300
    %v5351 = vmul.f32 %v5335, %v5241
    %v5352 = vmul.f32 %v5336, %v5244
    %v5353 = vmul.f32 %v5337, %v5249
    %v5354 = vmul.f32 %v5338, %v5252
    %v5355 = vmul.f32 %v5339, %v5257
    %v5356 = vmul.f32 %v5340, %v5260
    %v5357 = vmul.f32 %v5341, %v5265
    %v5358 = vmul.f32 %v5342, %v5268
    %v5359 = vmul.f32 %v5343, %v5273
    %v5360 = vmul.f32 %v5344, %v5276
    %v5361 = vmul.f32 %v5345, %v5281
    %v5362 = vmul.f32 %v5346, %v5284
    %v5363 = vmul.f32 %v5347, %v5289
    %v5364 = vmul.f32 %v5348, %v5292
    %v5365 = vmul.f32 %v5349, %v5297
    %v5366 = vmul.f32 %v5350, %v5300
    %v5367 = vadd.f32 %v5241, %v5351
    %v5368 = vadd.f32 %v5244, %v5352
    %v5369 = vadd.f32 %v5249, %v5353
    %v5370 = vadd.f32 %v5252, %v5354
    %v5371 = vadd.f32 %v5257, %v5355
    %v5372 = vadd.f32 %v5260, %v5356
    %v5373 = vadd.f32 %v5265, %v5357
    %v5374 = vadd.f32 %v5268, %v5358
    %v5375 = vadd.f32 %v5273, %v5359
    %v5376 = vadd.f32 %v5276, %v5360
    %v5377 = vadd.f32 %v5281, %v5361
    %v5378 = vadd.f32 %v5284, %v5362
    %v5379 = vadd.f32 %v5289, %v5363
    %v5380 = vadd.f32 %v5292, %v5364
    %v5381 = vadd.f32 %v5297, %v5365
    %v5382 = vadd.f32 %v5300, %v5366
    %v5383 = vmul.f32 %v5367, 0.7978846
    %v5384 = vmul.f32 %v5368, 0.7978846
    %v5385 = vmul.f32 %v5369, 0.7978846
    %v5386 = vmul.f32 %v5370, 0.7978846
    %v5387 = vmul.f32 %v5371, 0.7978846
    %v5388 = vmul.f32 %v5372, 0.7978846
    %v5389 = vmul.f32 %v5373, 0.7978846
    %v5390 = vmul.f32 %v5374, 0.7978846
    %v5391 = vmul.f32 %v5375, 0.7978846
    %v5392 = vmul.f32 %v5376, 0.7978846
    %v5393 = vmul.f32 %v5377, 0.7978846
    %v5394 = vmul.f32 %v5378, 0.7978846
    %v5395 = vmul.f32 %v5379, 0.7978846
    %v5396 = vmul.f32 %v5380, 0.7978846
    %v5397 = vmul.f32 %v5381, 0.7978846
    %v5398 = vmul.f32 %v5382, 0.7978846
    %v5399 = vtanh.pop %v5383
    %v5400 = vtanh.pop %v5384
    %v5401 = vtanh.pop %v5385
    %v5402 = vtanh.pop %v5386
    %v5403 = vtanh.pop %v5387
    %v5404 = vtanh.pop %v5388
    %v5405 = vtanh.pop %v5389
    %v5406 = vtanh.pop %v5390
    %v5407 = vtanh.pop %v5391
    %v5408 = vtanh.pop %v5392
    %v5409 = vtanh.pop %v5393
    %v5410 = vtanh.pop %v5394
    %v5411 = vtanh.pop %v5395
    %v5412 = vtanh.pop %v5396
    %v5413 = vtanh.pop %v5397
    %v5414 = vtanh.pop %v5398
    %v5415 = vadd.f32 %v5399, 1.0
    %v5416 = vadd.f32 %v5400, 1.0
    %v5417 = vadd.f32 %v5401, 1.0
    %v5418 = vadd.f32 %v5402, 1.0
    %v5419 = vadd.f32 %v5403, 1.0
    %v5420 = vadd.f32 %v5404, 1.0
    %v5421 = vadd.f32 %v5405, 1.0
    %v5422 = vadd.f32 %v5406, 1.0
    %v5423 = vadd.f32 %v5407, 1.0
    %v5424 = vadd.f32 %v5408, 1.0
    %v5425 = vadd.f32 %v5409, 1.0
    %v5426 = vadd.f32 %v5410, 1.0
    %v5427 = vadd.f32 %v5411, 1.0
    %v5428 = vadd.f32 %v5412, 1.0
    %v5429 = vadd.f32 %v5413, 1.0
    %v5430 = vadd.f32 %v5414, 1.0
    %v5431 = vmul.f32 %v5303, %v5415
    %v5432 = vmul.f32 %v5304, %v5416
    %v5433 = vmul.f32 %v5305, %v5417
    %v5434 = vmul.f32 %v5306, %v5418
    %v5435 = vmul.f32 %v5307, %v5419
    %v5436 = vmul.f32 %v5308, %v5420
    %v5437 = vmul.f32 %v5309, %v5421
    %v5438 = vmul.f32 %v5310, %v5422
    %v5439 = vmul.f32 %v5311, %v5423
    %v5440 = vmul.f32 %v5312, %v5424
    %v5441 = vmul.f32 %v5313, %v5425
    %v5442 = vmul.f32 %v5314, %v5426
    %v5443 = vmul.f32 %v5315, %v5427
    %v5444 = vmul.f32 %v5316, %v5428
    %v5445 = vmul.f32 %v5317, %v5429
    %v5446 = vmul.f32 %v5318, %v5430
    %v5447 = vpack.c.bf16 %v5432, %v5431
    %v5448 = vpack.c.bf16 %v5434, %v5433
    %v5449 = vpack.c.bf16 %v5436, %v5435
    %v5450 = vpack.c.bf16 %v5438, %v5437
    %v5451 = vpack.c.bf16 %v5440, %v5439
    %v5452 = vpack.c.bf16 %v5442, %v5441
    %v5453 = vpack.c.bf16 %v5444, %v5443
    %v5454 = vpack.c.bf16 %v5446, %v5445
    %v5455 = vld [vmem:[%s15] sm:$0xf]
    %v5456 = vld [vmem:[%s15 + $0x4] sm:$0xf]
    %v5457 = vld [vmem:[%s15 + $0x8] sm:$0xf]
    %v5458 = vld [vmem:[%s15 + $0xc] sm:$0xf]
    %v5459 = vld [vmem:[%s15 + $0x10] sm:$0xf]
    %v5460 = vld [vmem:[%s15 + $0x14] sm:$0xf]
    %v5461 = vld [vmem:[%s15 + $0x18] sm:$0xf]
    %v5462 = vld [vmem:[%s15 + $0x1c] sm:$0xf]
    %v5463 = vld [vmem:[%s16] sm:$0x1]
    %v5465 = vlaneseq
    %v5466 = vshrl.u32 %v5465, 7
    %v5467 = vsub.s32 0, %v5466
    %v5468 = vrot.slane %v5463, %v5467
    %v5478 = vunpack.c.l.b16 %v5455
    %v5479 = vunpack.c.l.b16 %v5456
    %v5480 = vunpack.c.l.b16 %v5457
    %v5481 = vunpack.c.l.b16 %v5458
    %v5482 = vunpack.c.l.b16 %v5459
    %v5483 = vunpack.c.l.b16 %v5460
    %v5484 = vunpack.c.l.b16 %v5461
    %v5485 = vunpack.c.l.b16 %v5462
    %v5486 = vpack.c.b16 %v5479, %v5478
    %v5487 = vpack.c.b16 %v5481, %v5480
    %v5488 = vpack.c.b16 %v5483, %v5482
    %v5489 = vpack.c.b16 %v5485, %v5484
    %vm5494 = vcmask 523264
    %v5496 = vsel %vm5494, %v5447, 0
    %v5499 = vsel %vm5494, %v5448, 0
    %v5502 = vsel %vm5494, %v5449, 0
    %v5505 = vsel %vm5494, %v5450, 0
    %v5508 = vsel %vm5494, %v5451, 0
    %v5511 = vsel %vm5494, %v5452, 0
    %v5514 = vsel %vm5494, %v5453, 0
    %v5517 = vsel %vm5494, %v5454, 0
    %5519 = vmatprep.subr.bf16.mxu0 0
    %5520 = vmatpush1.bf16.msra.mxu0 0
    %5521 = vmatprep.subr.bf16.mxu0 0
    %5522 = vmatpush1.bf16.msra.mxu0 0
    %5523 = vmatprep.subr.bf16.mxu0 0
    %5524 = vmatpush1.bf16.msra.mxu0 0
    %5525 = vmatprep.subr.bf16.mxu0 0
    %5526 = vmatpush1.bf16.msra.mxu0 0
    %5527 = vmatprep.subr.bf16.mxu0 0
    %5528 = vmatpush1.bf16.msra.mxu0 %v5489
    %5529 = vmatprep.subr.bf16.mxu0 0
    %5530 = vmatpush1.bf16.msra.mxu0 %v5488
    %5531 = vmatprep.subr.bf16.mxu0 0
    %5532 = vmatpush1.bf16.msra.mxu0 %v5487
    %5533 = vmatprep.subr.bf16.mxu0 0
    %5534 = vmatpush1.bf16.msra.mxu0 %v5486
    %5535 = vmatprep.subr.bf16.mxu0 0
    %5536 = vmatpush2.bf16.msra.mxu0 0
    %5537 = vmatprep.subr.bf16.mxu0 0
    %5538 = vmatpush2.bf16.msra.mxu0 0
    %5539 = vmatprep.subr.bf16.mxu0 0
    %5540 = vmatpush2.bf16.msra.mxu0 0
    %5541 = vmatprep.subr.bf16.mxu0 0
    %5542 = vmatpush2.bf16.msra.mxu0 0
    %5543 = vmatprep.subr.bf16.mxu0 0
    %5544 = vmatpush2.bf16.msra.mxu0 0
    %5545 = vmatprep.subr.bf16.mxu0 0
    %5546 = vmatpush2.bf16.msra.mxu0 0
    %5547 = vmatprep.subr.bf16.mxu0 0
    %5548 = vmatpush2.bf16.msra.mxu0 0
    %5549 = vmatprep.subr.bf16.mxu0 0
    %5550 = vmatpush2.bf16.msra.mxu0 0
    %5551 = vmatprep.mubr.bf16.mxu0 0
    %5552 = vmatmul.mubr.bf16.gmra.mxu0 %v5496
    %v5553 = vpop.f32.mrf.mxu0
    %v5554 = vadd.f32 %v5468, %v5553
    %v5555 = vpop.f32.mrf.mxu0
    %v5556 = vpop.f32.mrf.mxu0
    %v5557 = vadd.f32 %v5468, %v5556
    %v5558 = vpop.f32.mrf.mxu0
    %5559 = vmatprep.mubr.bf16.mxu0 0
    %5560 = vmatmul.mubr.bf16.gmra.mxu0 %v5499
    %v5561 = vpop.f32.mrf.mxu0
    %v5562 = vadd.f32 %v5468, %v5561
    %v5563 = vpop.f32.mrf.mxu0
    %v5564 = vpop.f32.mrf.mxu0
    %v5565 = vadd.f32 %v5468, %v5564
    %v5566 = vpop.f32.mrf.mxu0
    %5567 = vmatprep.mubr.bf16.mxu0 0
    %5568 = vmatmul.mubr.bf16.gmra.mxu0 %v5502
    %v5569 = vpop.f32.mrf.mxu0
    %v5570 = vadd.f32 %v5468, %v5569
    %v5571 = vpop.f32.mrf.mxu0
    %v5572 = vpop.f32.mrf.mxu0
    %v5573 = vadd.f32 %v5468, %v5572
    %v5574 = vpop.f32.mrf.mxu0
    %5575 = vmatprep.mubr.bf16.mxu0 0
    %5576 = vmatmul.mubr.bf16.gmra.mxu0 %v5505
    %v5577 = vpop.f32.mrf.mxu0
    %v5578 = vadd.f32 %v5468, %v5577
    %v5579 = vpop.f32.mrf.mxu0
    %v5580 = vpop.f32.mrf.mxu0
    %v5581 = vadd.f32 %v5468, %v5580
    %v5582 = vpop.f32.mrf.mxu0
    %5583 = vmatprep.mubr.bf16.mxu0 0
    %5584 = vmatmul.mubr.bf16.gmra.mxu0 %v5508
    %v5585 = vpop.f32.mrf.mxu0
    %v5586 = vadd.f32 %v5468, %v5585
    %v5587 = vpop.f32.mrf.mxu0
    %v5588 = vpop.f32.mrf.mxu0
    %v5589 = vadd.f32 %v5468, %v5588
    %v5590 = vpop.f32.mrf.mxu0
    %5591 = vmatprep.mubr.bf16.mxu0 0
    %5592 = vmatmul.mubr.bf16.gmra.mxu0 %v5511
    %v5593 = vpop.f32.mrf.mxu0
    %v5594 = vadd.f32 %v5468, %v5593
    %v5595 = vpop.f32.mrf.mxu0
    %v5596 = vpop.f32.mrf.mxu0
    %v5597 = vadd.f32 %v5468, %v5596
    %v5598 = vpop.f32.mrf.mxu0
    %5599 = vmatprep.mubr.bf16.mxu0 0
    %5600 = vmatmul.mubr.bf16.gmra.mxu0 %v5514
    %v5601 = vpop.f32.mrf.mxu0
    %v5602 = vadd.f32 %v5468, %v5601
    %v5603 = vpop.f32.mrf.mxu0
    %v5604 = vpop.f32.mrf.mxu0
    %v5605 = vadd.f32 %v5468, %v5604
    %v5606 = vpop.f32.mrf.mxu0
    %5607 = vmatprep.mubr.bf16.mxu0 0
    %5608 = vmatmul.mubr.bf16.gmra.mxu0 %v5517
    %v5609 = vpop.f32.mrf.mxu0
    %v5610 = vadd.f32 %v5468, %v5609
    %v5611 = vpop.f32.mrf.mxu0
    %v5612 = vpop.f32.mrf.mxu0
    %v5613 = vadd.f32 %v5468, %v5612
    %v5614 = vpop.f32.mrf.mxu0
    %5615 = vdwg.mxu0
    %v5616 = vadd.f32 %v5135, %v5554
    %v5617 = vadd.f32 %v5136, %v5557
    %v5618 = vadd.f32 %v5137, %v5562
    %v5619 = vadd.f32 %v5138, %v5565
    %v5620 = vadd.f32 %v5139, %v5570
    %v5621 = vadd.f32 %v5140, %v5573
    %v5622 = vadd.f32 %v5141, %v5578
    %v5623 = vadd.f32 %v5142, %v5581
    %v5624 = vadd.f32 %v5143, %v5586
    %v5625 = vadd.f32 %v5144, %v5589
    %v5626 = vadd.f32 %v5145, %v5594
    %v5627 = vadd.f32 %v5146, %v5597
    %v5628 = vadd.f32 %v5147, %v5602
    %v5629 = vadd.f32 %v5148, %v5605
    %v5630 = vadd.f32 %v5149, %v5610
    %v5631 = vadd.f32 %v5150, %v5613
    %v5632 = vld [vmem:[%s19] sm:$0x1]
    %v5634 = vlaneseq
    %v5635 = vshrl.u32 %v5634, 7
    %v5636 = vsub.s32 0, %v5635
    %v5637 = vrot.slane %v5632, %v5636
    %v5639 = vsub.f32 %v5616, %v5637
    %v5640 = vsub.f32 %v5617, %v5637
    %v5641 = vsub.f32 %v5618, %v5637
    %v5642 = vsub.f32 %v5619, %v5637
    %v5643 = vsub.f32 %v5620, %v5637
    %v5644 = vsub.f32 %v5621, %v5637
    %v5645 = vsub.f32 %v5622, %v5637
    %v5646 = vsub.f32 %v5623, %v5637
    %v5647 = vsub.f32 %v5624, %v5637
    %v5648 = vsub.f32 %v5625, %v5637
    %v5649 = vsub.f32 %v5626, %v5637
    %v5650 = vsub.f32 %v5627, %v5637
    %v5651 = vsub.f32 %v5628, %v5637
    %v5652 = vsub.f32 %v5629, %v5637
    %v5653 = vsub.f32 %v5630, %v5637
    %v5654 = vsub.f32 %v5631, %v5637
    %v5655 = vld [vmem:[%s20] sm:$0x1]
    %v5656 = vadd.f32 %v5655, 1e-05
    %v5657 = vrsqrt.pop %v5656
    %v5659 = vlaneseq
    %v5660 = vshrl.u32 %v5659, 7
    %v5661 = vsub.s32 0, %v5660
    %v5662 = vrot.slane %v5657, %v5661
    %v5664 = vmul.f32 %v5639, %v5662
    %v5665 = vmul.f32 %v5640, %v5662
    %v5666 = vmul.f32 %v5641, %v5662
    %v5667 = vmul.f32 %v5642, %v5662
    %v5668 = vmul.f32 %v5643, %v5662
    %v5669 = vmul.f32 %v5644, %v5662
    %v5670 = vmul.f32 %v5645, %v5662
    %v5671 = vmul.f32 %v5646, %v5662
    %v5672 = vmul.f32 %v5647, %v5662
    %v5673 = vmul.f32 %v5648, %v5662
    %v5674 = vmul.f32 %v5649, %v5662
    %v5675 = vmul.f32 %v5650, %v5662
    %v5676 = vmul.f32 %v5651, %v5662
    %v5677 = vmul.f32 %v5652, %v5662
    %v5678 = vmul.f32 %v5653, %v5662
    %v5679 = vmul.f32 %v5654, %v5662
    %v5680 = vld [vmem:[%s17] sm:$0x1]
    %v5682 = vlaneseq
    %v5683 = vshrl.u32 %v5682, 7
    %v5684 = vsub.s32 0, %v5683
    %v5685 = vrot.slane %v5680, %v5684
    %v5687 = vmul.f32 %v5664, %v5685
    %v5688 = vmul.f32 %v5665, %v5685
    %v5689 = vmul.f32 %v5666, %v5685
    %v5690 = vmul.f32 %v5667, %v5685
    %v5691 = vmul.f32 %v5668, %v5685
    %v5692 = vmul.f32 %v5669, %v5685
    %v5693 = vmul.f32 %v5670, %v5685
    %v5694 = vmul.f32 %v5671, %v5685
    %v5695 = vmul.f32 %v5672, %v5685
    %v5696 = vmul.f32 %v5673, %v5685
    %v5697 = vmul.f32 %v5674, %v5685
    %v5698 = vmul.f32 %v5675, %v5685
    %v5699 = vmul.f32 %v5676, %v5685
    %v5700 = vmul.f32 %v5677, %v5685
    %v5701 = vmul.f32 %v5678, %v5685
    %v5702 = vmul.f32 %v5679, %v5685
    %v5703 = vld [vmem:[%s18] sm:$0x1]
    %v5705 = vlaneseq
    %v5706 = vshrl.u32 %v5705, 7
    %v5707 = vsub.s32 0, %v5706
    %v5708 = vrot.slane %v5703, %v5707
    %v5710 = vadd.f32 %v5687, %v5708
    %v5711 = vadd.f32 %v5688, %v5708
    %v5712 = vadd.f32 %v5689, %v5708
    %v5713 = vadd.f32 %v5690, %v5708
    %v5714 = vadd.f32 %v5691, %v5708
    %v5715 = vadd.f32 %v5692, %v5708
    %v5716 = vadd.f32 %v5693, %v5708
    %v5717 = vadd.f32 %v5694, %v5708
    %v5718 = vadd.f32 %v5695, %v5708
    %v5719 = vadd.f32 %v5696, %v5708
    %v5720 = vadd.f32 %v5697, %v5708
    %v5721 = vadd.f32 %v5698, %v5708
    %v5722 = vadd.f32 %v5699, %v5708
    %v5723 = vadd.f32 %v5700, %v5708
    %v5724 = vadd.f32 %v5701, %v5708
    %v5725 = vadd.f32 %v5702, %v5708
    %5726 = vst.msk [vmem:[#allocation8] sm:$0xff] %vm158, %v5710
    %5727 = vst.msk [vmem:[#allocation8 + $0x8] sm:$0xff] %vm158, %v5711
    %5728 = vst.msk [vmem:[#allocation8 + $0x10] sm:$0xff] %vm158, %v5712
    %5729 = vst.msk [vmem:[#allocation8 + $0x18] sm:$0xff] %vm158, %v5713
    %5730 = vst.msk [vmem:[#allocation8 + $0x20] sm:$0xff] %vm158, %v5714
    %5731 = vst.msk [vmem:[#allocation8 + $0x28] sm:$0xff] %vm158, %v5715
    %5732 = vst.msk [vmem:[#allocation8 + $0x30] sm:$0xff] %vm158, %v5716
    %5733 = vst.msk [vmem:[#allocation8 + $0x38] sm:$0xff] %vm158, %v5717
    %5734 = vst.msk [vmem:[#allocation8 + $0x40] sm:$0xff] %vm158, %v5718
    %5735 = vst.msk [vmem:[#allocation8 + $0x48] sm:$0xff] %vm158, %v5719
    %5736 = vst.msk [vmem:[#allocation8 + $0x50] sm:$0xff] %vm158, %v5720
    %5737 = vst.msk [vmem:[#allocation8 + $0x58] sm:$0xff] %vm158, %v5721
    %5738 = vst.msk [vmem:[#allocation8 + $0x60] sm:$0xff] %vm158, %v5722
    %5739 = vst.msk [vmem:[#allocation8 + $0x68] sm:$0xff] %vm158, %v5723
    %5740 = vst.msk [vmem:[#allocation8 + $0x70] sm:$0xff] %vm158, %v5724
    %5741 = vst.msk [vmem:[#allocation8 + $0x78] sm:$0xff] %vm158, %v5725
    // Predicated region
    $region98: #{tpu_custom_call.1} parent=1 // pred_check
      _
    $region99: #{tpu_custom_call.1} parent=1 // pred_check_branch
      %5743 = sbr.rel (0) target = $region101
    $region100: #{tpu_custom_call.1} parent=1 // pred_region
      %s5745 = ssub.s32 2048, 2048
      %5746 = vsyncadd [#allocation4], %s5745
      %s5747 = sshll.u32 [#allocation8], 4
      %s5748 = int_to_ptr.vmem [resolvable:$true] %s5747
      %5753 = dma.vmem_to_hbm [thread:$0]  %s5748, 2048, %s21, [#allocation4], 128, 128, 8
    $region101: #{tpu_custom_call.1} parent=1 // pred_fallthru
      _
    // Predicated region
    $region102: #{tpu_custom_call.1} parent=1 // pred_check
      _
    $region103: #{tpu_custom_call.1} parent=1 // pred_check_branch
      %5755 = sbr.rel (0) target = $region105
    $region104: #{tpu_custom_call.1} parent=1 // pred_region
      %5756 = dma.done [#allocation4], 2048
    $region105: #{tpu_custom_call.1} parent=1 // pred_fallthru
      _
    %5757 = vsyncpa [#allocation3], 1
    %5758 = vsyncpa [#allocation6], 1
    %5759 = vsyncpa [#allocation4], 1

</llo_original>
